<compile_context>
chip_gen: v7x
topology: tpu7x:2x2x1
jax: 0.10.0
libtpu: 0.0.40
codegen_flags: <defaults>
</compile_context>

<pallas_src>
import jax
import jax.numpy as jnp
from jax.experimental import pallas as pl
from jax.experimental.pallas import tpu as pltpu

# ---------------- module configuration (matches nn.Module __init__) ----------
DIM = 64                 # channel dim
DIM_HEAD = 32
HEADS = DIM // DIM_HEAD  # 2
INNER = DIM_HEAD * HEADS # 64
WSZ = 8                  # window_size
T = WSZ * WSZ            # tokens per window
SCALE = DIM_HEAD ** -0.5
EPS = 1e-5
ATTN_TYPE = "short"


# ---------------- deterministic parameter init --------------------------------
def init_params(key):
    ks = jax.random.split(key, 8)
    d4 = DIM // 4
    p = {}
    # channel LayerNorm (g, b) of shape (1, dim, 1, 1) in torch -> store as (1, dim)
    p["ln_g"] = jnp.ones((1, DIM), jnp.float32)
    p["ln_b"] = jnp.zeros((1, DIM), jnp.float32)
    # to_qkv: Conv2d(dim, 3*inner, 1, bias=False) -> matmul weight (dim, 3*inner)
    p["w_qkv"] = jax.random.normal(ks[0], (DIM, 3 * INNER), jnp.float32) * 0.05
    # to_out: Conv2d(inner, dim, 1) -> matmul weight (inner, dim) + bias (dim,)
    p["w_out"] = jax.random.normal(ks[1], (INNER, DIM), jnp.float32) * 0.05
    p["b_out"] = jax.random.normal(ks[2], (1, DIM), jnp.float32) * 0.05
    # DynamicPositionBias MLP: Linear(2,d4) LN ReLU  x3 ... Linear(d4,1)
    def lin(k, i, o):
        return (jax.random.normal(k, (i, o), jnp.float32) * 0.1,
                jnp.zeros((o,), jnp.float32))
    p["dpb_w1"], p["dpb_b1"] = lin(ks[3], 2, d4)
    p["dpb_g1"], p["dpb_bb1"] = jnp.ones((d4,), jnp.float32), jnp.zeros((d4,), jnp.float32)
    p["dpb_w2"], p["dpb_b2"] = lin(ks[4], d4, d4)
    p["dpb_g2"], p["dpb_bb2"] = jnp.ones((d4,), jnp.float32), jnp.zeros((d4,), jnp.float32)
    p["dpb_w3"], p["dpb_b3"] = lin(ks[5], d4, d4)
    p["dpb_g3"], p["dpb_bb3"] = jnp.ones((d4,), jnp.float32), jnp.zeros((d4,), jnp.float32)
    p["dpb_w4"], p["dpb_b4"] = lin(ks[6], d4, 1)
    return p


# ---------------- dynamic position bias (tiny MLP, plain-JAX glue) ------------
def _layernorm(x, g, b, eps=1e-5):
    mu = x.mean(-1, keepdims=True)
    var = ((x - mu) ** 2).mean(-1, keepdims=True)
    return (x - mu) / jnp.sqrt(var + eps) * g + b


def dpb_forward(p, rel):
    x = rel @ p["dpb_w1"] + p["dpb_b1"]
    x = jax.nn.relu(_layernorm(x, p["dpb_g1"], p["dpb_bb1"]))
    x = x @ p["dpb_w2"] + p["dpb_b2"]
    x = jax.nn.relu(_layernorm(x, p["dpb_g2"], p["dpb_bb2"]))
    x = x @ p["dpb_w3"] + p["dpb_b3"]
    x = jax.nn.relu(_layernorm(x, p["dpb_g3"], p["dpb_bb3"]))
    x = x @ p["dpb_w4"] + p["dpb_b4"]
    return x[..., 0]


def compute_rel_pos_bias(p):
    # rel_pos_indices buffer (exact reproduction of the torch code, including
    # the (2*wsz-1) stride into the (2*wsz+1)^2-entry bias table)
    pos = jnp.arange(WSZ)
    grid = jnp.stack(jnp.meshgrid(pos, pos, indexing="ij"))          # (2, w, w)
    grid = grid.reshape(2, -1).T                                     # (T, 2)
    rel = grid[:, None, :] - grid[None, :, :] + (WSZ - 1)            # (T, T, 2)
    idx = (rel * jnp.array([2 * WSZ - 1, 1])).sum(-1)                # (T, T) int32
    pos2 = jnp.arange(-WSZ, WSZ + 1)
    g2 = jnp.stack(jnp.meshgrid(pos2, pos2, indexing="ij"))
    g2 = g2.reshape(2, -1).T.astype(jnp.float32)                     # ((2w+1)^2, 2)
    biases = dpb_forward(p, g2)                                      # ((2w+1)^2,)
    return biases[idx]                                               # (T, T)


# ---------------- Pallas kernel (the hot path) ---------------------------------
def _attn_kernel(x_ref, g_ref, b_ref, wqkv_ref, wout_ref, bout_ref,
                 bias_ref, o_ref):
    wb = x_ref.shape[0]                                  # windows per grid step
    x = x_ref[...].reshape(wb * T, DIM)                  # (wb*T, D) f32

    # channel LayerNorm over D (biased variance), per token, f32 math
    mu = jnp.mean(x, axis=-1, keepdims=True)
    var = jnp.mean((x - mu) ** 2, axis=-1, keepdims=True)
    xn = (x - mu) * jax.lax.rsqrt(var + EPS) * g_ref[...] + b_ref[...]

    # to_qkv (1x1 conv == channel matmul), bf16 operands / f32 accumulation.
    # softmax scale is pre-folded into the q columns of wqkv in the wrapper.
    qkv = jnp.dot(xn.astype(jnp.bfloat16), wqkv_ref[...],
                  preferred_element_type=jnp.float32)    # (wb*T, 3*INNER) f32
    qkv = qkv.reshape(wb, T, 3 * INNER)
    q = qkv[..., 0 * INNER:1 * INNER].astype(jnp.bfloat16)
    k = qkv[..., 1 * INNER:2 * INNER].astype(jnp.bfloat16)
    v = qkv[..., 2 * INNER:3 * INNER].astype(jnp.bfloat16)

    bias = bias_ref[...]                                 # (T, T) f32

    y = jnp.zeros((wb * T, DIM), jnp.float32)
    for h in range(HEADS):                               # static unroll (HEADS=2)
        sl = slice(h * DIM_HEAD, (h + 1) * DIM_HEAD)
        qh, kh, vh = q[..., sl], k[..., sl], v[..., sl]  # (wb, T, dh) bf16
        sim = jnp.einsum("wid,wjd->wij", qh, kh,
                         preferred_element_type=jnp.float32) + bias
        sim = sim - jnp.max(sim, axis=-1, keepdims=True)
        e = jnp.exp(sim)                                 # f32 (EUP)
        pr = e * pl.reciprocal(jnp.sum(e, axis=-1, keepdims=True), approx=True)
        oh = jnp.einsum("wij,wjd->wid", pr.astype(jnp.bfloat16), vh,
                        preferred_element_type=jnp.float32)   # (wb, T, dh)
        # accumulate this head's contribution through its slice of w_out
        y = y + jnp.dot(oh.reshape(wb * T, DIM_HEAD).astype(jnp.bfloat16),
                        wout_ref[sl, :],
                        preferred_element_type=jnp.float32)
    y = y + bout_ref[...]                                # to_out bias
    o_ref[...] = y.reshape(wb, T, DIM).astype(o_ref.dtype)


def _pick_window_batch(nw, cap=64):
    """Largest divisor of nw (<= cap) that still leaves >=2 grid steps."""
    if nw <= 1:
        return max(nw, 1)
    best = 1
    for d in range(1, min(nw, cap) + 1):
        if nw % d == 0 and nw // d >= 2:
            best = d
    return best


def attention_forward(x, params):
    """x: (B, DIM, H, W) float32 (NCHW, like the torch module)."""
    B, D, H, W = x.shape
    assert D == DIM and H % WSZ == 0 and W % WSZ == 0
    hh, ww = H // WSZ, W // WSZ
    nw = B * hh * ww
    wb = _pick_window_batch(nw)

    # 'short': b d (h s1) (w s2) -> (b h w) (s1 s2) d   (channels-last for kernel)
    # TODO(synk): fold this NCHW<->window transpose into the BlockSpec index_map
    # (in-kernel einshape) to remove the extra HBM pass on each side.
    xw = x.reshape(B, D, hh, WSZ, ww, WSZ)
    xw = xw.transpose(0, 2, 4, 3, 5, 1).reshape(nw, T, D)

    bias = compute_rel_pos_bias(params)                  # (T, T) f32

    # weight prep: fold softmax scale into q columns, bf16 MXU operands
    w_qkv = params["w_qkv"].at[:, :INNER].multiply(SCALE).astype(jnp.bfloat16)
    w_out = params["w_out"].astype(jnp.bfloat16)

    flops = (2 * nw * T * (D * 3 * INNER + INNER * D)
             + 4 * nw * HEADS * T * T * DIM_HEAD)
    bytes_accessed = (2 * nw * T * D * 4
                      + (D * 3 * INNER + INNER * D) * 2
                      + T * T * 4)
    transcendentals = nw * HEADS * T * T

    yw = pl.pallas_call(
        _attn_kernel,
        out_shape=jax.ShapeDtypeStruct((nw, T, D), x.dtype),
        grid_spec=pltpu.PrefetchScalarGridSpec(
            num_scalar_prefetch=0,
            grid=(nw // wb,),
            in_specs=[
                pl.BlockSpec((wb, T, D), lambda i: (i, 0, 0)),          # x windows
                pl.BlockSpec((1, D), lambda i: (0, 0)),                 # ln g
                pl.BlockSpec((1, D), lambda i: (0, 0)),                 # ln b
                pl.BlockSpec((D, 3 * INNER), lambda i: (0, 0)),         # qkv weight (bf16)
                pl.BlockSpec((INNER, D), lambda i: (0, 0)),             # out weight (bf16)
                pl.BlockSpec((1, D), lambda i: (0, 0)),                 # out bias
                pl.BlockSpec((T, T), lambda i: (0, 0)),                 # rel pos bias
            ],
            out_specs=pl.BlockSpec((wb, T, D), lambda i: (i, 0, 0)),
        ),
        compiler_params=pltpu.CompilerParams(
            dimension_semantics=("parallel",)),
        cost_estimate=pl.CostEstimate(
            flops=flops,
            transcendentals=transcendentals,
            bytes_accessed=bytes_accessed),
    )(xw, params["ln_g"], params["ln_b"], w_qkv, w_out, params["b_out"], bias)

    # (b h w) (s1 s2) d -> b d (h s1) (w s2)
    y = yw.reshape(B, hh, ww, WSZ, WSZ, D)
    y = y.transpose(0, 5, 1, 3, 2, 4).reshape(B, D, H, W)
    return y


# ---------------- pure-JAX reference for verification --------------------------
def attention_reference(x, params):
    B, D, H, W = x.shape
    hh, ww = H // WSZ, W // WSZ
    mu = x.mean(axis=1, keepdims=True)
    var = ((x - mu) ** 2).mean(axis=1, keepdims=True)
    g = params["ln_g"].reshape(1, D, 1, 1)
    b = params["ln_b"].reshape(1, D, 1, 1)
    xn = (x - mu) / jnp.sqrt(var + EPS) * g + b
    xw = xn.reshape(B, D, hh, WSZ, ww, WSZ).transpose(0, 2, 4, 3, 5, 1).reshape(-1, T, D)
    qkv = xw @ params["w_qkv"]
    q, k, v = jnp.split(qkv, 3, axis=-1)
    to_heads = lambda t: t.reshape(-1, T, HEADS, DIM_HEAD).transpose(0, 2, 1, 3)
    q, k, v = map(to_heads, (q, k, v))
    q = q * SCALE
    sim = jnp.einsum("bhid,bhjd->bhij", q, k) + compute_rel_pos_bias(params)[None, None]
    attn = jax.nn.softmax(sim, axis=-1)
    out = jnp.einsum("bhij,bhjd->bhid", attn, v)
    out = out.transpose(0, 2, 1, 3).reshape(-1, T, INNER)
    y = out @ params["w_out"] + params["b_out"]
    y = y.reshape(B, hh, ww, WSZ, WSZ, D).transpose(0, 5, 1, 3, 2, 4).reshape(B, D, H, W)
    return y


if __name__ == "__main__":
    key = jax.random.PRNGKey(0)
    kx, kp = jax.random.split(key)
    B, H, W = 2, 16, 16
    x = jax.random.normal(kx, (B, DIM, H, W), jnp.float32)
    params = init_params(kp)

    fwd = jax.jit(attention_forward)
    y = jax.block_until_ready(fwd(x, params))

    y_ref = jax.block_until_ready(attention_reference(x, params))
    assert y.shape == (B, DIM, H, W)
    # bf16 MXU operands (f32 accumulation) -> loosened tolerance vs f32 reference
    assert jnp.allclose(y, y_ref, atol=3e-2, rtol=3e-2), "mismatch vs reference"
    print("KERNEL_OK")
</pallas_src>

<mosaic_0001>
module attributes {stable_mosaic.version = 11 : i64} {
  func.func @_attn_kernel(%arg0: i32, %arg1: memref<4x64x64xf32, #tpu.memory_space<vmem>>, %arg2: memref<1x64xf32, #tpu.memory_space<vmem>>, %arg3: memref<1x64xf32, #tpu.memory_space<vmem>>, %arg4: memref<64x192xbf16, #tpu.memory_space<vmem>>, %arg5: memref<64x64xbf16, #tpu.memory_space<vmem>>, %arg6: memref<1x64xf32, #tpu.memory_space<vmem>>, %arg7: memref<64x64xf32, #tpu.memory_space<vmem>>, %arg8: memref<4x64x64xf32, #tpu.memory_space<vmem>>) attributes {dimension_semantics = [#tpu.dimension_semantics<parallel>], iteration_bounds = array<i64: 2>, scalar_prefetch = 0 : i64, scratch_operands = 0 : i64, tpu.core_type = #tpu.core_type<tc>, window_params = [{transform_indices = @transform_0, window_bounds = array<i64: 4, 64, 64>}, {pipeline_mode = #tpu.pipeline_mode<synchronous>, transform_indices = @transform_1, window_bounds = array<i64: 1, 64>}, {pipeline_mode = #tpu.pipeline_mode<synchronous>, transform_indices = @transform_2, window_bounds = array<i64: 1, 64>}, {pipeline_mode = #tpu.pipeline_mode<synchronous>, transform_indices = @transform_3, window_bounds = array<i64: 64, 192>}, {pipeline_mode = #tpu.pipeline_mode<synchronous>, transform_indices = @transform_4, window_bounds = array<i64: 64, 64>}, {pipeline_mode = #tpu.pipeline_mode<synchronous>, transform_indices = @transform_5, window_bounds = array<i64: 1, 64>}, {pipeline_mode = #tpu.pipeline_mode<synchronous>, transform_indices = @transform_6, window_bounds = array<i64: 64, 64>}, {transform_indices = @transform_7, window_bounds = array<i64: 4, 64, 64>}]} {
    %c0 = arith.constant 0 : index
    %c0_0 = arith.constant 0 : index
    %c0_1 = arith.constant 0 : index
    %0 = vector.load %arg1[%c0, %c0_0, %c0_1] : memref<4x64x64xf32, #tpu.memory_space<vmem>>, vector<4x64x64xf32>
    %1 = vector.shape_cast %0 : vector<4x64x64xf32> to vector<256x64xf32>
    %cst = arith.constant dense<0.000000e+00> : vector<256xf32>
    %2 = vector.multi_reduction <add>, %1, %cst [1] : vector<256x64xf32> to vector<256xf32>
    %3 = vector.shape_cast %2 : vector<256xf32> to vector<256x1xf32>
    %cst_2 = arith.constant 6.400000e+01 : f32
    %4 = vector.broadcast %cst_2 : f32 to vector<256x1xf32>
    %5 = arith.divf %3, %4 : vector<256x1xf32>
    %6 = vector.broadcast %5 : vector<256x1xf32> to vector<256x64xf32>
    %7 = arith.subf %1, %6 : vector<256x64xf32>
    %8 = arith.mulf %7, %7 : vector<256x64xf32>
    %cst_3 = arith.constant dense<0.000000e+00> : vector<256xf32>
    %9 = vector.multi_reduction <add>, %8, %cst_3 [1] : vector<256x64xf32> to vector<256xf32>
    %10 = vector.shape_cast %9 : vector<256xf32> to vector<256x1xf32>
    %cst_4 = arith.constant 6.400000e+01 : f32
    %11 = vector.broadcast %cst_4 : f32 to vector<256x1xf32>
    %12 = arith.divf %10, %11 : vector<256x1xf32>
    %13 = vector.broadcast %5 : vector<256x1xf32> to vector<256x64xf32>
    %14 = arith.subf %1, %13 : vector<256x64xf32>
    %cst_5 = arith.constant 9.99999974E-6 : f32
    %15 = vector.broadcast %cst_5 : f32 to vector<256x1xf32>
    %16 = arith.addf %12, %15 : vector<256x1xf32>
    %17 = math.rsqrt %16 : vector<256x1xf32>
    %18 = vector.broadcast %17 : vector<256x1xf32> to vector<256x64xf32>
    %19 = arith.mulf %14, %18 : vector<256x64xf32>
    %c0_6 = arith.constant 0 : index
    %c0_7 = arith.constant 0 : index
    %20 = vector.load %arg2[%c0_6, %c0_7] : memref<1x64xf32, #tpu.memory_space<vmem>>, vector<1x64xf32>
    %21 = vector.broadcast %20 : vector<1x64xf32> to vector<256x64xf32>
    %22 = arith.mulf %19, %21 : vector<256x64xf32>
    %c0_8 = arith.constant 0 : index
    %c0_9 = arith.constant 0 : index
    %23 = vector.load %arg3[%c0_8, %c0_9] : memref<1x64xf32, #tpu.memory_space<vmem>>, vector<1x64xf32>
    %24 = vector.broadcast %23 : vector<1x64xf32> to vector<256x64xf32>
    %25 = arith.addf %22, %24 : vector<256x64xf32>
    %26 = arith.truncf %25 : vector<256x64xf32> to vector<256x64xbf16>
    %c0_10 = arith.constant 0 : index
    %c0_11 = arith.constant 0 : index
    %27 = vector.load %arg4[%c0_10, %c0_11] : memref<64x192xbf16, #tpu.memory_space<vmem>>, vector<64x192xbf16>
    %cst_12 = arith.constant dense<0.000000e+00> : vector<256x192xf32>
    %28 = tpu.matmul %26, %27, %cst_12 {dimension_numbers = #tpu.dot_dimension_numbers<[1], [0], [0], [1], [0, 0, 1, 1], [], []>} : vector<256x64xbf16>, vector<64x192xbf16>, vector<256x192xf32> -> vector<256x192xf32>
    %29 = vector.shape_cast %28 : vector<256x192xf32> to vector<4x64x192xf32>
    %30 = vector.extract_strided_slice %29 {offsets = [0, 0, 0], sizes = [4, 64, 64], strides = [1, 1, 1]} : vector<4x64x192xf32> to vector<4x64x64xf32>
    %31 = arith.truncf %30 : vector<4x64x64xf32> to vector<4x64x64xbf16>
    %32 = vector.extract_strided_slice %29 {offsets = [0, 0, 64], sizes = [4, 64, 64], strides = [1, 1, 1]} : vector<4x64x192xf32> to vector<4x64x64xf32>
    %33 = arith.truncf %32 : vector<4x64x64xf32> to vector<4x64x64xbf16>
    %34 = vector.extract_strided_slice %29 {offsets = [0, 0, 128], sizes = [4, 64, 64], strides = [1, 1, 1]} : vector<4x64x192xf32> to vector<4x64x64xf32>
    %35 = arith.truncf %34 : vector<4x64x64xf32> to vector<4x64x64xbf16>
    %c0_13 = arith.constant 0 : index
    %c0_14 = arith.constant 0 : index
    %36 = vector.load %arg7[%c0_13, %c0_14] : memref<64x64xf32, #tpu.memory_space<vmem>>, vector<64x64xf32>
    %cst_15 = arith.constant 0.000000e+00 : f32
    %37 = vector.broadcast %cst_15 : f32 to vector<256x64xf32>
    %38 = vector.extract_strided_slice %31 {offsets = [0, 0, 0], sizes = [4, 64, 32], strides = [1, 1, 1]} : vector<4x64x64xbf16> to vector<4x64x32xbf16>
    %39 = vector.extract_strided_slice %33 {offsets = [0, 0, 0], sizes = [4, 64, 32], strides = [1, 1, 1]} : vector<4x64x64xbf16> to vector<4x64x32xbf16>
    %40 = vector.extract_strided_slice %35 {offsets = [0, 0, 0], sizes = [4, 64, 32], strides = [1, 1, 1]} : vector<4x64x64xbf16> to vector<4x64x32xbf16>
    "tpu.trace_start"() <{level = 10 : i32, message = "wid,wjd->wij"}> : () -> ()
    %cst_16 = arith.constant dense<0.000000e+00> : vector<4x64x64xf32>
    %41 = tpu.matmul %38, %39, %cst_16 {dimension_numbers = #tpu.dot_dimension_numbers<[2], [2], [1], [1], [0, 0, 0, 1, 1, 1], [0], [0]>} : vector<4x64x32xbf16>, vector<4x64x32xbf16>, vector<4x64x64xf32> -> vector<4x64x64xf32>
    "tpu.trace_stop"() : () -> ()
    %42 = vector.shape_cast %36 : vector<64x64xf32> to vector<1x64x64xf32>
    %43 = vector.broadcast %42 : vector<1x64x64xf32> to vector<4x64x64xf32>
    %44 = arith.addf %41, %43 : vector<4x64x64xf32>
    %cst_17 = arith.constant dense<0xFF800000> : vector<4x64xf32>
    %45 = vector.multi_reduction <maximumf>, %44, %cst_17 [2] : vector<4x64x64xf32> to vector<4x64xf32>
    %46 = vector.shape_cast %45 : vector<4x64xf32> to vector<4x64x1xf32>
    %47 = vector.broadcast %46 : vector<4x64x1xf32> to vector<4x64x64xf32>
    %48 = arith.subf %44, %47 : vector<4x64x64xf32>
    %49 = math.exp %48 : vector<4x64x64xf32>
    %cst_18 = arith.constant dense<0.000000e+00> : vector<4x64xf32>
    %50 = vector.multi_reduction <add>, %49, %cst_18 [2] : vector<4x64x64xf32> to vector<4x64xf32>
    %51 = vector.shape_cast %50 : vector<4x64xf32> to vector<4x64x1xf32>
    %52 = tpu.reciprocal %51 {approx = true} : vector<4x64x1xf32> -> vector<4x64x1xf32>
    %53 = vector.broadcast %52 : vector<4x64x1xf32> to vector<4x64x64xf32>
    %54 = arith.mulf %49, %53 : vector<4x64x64xf32>
    %55 = arith.truncf %54 : vector<4x64x64xf32> to vector<4x64x64xbf16>
    "tpu.trace_start"() <{level = 10 : i32, message = "wij,wjd->wid"}> : () -> ()
    %cst_19 = arith.constant dense<0.000000e+00> : vector<4x64x32xf32>
    %56 = tpu.matmul %55, %40, %cst_19 {dimension_numbers = #tpu.dot_dimension_numbers<[2], [1], [1], [2], [0, 0, 0, 1, 1, 2], [0], [0]>} : vector<4x64x64xbf16>, vector<4x64x32xbf16>, vector<4x64x32xf32> -> vector<4x64x32xf32>
    "tpu.trace_stop"() : () -> ()
    %57 = vector.shape_cast %56 : vector<4x64x32xf32> to vector<256x32xf32>
    %58 = arith.truncf %57 : vector<256x32xf32> to vector<256x32xbf16>
    %c0_20 = arith.constant 0 : index
    %c0_21 = arith.constant 0 : index
    %59 = vector.load %arg5[%c0_20, %c0_21] : memref<64x64xbf16, #tpu.memory_space<vmem>>, vector<32x64xbf16>
    %cst_22 = arith.constant dense<0.000000e+00> : vector<256x64xf32>
    %60 = tpu.matmul %58, %59, %cst_22 {dimension_numbers = #tpu.dot_dimension_numbers<[1], [0], [0], [1], [0, 0, 1, 1], [], []>} : vector<256x32xbf16>, vector<32x64xbf16>, vector<256x64xf32> -> vector<256x64xf32>
    %61 = arith.addf %37, %60 : vector<256x64xf32>
    %62 = vector.extract_strided_slice %31 {offsets = [0, 0, 32], sizes = [4, 64, 32], strides = [1, 1, 1]} : vector<4x64x64xbf16> to vector<4x64x32xbf16>
    %63 = vector.extract_strided_slice %33 {offsets = [0, 0, 32], sizes = [4, 64, 32], strides = [1, 1, 1]} : vector<4x64x64xbf16> to vector<4x64x32xbf16>
    %64 = vector.extract_strided_slice %35 {offsets = [0, 0, 32], sizes = [4, 64, 32], strides = [1, 1, 1]} : vector<4x64x64xbf16> to vector<4x64x32xbf16>
    "tpu.trace_start"() <{level = 10 : i32, message = "wid,wjd->wij"}> : () -> ()
    %cst_23 = arith.constant dense<0.000000e+00> : vector<4x64x64xf32>
    %65 = tpu.matmul %62, %63, %cst_23 {dimension_numbers = #tpu.dot_dimension_numbers<[2], [2], [1], [1], [0, 0, 0, 1, 1, 1], [0], [0]>} : vector<4x64x32xbf16>, vector<4x64x32xbf16>, vector<4x64x64xf32> -> vector<4x64x64xf32>
    "tpu.trace_stop"() : () -> ()
    %66 = vector.shape_cast %36 : vector<64x64xf32> to vector<1x64x64xf32>
    %67 = vector.broadcast %66 : vector<1x64x64xf32> to vector<4x64x64xf32>
    %68 = arith.addf %65, %67 : vector<4x64x64xf32>
    %cst_24 = arith.constant dense<0xFF800000> : vector<4x64xf32>
    %69 = vector.multi_reduction <maximumf>, %68, %cst_24 [2] : vector<4x64x64xf32> to vector<4x64xf32>
    %70 = vector.shape_cast %69 : vector<4x64xf32> to vector<4x64x1xf32>
    %71 = vector.broadcast %70 : vector<4x64x1xf32> to vector<4x64x64xf32>
    %72 = arith.subf %68, %71 : vector<4x64x64xf32>
    %73 = math.exp %72 : vector<4x64x64xf32>
    %cst_25 = arith.constant dense<0.000000e+00> : vector<4x64xf32>
    %74 = vector.multi_reduction <add>, %73, %cst_25 [2] : vector<4x64x64xf32> to vector<4x64xf32>
    %75 = vector.shape_cast %74 : vector<4x64xf32> to vector<4x64x1xf32>
    %76 = tpu.reciprocal %75 {approx = true} : vector<4x64x1xf32> -> vector<4x64x1xf32>
    %77 = vector.broadcast %76 : vector<4x64x1xf32> to vector<4x64x64xf32>
    %78 = arith.mulf %73, %77 : vector<4x64x64xf32>
    %79 = arith.truncf %78 : vector<4x64x64xf32> to vector<4x64x64xbf16>
    "tpu.trace_start"() <{level = 10 : i32, message = "wij,wjd->wid"}> : () -> ()
    %cst_26 = arith.constant dense<0.000000e+00> : vector<4x64x32xf32>
    %80 = tpu.matmul %79, %64, %cst_26 {dimension_numbers = #tpu.dot_dimension_numbers<[2], [1], [1], [2], [0, 0, 0, 1, 1, 2], [0], [0]>} : vector<4x64x64xbf16>, vector<4x64x32xbf16>, vector<4x64x32xf32> -> vector<4x64x32xf32>
    "tpu.trace_stop"() : () -> ()
    %81 = vector.shape_cast %80 : vector<4x64x32xf32> to vector<256x32xf32>
    %82 = arith.truncf %81 : vector<256x32xf32> to vector<256x32xbf16>
    %c32 = arith.constant 32 : index
    %c0_27 = arith.constant 0 : index
    %83 = vector.load %arg5[%c32, %c0_27] : memref<64x64xbf16, #tpu.memory_space<vmem>>, vector<32x64xbf16>
    %cst_28 = arith.constant dense<0.000000e+00> : vector<256x64xf32>
    %84 = tpu.matmul %82, %83, %cst_28 {dimension_numbers = #tpu.dot_dimension_numbers<[1], [0], [0], [1], [0, 0, 1, 1], [], []>} : vector<256x32xbf16>, vector<32x64xbf16>, vector<256x64xf32> -> vector<256x64xf32>
    %85 = arith.addf %61, %84 : vector<256x64xf32>
    %c0_29 = arith.constant 0 : index
    %c0_30 = arith.constant 0 : index
    %86 = vector.load %arg6[%c0_29, %c0_30] : memref<1x64xf32, #tpu.memory_space<vmem>>, vector<1x64xf32>
    %87 = vector.broadcast %86 : vector<1x64xf32> to vector<256x64xf32>
    %88 = arith.addf %85, %87 : vector<256x64xf32>
    %89 = vector.shape_cast %88 : vector<256x64xf32> to vector<4x64x64xf32>
    %c0_31 = arith.constant 0 : index
    %c0_32 = arith.constant 0 : index
    %c0_33 = arith.constant 0 : index
    %90 = vector.load %arg8[%c0_31, %c0_32, %c0_33] : memref<4x64x64xf32, #tpu.memory_space<vmem>>, vector<4x64x64xf32>
    tpu.vector_store %arg8[%c0_31, %c0_32, %c0_33], %89 {strides = array<i32>} : memref<4x64x64xf32, #tpu.memory_space<vmem>>, vector<4x64x64xf32>,
    return
  }
  func.func @transform_0(%arg0: i32) -> (i32, i32, i32) {
    %c0_i32 = arith.constant 0 : i32
    %c0_i32_0 = arith.constant 0 : i32
    %c0_i32_1 = arith.constant 0 : i32
    return %arg0, %c0_i32, %c0_i32_0 : i32, i32, i32
  }
  func.func @transform_1(%arg0: i32) -> (i32, i32) {
    %c0_i32 = arith.constant 0 : i32
    %c0_i32_0 = arith.constant 0 : i32
    %c0_i32_1 = arith.constant 0 : i32
    return %c0_i32, %c0_i32_0 : i32, i32
  }
  func.func @transform_2(%arg0: i32) -> (i32, i32) {
    %c0_i32 = arith.constant 0 : i32
    %c0_i32_0 = arith.constant 0 : i32
    %c0_i32_1 = arith.constant 0 : i32
    return %c0_i32, %c0_i32_0 : i32, i32
  }
  func.func @transform_3(%arg0: i32) -> (i32, i32) {
    %c0_i32 = arith.constant 0 : i32
    %c0_i32_0 = arith.constant 0 : i32
    %c0_i32_1 = arith.constant 0 : i32
    return %c0_i32, %c0_i32_0 : i32, i32
  }
  func.func @transform_4(%arg0: i32) -> (i32, i32) {
    %c0_i32 = arith.constant 0 : i32
    %c0_i32_0 = arith.constant 0 : i32
    %c0_i32_1 = arith.constant 0 : i32
    return %c0_i32, %c0_i32_0 : i32, i32
  }
  func.func @transform_5(%arg0: i32) -> (i32, i32) {
    %c0_i32 = arith.constant 0 : i32
    %c0_i32_0 = arith.constant 0 : i32
    %c0_i32_1 = arith.constant 0 : i32
    return %c0_i32, %c0_i32_0 : i32, i32
  }
  func.func @transform_6(%arg0: i32) -> (i32, i32) {
    %c0_i32 = arith.constant 0 : i32
    %c0_i32_0 = arith.constant 0 : i32
    %c0_i32_1 = arith.constant 0 : i32
    return %c0_i32, %c0_i32_0 : i32, i32
  }
  func.func @transform_7(%arg0: i32) -> (i32, i32, i32) {
    %c0_i32 = arith.constant 0 : i32
    %c0_i32_0 = arith.constant 0 : i32
    %c0_i32_1 = arith.constant 0 : i32
    return %arg0, %c0_i32, %c0_i32_0 : i32, i32, i32
  }
}

</mosaic_0001>

<llo_original>
// kernel: attention_forward.1
$region0: #{attention_forward.1}
  #allocation0 [shape = 'u32[]', space=smem, size = 0x4, offset = 0x4, fixed_abs, tag = 'smem constant byte address 0x4 - core index']
  #allocation1 [shape = 'u32[144,128]{1,0:T(1,128)}', space=vmem, size = 0x12000, scoped, tag = 'internal scratch']
  %s0 = inlined_call_operand.vmem [shape: f32[8,64,64], index: 0, kind: input, shape index: {}]
  %s1 = inlined_call_operand.vmem [shape: f32[1,64], index: 1, kind: input, shape index: {}]
  %s2 = inlined_call_operand.vmem [shape: f32[1,64], index: 2, kind: input, shape index: {}]
  %s3 = inlined_call_operand.vmem [shape: bf16[64,192], index: 3, kind: input, shape index: {}]
  %s4 = inlined_call_operand.vmem [shape: bf16[64,64], index: 4, kind: input, shape index: {}]
  %s5 = inlined_call_operand.vmem [shape: f32[1,64], index: 5, kind: input, shape index: {}]
  %s6 = inlined_call_operand.vmem [shape: f32[64,64], index: 6, kind: input, shape index: {}]
  %s7 = inlined_call_operand.vmem [shape: f32[8,64,64], index: 7, kind: output, shape index: {}]
  %s8 = sld [smem:[#allocation0]]
  $region61: #{attention_forward.1} parent=0
    _
  %s10 = ssub.s32 1, %s8
  %s11 = scalar_select 0, %s10, %s8
  loop: start=0, step=1, limit=4
  $region2: #{attention_forward.1} parent=0 // loop_pre_header
    _
  $region3: #{attention_forward.1} parent=0 // loop_header
    %s13 = sphi 0, %s17
    %p14 = scmp.ge.s32.totalorder %s13, 4
    %s23 = sphi 0, %s25
    %s26 = sphi 0, %s23
    %s27 = sphi 0, %s26
    %s43 = sphi 0, %s27
    %s47 = sphi 0, %s47
    %s49 = sphi 0, %s47
    %s50 = sphi 0, %s49
    %s64 = sphi 0, %s50
    %s68 = sphi 0, %s68
    %s70 = sphi 0, %s68
    %s71 = sphi 0, %s70
    %s85 = sphi 0, %s71
    %s89 = sphi 0, %s89
    %s91 = sphi 0, %s89
    %s92 = sphi 0, %s91
    %s106 = sphi 0, %s92
    %s110 = sphi 0, %s110
    %s112 = sphi 0, %s110
    %s113 = sphi 0, %s112
    %s127 = sphi 0, %s113
    %s131 = sphi 0, %s131
    %s133 = sphi 0, %s131
    %s134 = sphi 0, %s133
    %s148 = sphi 0, %s134
    %s152 = sphi 0, %s152
    %s154 = sphi 0, %s152
    %s155 = sphi 0, %s154
    %s169 = sphi 0, %s155
    %s175 = sphi 0, %s177
    %s178 = sphi 0, %s175
    %s179 = sphi 0, %s178
    %s195 = sphi 0, %s179
  $region4: #{attention_forward.1} parent=0 // loop_header_branch
    %16 = sbr.rel (%p14) target = $region8
  $region5: #{attention_forward.1} parent=0 // loop_body
    %s18 = ssub.s32 %s13, 1
    %s19 = ssub.s32 %s13, 2
    %s20 = sadd.s32 %s13, 1
    %s21 = ssub.s32 %s13, %s20
    %p22 = scmp.eq.s32.totalorder %s21, 0
    %s24 = sadd.s32 %s23, 1
    %s25 = scalar_select %p22, %s23, %s24
    %p28 = pneg %p22
    %p29 = scmp.eq.s32.totalorder %s13, 1
    %p30 = por %p28, %p29
    %p31 = scmp.ne.s32.totalorder %s23, %s26
    %p32 = scmp.eq.s32.totalorder %s13, 0
    %p33 = por %p31, %p32
    %p34 = scmp.ne.s32.totalorder %s23, %s26
    %p35 = scmp.eq.s32.totalorder %s18, 1
    %p36 = por %p34, %p35
    %p37 = scmp.ne.s32.totalorder %s26, %s27
    %p38 = scmp.eq.s32.totalorder %s18, 0
    %p39 = por %p37, %p38
    %p40 = scmp.ne.s32.totalorder %s26, %s27
    %p41 = scmp.eq.s32.totalorder %s19, 1
    %p42 = por %p40, %p41
    %p44 = scmp.ne.s32.totalorder %s27, %s43
    %p45 = scmp.eq.s32.totalorder %s19, 0
    %p46 = por %p44, %p45
    %s48 = sadd.s32 %s47, 1
    %p51 = scmp.eq.s32.totalorder %s13, 1
    %p52 = scmp.ne.s32.totalorder %s47, %s49
    %p53 = scmp.eq.s32.totalorder %s13, 0
    %p54 = por %p52, %p53
    %p55 = scmp.ne.s32.totalorder %s47, %s49
    %p56 = scmp.eq.s32.totalorder %s18, 1
    %p57 = por %p55, %p56
    %p58 = scmp.ne.s32.totalorder %s49, %s50
    %p59 = scmp.eq.s32.totalorder %s18, 0
    %p60 = por %p58, %p59
    %p61 = scmp.ne.s32.totalorder %s49, %s50
    %p62 = scmp.eq.s32.totalorder %s19, 1
    %p63 = por %p61, %p62
    %p65 = scmp.ne.s32.totalorder %s50, %s64
    %p66 = scmp.eq.s32.totalorder %s19, 0
    %p67 = por %p65, %p66
    %s69 = sadd.s32 %s68, 1
    %p72 = scmp.eq.s32.totalorder %s13, 1
    %p73 = scmp.ne.s32.totalorder %s68, %s70
    %p74 = scmp.eq.s32.totalorder %s13, 0
    %p75 = por %p73, %p74
    %p76 = scmp.ne.s32.totalorder %s68, %s70
    %p77 = scmp.eq.s32.totalorder %s18, 1
    %p78 = por %p76, %p77
    %p79 = scmp.ne.s32.totalorder %s70, %s71
    %p80 = scmp.eq.s32.totalorder %s18, 0
    %p81 = por %p79, %p80
    %p82 = scmp.ne.s32.totalorder %s70, %s71
    %p83 = scmp.eq.s32.totalorder %s19, 1
    %p84 = por %p82, %p83
    %p86 = scmp.ne.s32.totalorder %s71, %s85
    %p87 = scmp.eq.s32.totalorder %s19, 0
    %p88 = por %p86, %p87
    %s90 = sadd.s32 %s89, 1
    %p93 = scmp.eq.s32.totalorder %s13, 1
    %p94 = scmp.ne.s32.totalorder %s89, %s91
    %p95 = scmp.eq.s32.totalorder %s13, 0
    %p96 = por %p94, %p95
    %p97 = scmp.ne.s32.totalorder %s89, %s91
    %p98 = scmp.eq.s32.totalorder %s18, 1
    %p99 = por %p97, %p98
    %p100 = scmp.ne.s32.totalorder %s91, %s92
    %p101 = scmp.eq.s32.totalorder %s18, 0
    %p102 = por %p100, %p101
    %p103 = scmp.ne.s32.totalorder %s91, %s92
    %p104 = scmp.eq.s32.totalorder %s19, 1
    %p105 = por %p103, %p104
    %p107 = scmp.ne.s32.totalorder %s92, %s106
    %p108 = scmp.eq.s32.totalorder %s19, 0
    %p109 = por %p107, %p108
    %s111 = sadd.s32 %s110, 1
    %p114 = scmp.eq.s32.totalorder %s13, 1
    %p115 = scmp.ne.s32.totalorder %s110, %s112
    %p116 = scmp.eq.s32.totalorder %s13, 0
    %p117 = por %p115, %p116
    %p118 = scmp.ne.s32.totalorder %s110, %s112
    %p119 = scmp.eq.s32.totalorder %s18, 1
    %p120 = por %p118, %p119
    %p121 = scmp.ne.s32.totalorder %s112, %s113
    %p122 = scmp.eq.s32.totalorder %s18, 0
    %p123 = por %p121, %p122
    %p124 = scmp.ne.s32.totalorder %s112, %s113
    %p125 = scmp.eq.s32.totalorder %s19, 1
    %p126 = por %p124, %p125
    %p128 = scmp.ne.s32.totalorder %s113, %s127
    %p129 = scmp.eq.s32.totalorder %s19, 0
    %p130 = por %p128, %p129
    %s132 = sadd.s32 %s131, 1
    %p135 = scmp.eq.s32.totalorder %s13, 1
    %p136 = scmp.ne.s32.totalorder %s131, %s133
    %p137 = scmp.eq.s32.totalorder %s13, 0
    %p138 = por %p136, %p137
    %p139 = scmp.ne.s32.totalorder %s131, %s133
    %p140 = scmp.eq.s32.totalorder %s18, 1
    %p141 = por %p139, %p140
    %p142 = scmp.ne.s32.totalorder %s133, %s134
    %p143 = scmp.eq.s32.totalorder %s18, 0
    %p144 = por %p142, %p143
    %p145 = scmp.ne.s32.totalorder %s133, %s134
    %p146 = scmp.eq.s32.totalorder %s19, 1
    %p147 = por %p145, %p146
    %p149 = scmp.ne.s32.totalorder %s134, %s148
    %p150 = scmp.eq.s32.totalorder %s19, 0
    %p151 = por %p149, %p150
    %s153 = sadd.s32 %s152, 1
    %p156 = scmp.eq.s32.totalorder %s13, 1
    %p157 = scmp.ne.s32.totalorder %s152, %s154
    %p158 = scmp.eq.s32.totalorder %s13, 0
    %p159 = por %p157, %p158
    %p160 = scmp.ne.s32.totalorder %s152, %s154
    %p161 = scmp.eq.s32.totalorder %s18, 1
    %p162 = por %p160, %p161
    %p163 = scmp.ne.s32.totalorder %s154, %s155
    %p164 = scmp.eq.s32.totalorder %s18, 0
    %p165 = por %p163, %p164
    %p166 = scmp.ne.s32.totalorder %s154, %s155
    %p167 = scmp.eq.s32.totalorder %s19, 1
    %p168 = por %p166, %p167
    %p170 = scmp.ne.s32.totalorder %s155, %s169
    %p171 = scmp.eq.s32.totalorder %s19, 0
    %p172 = por %p170, %p171
    %s173 = ssub.s32 %s13, %s20
    %p174 = scmp.eq.s32.totalorder %s173, 0
    %s176 = sadd.s32 %s175, 1
    %s177 = scalar_select %p174, %s175, %s176
    %p180 = pneg %p174
    %p181 = scmp.eq.s32.totalorder %s13, 1
    %p182 = por %p180, %p181
    %p183 = scmp.ne.s32.totalorder %s175, %s178
    %p184 = scmp.eq.s32.totalorder %s13, 0
    %p185 = por %p183, %p184
    %p186 = scmp.ne.s32.totalorder %s175, %s178
    %p187 = scmp.eq.s32.totalorder %s18, 1
    %p188 = por %p186, %p187
    %p189 = scmp.ne.s32.totalorder %s178, %s179
    %p190 = scmp.eq.s32.totalorder %s18, 0
    %p191 = por %p189, %p190
    %p192 = scmp.ne.s32.totalorder %s178, %s179
    %p193 = scmp.eq.s32.totalorder %s19, 1
    %p194 = por %p192, %p193
    %p196 = scmp.ne.s32.totalorder %s179, %s195
    %p197 = scmp.eq.s32.totalorder %s19, 0
    %p198 = por %p196, %p197
    %p199 = scmp.le.s32.totalorder 1, %s13
    %p200 = scmp.lt.s32.totalorder %s13, 3
    %p201 = pnand %p199, %p200
    %p202 = pneg %p201
    // Predicated region
    $region9: #{attention_forward.1} parent=5 // pred_check
      _
    $region10: #{attention_forward.1} parent=5 // pred_check_branch
      %204 = sbr.rel (%p201) target = $region12
    $region11: #{attention_forward.1} parent=5 // pred_region
      %s205 = ssub.s32 %s13, 1
      // Predicated region
      $region13: #{attention_forward.1} parent=11 // pred_check
        %p206 = pneg %p60
      $region14: #{attention_forward.1} parent=11 // pred_check_branch
        %208 = sbr.rel (%p206) target = $region16
      $region15: #{attention_forward.1} parent=11 // pred_region
        _
      $region16: #{attention_forward.1} parent=11 // pred_fallthru
        _
      // Predicated region
      $region17: #{attention_forward.1} parent=11 // pred_check
        %p209 = pneg %p81
      $region18: #{attention_forward.1} parent=11 // pred_check_branch
        %211 = sbr.rel (%p209) target = $region20
      $region19: #{attention_forward.1} parent=11 // pred_region
        _
      $region20: #{attention_forward.1} parent=11 // pred_fallthru
        _
      // Predicated region
      $region21: #{attention_forward.1} parent=11 // pred_check
        %p212 = pneg %p102
      $region22: #{attention_forward.1} parent=11 // pred_check_branch
        %214 = sbr.rel (%p212) target = $region24
      $region23: #{attention_forward.1} parent=11 // pred_region
        _
      $region24: #{attention_forward.1} parent=11 // pred_fallthru
        _
      // Predicated region
      $region25: #{attention_forward.1} parent=11 // pred_check
        %p215 = pneg %p123
      $region26: #{attention_forward.1} parent=11 // pred_check_branch
        %217 = sbr.rel (%p215) target = $region28
      $region27: #{attention_forward.1} parent=11 // pred_region
        _
      $region28: #{attention_forward.1} parent=11 // pred_fallthru
        _
      // Predicated region
      $region29: #{attention_forward.1} parent=11 // pred_check
        %p218 = pneg %p144
      $region30: #{attention_forward.1} parent=11 // pred_check_branch
        %220 = sbr.rel (%p218) target = $region32
      $region31: #{attention_forward.1} parent=11 // pred_region
        _
      $region32: #{attention_forward.1} parent=11 // pred_fallthru
        _
      // Predicated region
      $region33: #{attention_forward.1} parent=11 // pred_check
        %p221 = pneg %p165
      $region34: #{attention_forward.1} parent=11 // pred_check_branch
        %223 = sbr.rel (%p221) target = $region36
      $region35: #{attention_forward.1} parent=11 // pred_region
        _
      $region36: #{attention_forward.1} parent=11 // pred_fallthru
        _
    $region12: #{attention_forward.1} parent=5 // pred_fallthru
      _
    %p224 = scmp.lt.s32.totalorder %s13, 2
    // Predicated region
    $region37: #{attention_forward.1} parent=5 // pred_check
      %p225 = pneg %p224
    $region38: #{attention_forward.1} parent=5 // pred_check_branch
      %227 = sbr.rel (%p225) target = $region40
    $region39: #{attention_forward.1} parent=5 // pred_region
      // Predicated region
      $region41: #{attention_forward.1} parent=39 // pred_check
        %p228 = pneg %p33
      $region42: #{attention_forward.1} parent=39 // pred_check_branch
        %230 = sbr.rel (%p228) target = $region44
      $region43: #{attention_forward.1} parent=39 // pred_region
        %s231 = smul.u32 4, %s13
        %p232 = scmp.lt.s32.totalorder %s231, 7
        %s233 = scalar_select %p232, %s231, 7
        %s234 = smul.addr %s233, 8
        %s235 = smul.addr %s234, 8
        %s236 = scalar_lea.vmem %s0, %s235
        %s237 = smul.u32 4, %s13
      $region44: #{attention_forward.1} parent=39 // pred_fallthru
        _
    $region40: #{attention_forward.1} parent=5 // pred_fallthru
      _
    %p238 = scmp.le.s32.totalorder 1, %s13
    %p239 = scmp.lt.s32.totalorder %s13, 3
    %p240 = pnand %p238, %p239
    %p241 = pneg %p240
    // Predicated region
    $region45: #{attention_forward.1} parent=5 // pred_check
      _
    $region46: #{attention_forward.1} parent=5 // pred_check_branch
      %243 = sbr.rel (%p240) target = $region48
    $region47: #{attention_forward.1} parent=5 // pred_region
      %s244 = ssub.s32 %s13, 1
      %s245 = smul.u32 4, %s18
      %p246 = scmp.lt.s32.totalorder %s245, 7
      %s247 = scalar_select %p246, %s245, 7
      %s248 = smul.addr %s247, 8
      %s249 = smul.addr %s248, 8
      %s250 = scalar_lea.vmem %s0, %s249
      %p251 = pneg %p39
      %p252 = pneg %p36
      %p253 = pneg %p60
      %p254 = pneg %p57
      %p255 = pneg %p81
      %p256 = pneg %p78
      %p257 = pneg %p102
      %p258 = pneg %p99
      %p259 = pneg %p123
      %p260 = pneg %p120
      %p261 = pneg %p144
      %p262 = pneg %p141
      %p263 = pneg %p165
      %p264 = pneg %p162
      %p265 = pneg %p191
      %p266 = pneg %p188
      %s267 = smul.u32 4, %s18
      %p268 = scmp.lt.s32.totalorder %s267, 7
      %s269 = scalar_select %p268, %s267, 7
      %s270 = smul.addr %s269, 8
      %s271 = smul.addr %s270, 8
      %s272 = scalar_lea.vmem %s7, %s271
      %s273 = smul.u32 4, %s18
      %p274 = scmp.lt.s32.totalorder %s273, 7
      %s275 = scalar_select %p274, %s273, 7
      %s276 = smul.addr %s275, 8
      %s277 = smul.addr %s276, 8
      %s278 = scalar_lea.vmem %s0, %s277
      %s279 = smul.u32 4, %s18
      %s280 = smul.u32 4, %s18
      %p281 = scmp.lt.s32.totalorder %s280, 7
      %s282 = scalar_select %p281, %s280, 7
      %s283 = smul.addr %s282, 8
      %s284 = smul.addr %s283, 8
      %s285 = scalar_lea.vmem %s7, %s284
      %s286 = smul.u32 4, %s18
      %v288 = vld [vmem:[%s278] sm:$0xff]
      %v289 = vld [vmem:[%s278 + $0x8] sm:$0xff]
      %v290 = vld [vmem:[%s278 + $0x10] sm:$0xff]
      %v291 = vld [vmem:[%s278 + $0x18] sm:$0xff]
      %v292 = vld [vmem:[%s278 + $0x20] sm:$0xff]
      %v293 = vld [vmem:[%s278 + $0x28] sm:$0xff]
      %v294 = vld [vmem:[%s278 + $0x30] sm:$0xff]
      %v295 = vld [vmem:[%s278 + $0x38] sm:$0xff]
      %v296 = vld [vmem:[%s278 + $0x40] sm:$0xff]
      %v297 = vld [vmem:[%s278 + $0x48] sm:$0xff]
      %v298 = vld [vmem:[%s278 + $0x50] sm:$0xff]
      %v299 = vld [vmem:[%s278 + $0x58] sm:$0xff]
      %v300 = vld [vmem:[%s278 + $0x60] sm:$0xff]
      %v301 = vld [vmem:[%s278 + $0x68] sm:$0xff]
      %v302 = vld [vmem:[%s278 + $0x70] sm:$0xff]
      %v303 = vld [vmem:[%s278 + $0x78] sm:$0xff]
      %v304 = vld [vmem:[%s278 + $0x80] sm:$0xff]
      %v305 = vld [vmem:[%s278 + $0x88] sm:$0xff]
      %v306 = vld [vmem:[%s278 + $0x90] sm:$0xff]
      %v307 = vld [vmem:[%s278 + $0x98] sm:$0xff]
      %v308 = vld [vmem:[%s278 + $0xa0] sm:$0xff]
      %v309 = vld [vmem:[%s278 + $0xa8] sm:$0xff]
      %v310 = vld [vmem:[%s278 + $0xb0] sm:$0xff]
      %v311 = vld [vmem:[%s278 + $0xb8] sm:$0xff]
      %v312 = vld [vmem:[%s278 + $0xc0] sm:$0xff]
      %v313 = vld [vmem:[%s278 + $0xc8] sm:$0xff]
      %v314 = vld [vmem:[%s278 + $0xd0] sm:$0xff]
      %v315 = vld [vmem:[%s278 + $0xd8] sm:$0xff]
      %v316 = vld [vmem:[%s278 + $0xe0] sm:$0xff]
      %v317 = vld [vmem:[%s278 + $0xe8] sm:$0xff]
      %v318 = vld [vmem:[%s278 + $0xf0] sm:$0xff]
      %v319 = vld [vmem:[%s278 + $0xf8] sm:$0xff]
      %vm320 = vcmask 523264
      %v321 = vsel %vm320, %v288, 0.0
      %322 = vadd.xlane.f32.xlu0 %v321
      %v323 = vpop.xlane.xlu0 %322
      %v324 = vsel %vm320, %v289, 0.0
      %325 = vadd.xlane.f32.xlu0 %v324
      %v326 = vpop.xlane.xlu0 %325
      %v327 = vsel %vm320, %v290, 0.0
      %328 = vadd.xlane.f32.xlu0 %v327
      %v329 = vpop.xlane.xlu0 %328
      %v330 = vsel %vm320, %v291, 0.0
      %331 = vadd.xlane.f32.xlu0 %v330
      %v332 = vpop.xlane.xlu0 %331
      %v333 = vsel %vm320, %v292, 0.0
      %334 = vadd.xlane.f32.xlu0 %v333
      %v335 = vpop.xlane.xlu0 %334
      %v336 = vsel %vm320, %v293, 0.0
      %337 = vadd.xlane.f32.xlu0 %v336
      %v338 = vpop.xlane.xlu0 %337
      %v339 = vsel %vm320, %v294, 0.0
      %340 = vadd.xlane.f32.xlu0 %v339
      %v341 = vpop.xlane.xlu0 %340
      %v342 = vsel %vm320, %v295, 0.0
      %343 = vadd.xlane.f32.xlu0 %v342
      %v344 = vpop.xlane.xlu0 %343
      %v345 = vsel %vm320, %v296, 0.0
      %346 = vadd.xlane.f32.xlu0 %v345
      %v347 = vpop.xlane.xlu0 %346
      %v348 = vsel %vm320, %v297, 0.0
      %349 = vadd.xlane.f32.xlu0 %v348
      %v350 = vpop.xlane.xlu0 %349
      %v351 = vsel %vm320, %v298, 0.0
      %352 = vadd.xlane.f32.xlu0 %v351
      %v353 = vpop.xlane.xlu0 %352
      %v354 = vsel %vm320, %v299, 0.0
      %355 = vadd.xlane.f32.xlu0 %v354
      %v356 = vpop.xlane.xlu0 %355
      %v357 = vsel %vm320, %v300, 0.0
      %358 = vadd.xlane.f32.xlu0 %v357
      %v359 = vpop.xlane.xlu0 %358
      %v360 = vsel %vm320, %v301, 0.0
      %361 = vadd.xlane.f32.xlu0 %v360
      %v362 = vpop.xlane.xlu0 %361
      %v363 = vsel %vm320, %v302, 0.0
      %364 = vadd.xlane.f32.xlu0 %v363
      %v365 = vpop.xlane.xlu0 %364
      %v366 = vsel %vm320, %v303, 0.0
      %367 = vadd.xlane.f32.xlu0 %v366
      %v368 = vpop.xlane.xlu0 %367
      %v369 = vsel %vm320, %v304, 0.0
      %370 = vadd.xlane.f32.xlu0 %v369
      %v371 = vpop.xlane.xlu0 %370
      %v372 = vsel %vm320, %v305, 0.0
      %373 = vadd.xlane.f32.xlu0 %v372
      %v374 = vpop.xlane.xlu0 %373
      %v375 = vsel %vm320, %v306, 0.0
      %376 = vadd.xlane.f32.xlu0 %v375
      %v377 = vpop.xlane.xlu0 %376
      %v378 = vsel %vm320, %v307, 0.0
      %379 = vadd.xlane.f32.xlu0 %v378
      %v380 = vpop.xlane.xlu0 %379
      %v381 = vsel %vm320, %v308, 0.0
      %382 = vadd.xlane.f32.xlu0 %v381
      %v383 = vpop.xlane.xlu0 %382
      %v384 = vsel %vm320, %v309, 0.0
      %385 = vadd.xlane.f32.xlu0 %v384
      %v386 = vpop.xlane.xlu0 %385
      %v387 = vsel %vm320, %v310, 0.0
      %388 = vadd.xlane.f32.xlu0 %v387
      %v389 = vpop.xlane.xlu0 %388
      %v390 = vsel %vm320, %v311, 0.0
      %391 = vadd.xlane.f32.xlu0 %v390
      %v392 = vpop.xlane.xlu0 %391
      %v393 = vsel %vm320, %v312, 0.0
      %394 = vadd.xlane.f32.xlu0 %v393
      %v395 = vpop.xlane.xlu0 %394
      %v396 = vsel %vm320, %v313, 0.0
      %397 = vadd.xlane.f32.xlu0 %v396
      %v398 = vpop.xlane.xlu0 %397
      %v399 = vsel %vm320, %v314, 0.0
      %400 = vadd.xlane.f32.xlu0 %v399
      %v401 = vpop.xlane.xlu0 %400
      %v402 = vsel %vm320, %v315, 0.0
      %403 = vadd.xlane.f32.xlu0 %v402
      %v404 = vpop.xlane.xlu0 %403
      %v405 = vsel %vm320, %v316, 0.0
      %406 = vadd.xlane.f32.xlu0 %v405
      %v407 = vpop.xlane.xlu0 %406
      %v408 = vsel %vm320, %v317, 0.0
      %409 = vadd.xlane.f32.xlu0 %v408
      %v410 = vpop.xlane.xlu0 %409
      %v411 = vsel %vm320, %v318, 0.0
      %412 = vadd.xlane.f32.xlu0 %v411
      %v413 = vpop.xlane.xlu0 %412
      %v414 = vsel %vm320, %v319, 0.0
      %415 = vadd.xlane.f32.xlu0 %v414
      %v416 = vpop.xlane.xlu0 %415
      %v417 = vrcp.pop 64.0
      %v418 = vmul.f32 %v323, %v417
      %v419 = vmul.f32 %v326, %v417
      %v420 = vmul.f32 %v329, %v417
      %v421 = vmul.f32 %v332, %v417
      %v422 = vmul.f32 %v335, %v417
      %v423 = vmul.f32 %v338, %v417
      %v424 = vmul.f32 %v341, %v417
      %v425 = vmul.f32 %v344, %v417
      %v426 = vmul.f32 %v347, %v417
      %v427 = vmul.f32 %v350, %v417
      %v428 = vmul.f32 %v353, %v417
      %v429 = vmul.f32 %v356, %v417
      %v430 = vmul.f32 %v359, %v417
      %v431 = vmul.f32 %v362, %v417
      %v432 = vmul.f32 %v365, %v417
      %v433 = vmul.f32 %v368, %v417
      %v434 = vmul.f32 %v371, %v417
      %v435 = vmul.f32 %v374, %v417
      %v436 = vmul.f32 %v377, %v417
      %v437 = vmul.f32 %v380, %v417
      %v438 = vmul.f32 %v383, %v417
      %v439 = vmul.f32 %v386, %v417
      %v440 = vmul.f32 %v389, %v417
      %v441 = vmul.f32 %v392, %v417
      %v442 = vmul.f32 %v395, %v417
      %v443 = vmul.f32 %v398, %v417
      %v444 = vmul.f32 %v401, %v417
      %v445 = vmul.f32 %v404, %v417
      %v446 = vmul.f32 %v407, %v417
      %v447 = vmul.f32 %v410, %v417
      %v448 = vmul.f32 %v413, %v417
      %v449 = vmul.f32 %v416, %v417
      %v450 = vsub.f32 %v288, %v418
      %v451 = vsub.f32 %v289, %v419
      %v452 = vsub.f32 %v290, %v420
      %v453 = vsub.f32 %v291, %v421
      %v454 = vsub.f32 %v292, %v422
      %v455 = vsub.f32 %v293, %v423
      %v456 = vsub.f32 %v294, %v424
      %v457 = vsub.f32 %v295, %v425
      %v458 = vsub.f32 %v296, %v426
      %v459 = vsub.f32 %v297, %v427
      %v460 = vsub.f32 %v298, %v428
      %v461 = vsub.f32 %v299, %v429
      %v462 = vsub.f32 %v300, %v430
      %v463 = vsub.f32 %v301, %v431
      %v464 = vsub.f32 %v302, %v432
      %v465 = vsub.f32 %v303, %v433
      %v466 = vsub.f32 %v304, %v434
      %v467 = vsub.f32 %v305, %v435
      %v468 = vsub.f32 %v306, %v436
      %v469 = vsub.f32 %v307, %v437
      %v470 = vsub.f32 %v308, %v438
      %v471 = vsub.f32 %v309, %v439
      %v472 = vsub.f32 %v310, %v440
      %v473 = vsub.f32 %v311, %v441
      %v474 = vsub.f32 %v312, %v442
      %v475 = vsub.f32 %v313, %v443
      %v476 = vsub.f32 %v314, %v444
      %v477 = vsub.f32 %v315, %v445
      %v478 = vsub.f32 %v316, %v446
      %v479 = vsub.f32 %v317, %v447
      %v480 = vsub.f32 %v318, %v448
      %v481 = vsub.f32 %v319, %v449
      %v482 = vmul.f32 %v450, %v450
      %v483 = vmul.f32 %v451, %v451
      %v484 = vmul.f32 %v452, %v452
      %v485 = vmul.f32 %v453, %v453
      %v486 = vmul.f32 %v454, %v454
      %v487 = vmul.f32 %v455, %v455
      %v488 = vmul.f32 %v456, %v456
      %v489 = vmul.f32 %v457, %v457
      %v490 = vmul.f32 %v458, %v458
      %v491 = vmul.f32 %v459, %v459
      %v492 = vmul.f32 %v460, %v460
      %v493 = vmul.f32 %v461, %v461
      %v494 = vmul.f32 %v462, %v462
      %v495 = vmul.f32 %v463, %v463
      %v496 = vmul.f32 %v464, %v464
      %v497 = vmul.f32 %v465, %v465
      %v498 = vmul.f32 %v466, %v466
      %v499 = vmul.f32 %v467, %v467
      %v500 = vmul.f32 %v468, %v468
      %v501 = vmul.f32 %v469, %v469
      %v502 = vmul.f32 %v470, %v470
      %v503 = vmul.f32 %v471, %v471
      %v504 = vmul.f32 %v472, %v472
      %v505 = vmul.f32 %v473, %v473
      %v506 = vmul.f32 %v474, %v474
      %v507 = vmul.f32 %v475, %v475
      %v508 = vmul.f32 %v476, %v476
      %v509 = vmul.f32 %v477, %v477
      %v510 = vmul.f32 %v478, %v478
      %v511 = vmul.f32 %v479, %v479
      %v512 = vmul.f32 %v480, %v480
      %v513 = vmul.f32 %v481, %v481
      %v514 = vsel %vm320, %v482, 0.0
      %515 = vadd.xlane.f32.xlu0 %v514
      %v516 = vpop.xlane.xlu0 %515
      %v517 = vsel %vm320, %v483, 0.0
      %518 = vadd.xlane.f32.xlu0 %v517
      %v519 = vpop.xlane.xlu0 %518
      %v520 = vsel %vm320, %v484, 0.0
      %521 = vadd.xlane.f32.xlu0 %v520
      %v522 = vpop.xlane.xlu0 %521
      %v523 = vsel %vm320, %v485, 0.0
      %524 = vadd.xlane.f32.xlu0 %v523
      %v525 = vpop.xlane.xlu0 %524
      %v526 = vsel %vm320, %v486, 0.0
      %527 = vadd.xlane.f32.xlu0 %v526
      %v528 = vpop.xlane.xlu0 %527
      %v529 = vsel %vm320, %v487, 0.0
      %530 = vadd.xlane.f32.xlu0 %v529
      %v531 = vpop.xlane.xlu0 %530
      %v532 = vsel %vm320, %v488, 0.0
      %533 = vadd.xlane.f32.xlu0 %v532
      %v534 = vpop.xlane.xlu0 %533
      %v535 = vsel %vm320, %v489, 0.0
      %536 = vadd.xlane.f32.xlu0 %v535
      %v537 = vpop.xlane.xlu0 %536
      %v538 = vsel %vm320, %v490, 0.0
      %539 = vadd.xlane.f32.xlu0 %v538
      %v540 = vpop.xlane.xlu0 %539
      %v541 = vsel %vm320, %v491, 0.0
      %542 = vadd.xlane.f32.xlu0 %v541
      %v543 = vpop.xlane.xlu0 %542
      %v544 = vsel %vm320, %v492, 0.0
      %545 = vadd.xlane.f32.xlu0 %v544
      %v546 = vpop.xlane.xlu0 %545
      %v547 = vsel %vm320, %v493, 0.0
      %548 = vadd.xlane.f32.xlu0 %v547
      %v549 = vpop.xlane.xlu0 %548
      %v550 = vsel %vm320, %v494, 0.0
      %551 = vadd.xlane.f32.xlu0 %v550
      %v552 = vpop.xlane.xlu0 %551
      %v553 = vsel %vm320, %v495, 0.0
      %554 = vadd.xlane.f32.xlu0 %v553
      %v555 = vpop.xlane.xlu0 %554
      %v556 = vsel %vm320, %v496, 0.0
      %557 = vadd.xlane.f32.xlu0 %v556
      %v558 = vpop.xlane.xlu0 %557
      %v559 = vsel %vm320, %v497, 0.0
      %560 = vadd.xlane.f32.xlu0 %v559
      %v561 = vpop.xlane.xlu0 %560
      %v562 = vsel %vm320, %v498, 0.0
      %563 = vadd.xlane.f32.xlu0 %v562
      %v564 = vpop.xlane.xlu0 %563
      %v565 = vsel %vm320, %v499, 0.0
      %566 = vadd.xlane.f32.xlu0 %v565
      %v567 = vpop.xlane.xlu0 %566
      %v568 = vsel %vm320, %v500, 0.0
      %569 = vadd.xlane.f32.xlu0 %v568
      %v570 = vpop.xlane.xlu0 %569
      %v571 = vsel %vm320, %v501, 0.0
      %572 = vadd.xlane.f32.xlu0 %v571
      %v573 = vpop.xlane.xlu0 %572
      %v574 = vsel %vm320, %v502, 0.0
      %575 = vadd.xlane.f32.xlu0 %v574
      %v576 = vpop.xlane.xlu0 %575
      %v577 = vsel %vm320, %v503, 0.0
      %578 = vadd.xlane.f32.xlu0 %v577
      %v579 = vpop.xlane.xlu0 %578
      %v580 = vsel %vm320, %v504, 0.0
      %581 = vadd.xlane.f32.xlu0 %v580
      %v582 = vpop.xlane.xlu0 %581
      %v583 = vsel %vm320, %v505, 0.0
      %584 = vadd.xlane.f32.xlu0 %v583
      %v585 = vpop.xlane.xlu0 %584
      %v586 = vsel %vm320, %v506, 0.0
      %587 = vadd.xlane.f32.xlu0 %v586
      %v588 = vpop.xlane.xlu0 %587
      %v589 = vsel %vm320, %v507, 0.0
      %590 = vadd.xlane.f32.xlu0 %v589
      %v591 = vpop.xlane.xlu0 %590
      %v592 = vsel %vm320, %v508, 0.0
      %593 = vadd.xlane.f32.xlu0 %v592
      %v594 = vpop.xlane.xlu0 %593
      %v595 = vsel %vm320, %v509, 0.0
      %596 = vadd.xlane.f32.xlu0 %v595
      %v597 = vpop.xlane.xlu0 %596
      %v598 = vsel %vm320, %v510, 0.0
      %599 = vadd.xlane.f32.xlu0 %v598
      %v600 = vpop.xlane.xlu0 %599
      %v601 = vsel %vm320, %v511, 0.0
      %602 = vadd.xlane.f32.xlu0 %v601
      %v603 = vpop.xlane.xlu0 %602
      %v604 = vsel %vm320, %v512, 0.0
      %605 = vadd.xlane.f32.xlu0 %v604
      %v606 = vpop.xlane.xlu0 %605
      %v607 = vsel %vm320, %v513, 0.0
      %608 = vadd.xlane.f32.xlu0 %v607
      %v609 = vpop.xlane.xlu0 %608
      %v610 = vmul.f32 %v516, %v417
      %v611 = vmul.f32 %v519, %v417
      %v612 = vmul.f32 %v522, %v417
      %v613 = vmul.f32 %v525, %v417
      %v614 = vmul.f32 %v528, %v417
      %v615 = vmul.f32 %v531, %v417
      %v616 = vmul.f32 %v534, %v417
      %v617 = vmul.f32 %v537, %v417
      %v618 = vmul.f32 %v540, %v417
      %v619 = vmul.f32 %v543, %v417
      %v620 = vmul.f32 %v546, %v417
      %v621 = vmul.f32 %v549, %v417
      %v622 = vmul.f32 %v552, %v417
      %v623 = vmul.f32 %v555, %v417
      %v624 = vmul.f32 %v558, %v417
      %v625 = vmul.f32 %v561, %v417
      %v626 = vmul.f32 %v564, %v417
      %v627 = vmul.f32 %v567, %v417
      %v628 = vmul.f32 %v570, %v417
      %v629 = vmul.f32 %v573, %v417
      %v630 = vmul.f32 %v576, %v417
      %v631 = vmul.f32 %v579, %v417
      %v632 = vmul.f32 %v582, %v417
      %v633 = vmul.f32 %v585, %v417
      %v634 = vmul.f32 %v588, %v417
      %v635 = vmul.f32 %v591, %v417
      %v636 = vmul.f32 %v594, %v417
      %v637 = vmul.f32 %v597, %v417
      %v638 = vmul.f32 %v600, %v417
      %v639 = vmul.f32 %v603, %v417
      %v640 = vmul.f32 %v606, %v417
      %v641 = vmul.f32 %v609, %v417
      %v642 = vadd.f32 %v610, 1e-05
      %v643 = vadd.f32 %v611, 1e-05
      %v644 = vadd.f32 %v612, 1e-05
      %v645 = vadd.f32 %v613, 1e-05
      %v646 = vadd.f32 %v614, 1e-05
      %v647 = vadd.f32 %v615, 1e-05
      %v648 = vadd.f32 %v616, 1e-05
      %v649 = vadd.f32 %v617, 1e-05
      %v650 = vadd.f32 %v618, 1e-05
      %v651 = vadd.f32 %v619, 1e-05
      %v652 = vadd.f32 %v620, 1e-05
      %v653 = vadd.f32 %v621, 1e-05
      %v654 = vadd.f32 %v622, 1e-05
      %v655 = vadd.f32 %v623, 1e-05
      %v656 = vadd.f32 %v624, 1e-05
      %v657 = vadd.f32 %v625, 1e-05
      %v658 = vadd.f32 %v626, 1e-05
      %v659 = vadd.f32 %v627, 1e-05
      %v660 = vadd.f32 %v628, 1e-05
      %v661 = vadd.f32 %v629, 1e-05
      %v662 = vadd.f32 %v630, 1e-05
      %v663 = vadd.f32 %v631, 1e-05
      %v664 = vadd.f32 %v632, 1e-05
      %v665 = vadd.f32 %v633, 1e-05
      %v666 = vadd.f32 %v634, 1e-05
      %v667 = vadd.f32 %v635, 1e-05
      %v668 = vadd.f32 %v636, 1e-05
      %v669 = vadd.f32 %v637, 1e-05
      %v670 = vadd.f32 %v638, 1e-05
      %v671 = vadd.f32 %v639, 1e-05
      %v672 = vadd.f32 %v640, 1e-05
      %v673 = vadd.f32 %v641, 1e-05
      %v674 = vrsqrt.pop %v642
      %v675 = vrsqrt.pop %v643
      %v676 = vrsqrt.pop %v644
      %v677 = vrsqrt.pop %v645
      %v678 = vrsqrt.pop %v646
      %v679 = vrsqrt.pop %v647
      %v680 = vrsqrt.pop %v648
      %v681 = vrsqrt.pop %v649
      %v682 = vrsqrt.pop %v650
      %v683 = vrsqrt.pop %v651
      %v684 = vrsqrt.pop %v652
      %v685 = vrsqrt.pop %v653
      %v686 = vrsqrt.pop %v654
      %v687 = vrsqrt.pop %v655
      %v688 = vrsqrt.pop %v656
      %v689 = vrsqrt.pop %v657
      %v690 = vrsqrt.pop %v658
      %v691 = vrsqrt.pop %v659
      %v692 = vrsqrt.pop %v660
      %v693 = vrsqrt.pop %v661
      %v694 = vrsqrt.pop %v662
      %v695 = vrsqrt.pop %v663
      %v696 = vrsqrt.pop %v664
      %v697 = vrsqrt.pop %v665
      %v698 = vrsqrt.pop %v666
      %v699 = vrsqrt.pop %v667
      %v700 = vrsqrt.pop %v668
      %v701 = vrsqrt.pop %v669
      %v702 = vrsqrt.pop %v670
      %v703 = vrsqrt.pop %v671
      %v704 = vrsqrt.pop %v672
      %v705 = vrsqrt.pop %v673
      %v706 = vmul.f32 %v450, %v674
      %v707 = vmul.f32 %v451, %v675
      %v708 = vmul.f32 %v452, %v676
      %v709 = vmul.f32 %v453, %v677
      %v710 = vmul.f32 %v454, %v678
      %v711 = vmul.f32 %v455, %v679
      %v712 = vmul.f32 %v456, %v680
      %v713 = vmul.f32 %v457, %v681
      %v714 = vmul.f32 %v458, %v682
      %v715 = vmul.f32 %v459, %v683
      %v716 = vmul.f32 %v460, %v684
      %v717 = vmul.f32 %v461, %v685
      %v718 = vmul.f32 %v462, %v686
      %v719 = vmul.f32 %v463, %v687
      %v720 = vmul.f32 %v464, %v688
      %v721 = vmul.f32 %v465, %v689
      %v722 = vmul.f32 %v466, %v690
      %v723 = vmul.f32 %v467, %v691
      %v724 = vmul.f32 %v468, %v692
      %v725 = vmul.f32 %v469, %v693
      %v726 = vmul.f32 %v470, %v694
      %v727 = vmul.f32 %v471, %v695
      %v728 = vmul.f32 %v472, %v696
      %v729 = vmul.f32 %v473, %v697
      %v730 = vmul.f32 %v474, %v698
      %v731 = vmul.f32 %v475, %v699
      %v732 = vmul.f32 %v476, %v700
      %v733 = vmul.f32 %v477, %v701
      %v734 = vmul.f32 %v478, %v702
      %v735 = vmul.f32 %v479, %v703
      %v736 = vmul.f32 %v480, %v704
      %v737 = vmul.f32 %v481, %v705
      %v738 = vld [vmem:[%s1] sm:$0x1]
      %v740 = vlaneseq
      %v741 = vshrl.u32 %v740, 7
      %v742 = vsub.s32 0, %v741
      %v743 = vrot.slane %v738, %v742
      %v745 = vmul.f32 %v706, %v743
      %v746 = vmul.f32 %v707, %v743
      %v747 = vmul.f32 %v708, %v743
      %v748 = vmul.f32 %v709, %v743
      %v749 = vmul.f32 %v710, %v743
      %v750 = vmul.f32 %v711, %v743
      %v751 = vmul.f32 %v712, %v743
      %v752 = vmul.f32 %v713, %v743
      %v753 = vmul.f32 %v714, %v743
      %v754 = vmul.f32 %v715, %v743
      %v755 = vmul.f32 %v716, %v743
      %v756 = vmul.f32 %v717, %v743
      %v757 = vmul.f32 %v718, %v743
      %v758 = vmul.f32 %v719, %v743
      %v759 = vmul.f32 %v720, %v743
      %v760 = vmul.f32 %v721, %v743
      %v761 = vmul.f32 %v722, %v743
      %v762 = vmul.f32 %v723, %v743
      %v763 = vmul.f32 %v724, %v743
      %v764 = vmul.f32 %v725, %v743
      %v765 = vmul.f32 %v726, %v743
      %v766 = vmul.f32 %v727, %v743
      %v767 = vmul.f32 %v728, %v743
      %v768 = vmul.f32 %v729, %v743
      %v769 = vmul.f32 %v730, %v743
      %v770 = vmul.f32 %v731, %v743
      %v771 = vmul.f32 %v732, %v743
      %v772 = vmul.f32 %v733, %v743
      %v773 = vmul.f32 %v734, %v743
      %v774 = vmul.f32 %v735, %v743
      %v775 = vmul.f32 %v736, %v743
      %v776 = vmul.f32 %v737, %v743
      %v777 = vld [vmem:[%s2] sm:$0x1]
      %v779 = vlaneseq
      %v780 = vshrl.u32 %v779, 7
      %v781 = vsub.s32 0, %v780
      %v782 = vrot.slane %v777, %v781
      %v784 = vadd.f32 %v745, %v782
      %v785 = vadd.f32 %v746, %v782
      %v786 = vadd.f32 %v747, %v782
      %v787 = vadd.f32 %v748, %v782
      %v788 = vadd.f32 %v749, %v782
      %v789 = vadd.f32 %v750, %v782
      %v790 = vadd.f32 %v751, %v782
      %v791 = vadd.f32 %v752, %v782
      %v792 = vadd.f32 %v753, %v782
      %v793 = vadd.f32 %v754, %v782
      %v794 = vadd.f32 %v755, %v782
      %v795 = vadd.f32 %v756, %v782
      %v796 = vadd.f32 %v757, %v782
      %v797 = vadd.f32 %v758, %v782
      %v798 = vadd.f32 %v759, %v782
      %v799 = vadd.f32 %v760, %v782
      %v800 = vadd.f32 %v761, %v782
      %v801 = vadd.f32 %v762, %v782
      %v802 = vadd.f32 %v763, %v782
      %v803 = vadd.f32 %v764, %v782
      %v804 = vadd.f32 %v765, %v782
      %v805 = vadd.f32 %v766, %v782
      %v806 = vadd.f32 %v767, %v782
      %v807 = vadd.f32 %v768, %v782
      %v808 = vadd.f32 %v769, %v782
      %v809 = vadd.f32 %v770, %v782
      %v810 = vadd.f32 %v771, %v782
      %v811 = vadd.f32 %v772, %v782
      %v812 = vadd.f32 %v773, %v782
      %v813 = vadd.f32 %v774, %v782
      %v814 = vadd.f32 %v775, %v782
      %v815 = vadd.f32 %v776, %v782
      %v816 = vpack.c.bf16 %v785, %v784
      %v817 = vpack.c.bf16 %v787, %v786
      %v818 = vpack.c.bf16 %v789, %v788
      %v819 = vpack.c.bf16 %v791, %v790
      %v820 = vpack.c.bf16 %v793, %v792
      %v821 = vpack.c.bf16 %v795, %v794
      %v822 = vpack.c.bf16 %v797, %v796
      %v823 = vpack.c.bf16 %v799, %v798
      %v824 = vpack.c.bf16 %v801, %v800
      %v825 = vpack.c.bf16 %v803, %v802
      %v826 = vpack.c.bf16 %v805, %v804
      %v827 = vpack.c.bf16 %v807, %v806
      %v828 = vpack.c.bf16 %v809, %v808
      %v829 = vpack.c.bf16 %v811, %v810
      %v830 = vpack.c.bf16 %v813, %v812
      %v831 = vpack.c.bf16 %v815, %v814
      %v832 = vld [vmem:[%s3] sm:$0xff]
      %v833 = vld [vmem:[%s3 + $0x8] sm:$0xff]
      %v834 = vld [vmem:[%s3 + $0x10] sm:$0xff]
      %v835 = vld [vmem:[%s3 + $0x18] sm:$0xff]
      %v836 = vld [vmem:[%s3 + $0x20] sm:$0xff]
      %v837 = vld [vmem:[%s3 + $0x28] sm:$0xff]
      %v838 = vld [vmem:[%s3 + $0x30] sm:$0xff]
      %v839 = vld [vmem:[%s3 + $0x38] sm:$0xff]
      %v848 = vunpack.c.l.b16 %v832
      %v849 = vunpack.c.h.b16 %v832
      %v850 = vunpack.c.l.b16 %v833
      %v851 = vunpack.c.h.b16 %v833
      %v852 = vunpack.c.l.b16 %v834
      %v853 = vunpack.c.h.b16 %v834
      %v854 = vunpack.c.l.b16 %v835
      %v855 = vunpack.c.h.b16 %v835
      %v856 = vunpack.c.l.b16 %v836
      %v857 = vunpack.c.h.b16 %v836
      %v858 = vunpack.c.l.b16 %v837
      %v859 = vunpack.c.h.b16 %v837
      %v860 = vunpack.c.l.b16 %v838
      %v861 = vunpack.c.h.b16 %v838
      %v862 = vunpack.c.l.b16 %v839
      %v863 = vunpack.c.h.b16 %v839
      %v864 = vpack.c.b16 %v850, %v848
      %v865 = vpack.c.b16 %v851, %v849
      %v866 = vpack.c.b16 %v854, %v852
      %v867 = vpack.c.b16 %v855, %v853
      %v868 = vpack.c.b16 %v858, %v856
      %v869 = vpack.c.b16 %v859, %v857
      %v870 = vpack.c.b16 %v862, %v860
      %v871 = vpack.c.b16 %v863, %v861
      %v881 = vsel %vm320, %v816, 0
      %v884 = vsel %vm320, %v817, 0
      %v887 = vsel %vm320, %v818, 0
      %v890 = vsel %vm320, %v819, 0
      %v893 = vsel %vm320, %v820, 0
      %v896 = vsel %vm320, %v821, 0
      %v899 = vsel %vm320, %v822, 0
      %v902 = vsel %vm320, %v823, 0
      %v905 = vsel %vm320, %v824, 0
      %v908 = vsel %vm320, %v825, 0
      %v911 = vsel %vm320, %v826, 0
      %v914 = vsel %vm320, %v827, 0
      %v917 = vsel %vm320, %v828, 0
      %v920 = vsel %vm320, %v829, 0
      %v923 = vsel %vm320, %v830, 0
      %v926 = vsel %vm320, %v831, 0
      %928 = vmatprep.subr.bf16.mxu0 %v865
      %929 = vmatpush1.bf16.msra.mxu0 %v864
      %930 = vmatprep.subr.bf16.mxu0 %v867
      %931 = vmatpush1.bf16.msra.mxu0 %v866
      %932 = vmatprep.subr.bf16.mxu0 %v869
      %933 = vmatpush1.bf16.msra.mxu0 %v868
      %934 = vmatprep.subr.bf16.mxu0 %v871
      %935 = vmatpush1.bf16.msra.mxu0 %v870
      %936 = vmatprep.subr.bf16.mxu0 0
      %937 = vmatpush1.bf16.msra.mxu0 0
      %938 = vmatprep.subr.bf16.mxu0 0
      %939 = vmatpush1.bf16.msra.mxu0 0
      %940 = vmatprep.subr.bf16.mxu0 0
      %941 = vmatpush1.bf16.msra.mxu0 0
      %942 = vmatprep.subr.bf16.mxu0 0
      %943 = vmatpush1.bf16.msra.mxu0 0
      %944 = vmatprep.subr.bf16.mxu0 0
      %945 = vmatpush1.bf16.msra.mxu0 0
      %946 = vmatprep.subr.bf16.mxu0 0
      %947 = vmatpush1.bf16.msra.mxu0 0
      %948 = vmatprep.subr.bf16.mxu0 0
      %949 = vmatpush1.bf16.msra.mxu0 0
      %950 = vmatprep.subr.bf16.mxu0 0
      %951 = vmatpush1.bf16.msra.mxu0 0
      %952 = vmatprep.subr.bf16.mxu0 0
      %953 = vmatpush1.bf16.msra.mxu0 0
      %954 = vmatprep.subr.bf16.mxu0 0
      %955 = vmatpush1.bf16.msra.mxu0 0
      %956 = vmatprep.subr.bf16.mxu0 0
      %957 = vmatpush1.bf16.msra.mxu0 0
      %958 = vmatprep.subr.bf16.mxu0 0
      %959 = vmatpush1.bf16.msra.mxu0 0
      %960 = vmatprep.mubr.bf16.mxu0 0
      %961 = vmatmul.mubr.bf16.gmra.mrb[0].mxu0 %v881
      %v962 = vpop.f32.mrb[0].mxu0
      %v963 = vadd.f32 0.0, %v962
      %v964 = vpop.f32.mrb[0].mxu0
      %v965 = vadd.f32 0.0, %v964
      %v966 = vpop.f32.mrb[0].mxu0
      %v967 = vadd.f32 0.0, %v966
      %v968 = vpop.f32.mrb[0].mxu0
      %v969 = vadd.f32 0.0, %v968
      %970 = vmatprep.mubr.bf16.mxu0 0
      %971 = vmatmul.mubr.bf16.gmra.mrb[0].mxu0 %v884
      %v972 = vpop.f32.mrb[0].mxu0
      %v973 = vadd.f32 0.0, %v972
      %v974 = vpop.f32.mrb[0].mxu0
      %v975 = vadd.f32 0.0, %v974
      %v976 = vpop.f32.mrb[0].mxu0
      %v977 = vadd.f32 0.0, %v976
      %v978 = vpop.f32.mrb[0].mxu0
      %v979 = vadd.f32 0.0, %v978
      %980 = vmatprep.mubr.bf16.mxu0 0
      %981 = vmatmul.mubr.bf16.gmra.mrb[0].mxu0 %v887
      %v982 = vpop.f32.mrb[0].mxu0
      %v983 = vadd.f32 0.0, %v982
      %v984 = vpop.f32.mrb[0].mxu0
      %v985 = vadd.f32 0.0, %v984
      %v986 = vpop.f32.mrb[0].mxu0
      %v987 = vadd.f32 0.0, %v986
      %v988 = vpop.f32.mrb[0].mxu0
      %v989 = vadd.f32 0.0, %v988
      %990 = vmatprep.mubr.bf16.mxu0 0
      %991 = vmatmul.mubr.bf16.gmra.mrb[0].mxu0 %v890
      %v992 = vpop.f32.mrb[0].mxu0
      %v993 = vadd.f32 0.0, %v992
      %v994 = vpop.f32.mrb[0].mxu0
      %v995 = vadd.f32 0.0, %v994
      %v996 = vpop.f32.mrb[0].mxu0
      %v997 = vadd.f32 0.0, %v996
      %v998 = vpop.f32.mrb[0].mxu0
      %v999 = vadd.f32 0.0, %v998
      %1000 = vmatprep.mubr.bf16.mxu0 0
      %1001 = vmatmul.mubr.bf16.gmra.mrb[0].mxu0 %v893
      %v1002 = vpop.f32.mrb[0].mxu0
      %v1003 = vadd.f32 0.0, %v1002
      %v1004 = vpop.f32.mrb[0].mxu0
      %v1005 = vadd.f32 0.0, %v1004
      %v1006 = vpop.f32.mrb[0].mxu0
      %v1007 = vadd.f32 0.0, %v1006
      %v1008 = vpop.f32.mrb[0].mxu0
      %v1009 = vadd.f32 0.0, %v1008
      %1010 = vmatprep.mubr.bf16.mxu0 0
      %1011 = vmatmul.mubr.bf16.gmra.mrb[0].mxu0 %v896
      %v1012 = vpop.f32.mrb[0].mxu0
      %v1013 = vadd.f32 0.0, %v1012
      %v1014 = vpop.f32.mrb[0].mxu0
      %v1015 = vadd.f32 0.0, %v1014
      %v1016 = vpop.f32.mrb[0].mxu0
      %v1017 = vadd.f32 0.0, %v1016
      %v1018 = vpop.f32.mrb[0].mxu0
      %v1019 = vadd.f32 0.0, %v1018
      %1020 = vmatprep.mubr.bf16.mxu0 0
      %1021 = vmatmul.mubr.bf16.gmra.mrb[0].mxu0 %v899
      %v1022 = vpop.f32.mrb[0].mxu0
      %v1023 = vadd.f32 0.0, %v1022
      %v1024 = vpop.f32.mrb[0].mxu0
      %v1025 = vadd.f32 0.0, %v1024
      %v1026 = vpop.f32.mrb[0].mxu0
      %v1027 = vadd.f32 0.0, %v1026
      %v1028 = vpop.f32.mrb[0].mxu0
      %v1029 = vadd.f32 0.0, %v1028
      %1030 = vmatprep.mubr.bf16.mxu0 0
      %1031 = vmatmul.mubr.bf16.gmra.mrb[0].mxu0 %v902
      %v1032 = vpop.f32.mrb[0].mxu0
      %v1033 = vadd.f32 0.0, %v1032
      %v1034 = vpop.f32.mrb[0].mxu0
      %v1035 = vadd.f32 0.0, %v1034
      %v1036 = vpop.f32.mrb[0].mxu0
      %v1037 = vadd.f32 0.0, %v1036
      %v1038 = vpop.f32.mrb[0].mxu0
      %v1039 = vadd.f32 0.0, %v1038
      %1040 = vmatprep.mubr.bf16.mxu0 0
      %1041 = vmatmul.mubr.bf16.gmra.mrb[0].mxu0 %v905
      %v1042 = vpop.f32.mrb[0].mxu0
      %v1043 = vadd.f32 0.0, %v1042
      %v1044 = vpop.f32.mrb[0].mxu0
      %v1045 = vadd.f32 0.0, %v1044
      %v1046 = vpop.f32.mrb[0].mxu0
      %v1047 = vadd.f32 0.0, %v1046
      %v1048 = vpop.f32.mrb[0].mxu0
      %v1049 = vadd.f32 0.0, %v1048
      %1050 = vmatprep.mubr.bf16.mxu0 0
      %1051 = vmatmul.mubr.bf16.gmra.mrb[0].mxu0 %v908
      %v1052 = vpop.f32.mrb[0].mxu0
      %v1053 = vadd.f32 0.0, %v1052
      %v1054 = vpop.f32.mrb[0].mxu0
      %v1055 = vadd.f32 0.0, %v1054
      %v1056 = vpop.f32.mrb[0].mxu0
      %v1057 = vadd.f32 0.0, %v1056
      %v1058 = vpop.f32.mrb[0].mxu0
      %v1059 = vadd.f32 0.0, %v1058
      %1060 = vmatprep.mubr.bf16.mxu0 0
      %1061 = vmatmul.mubr.bf16.gmra.mrb[0].mxu0 %v911
      %v1062 = vpop.f32.mrb[0].mxu0
      %v1063 = vadd.f32 0.0, %v1062
      %v1064 = vpop.f32.mrb[0].mxu0
      %v1065 = vadd.f32 0.0, %v1064
      %v1066 = vpop.f32.mrb[0].mxu0
      %v1067 = vadd.f32 0.0, %v1066
      %v1068 = vpop.f32.mrb[0].mxu0
      %v1069 = vadd.f32 0.0, %v1068
      %1070 = vmatprep.mubr.bf16.mxu0 0
      %1071 = vmatmul.mubr.bf16.gmra.mrb[0].mxu0 %v914
      %v1072 = vpop.f32.mrb[0].mxu0
      %v1073 = vadd.f32 0.0, %v1072
      %v1074 = vpop.f32.mrb[0].mxu0
      %v1075 = vadd.f32 0.0, %v1074
      %v1076 = vpop.f32.mrb[0].mxu0
      %v1077 = vadd.f32 0.0, %v1076
      %v1078 = vpop.f32.mrb[0].mxu0
      %v1079 = vadd.f32 0.0, %v1078
      %1080 = vmatprep.mubr.bf16.mxu0 0
      %1081 = vmatmul.mubr.bf16.gmra.mrb[0].mxu0 %v917
      %v1082 = vpop.f32.mrb[0].mxu0
      %v1083 = vadd.f32 0.0, %v1082
      %v1084 = vpop.f32.mrb[0].mxu0
      %v1085 = vadd.f32 0.0, %v1084
      %v1086 = vpop.f32.mrb[0].mxu0
      %v1087 = vadd.f32 0.0, %v1086
      %v1088 = vpop.f32.mrb[0].mxu0
      %v1089 = vadd.f32 0.0, %v1088
      %1090 = vmatprep.mubr.bf16.mxu0 0
      %1091 = vmatmul.mubr.bf16.gmra.mrb[0].mxu0 %v920
      %v1092 = vpop.f32.mrb[0].mxu0
      %v1093 = vadd.f32 0.0, %v1092
      %v1094 = vpop.f32.mrb[0].mxu0
      %v1095 = vadd.f32 0.0, %v1094
      %v1096 = vpop.f32.mrb[0].mxu0
      %v1097 = vadd.f32 0.0, %v1096
      %v1098 = vpop.f32.mrb[0].mxu0
      %v1099 = vadd.f32 0.0, %v1098
      %1100 = vmatprep.mubr.bf16.mxu0 0
      %1101 = vmatmul.mubr.bf16.gmra.mrb[0].mxu0 %v923
      %v1102 = vpop.f32.mrb[0].mxu0
      %v1103 = vadd.f32 0.0, %v1102
      %v1104 = vpop.f32.mrb[0].mxu0
      %v1105 = vadd.f32 0.0, %v1104
      %v1106 = vpop.f32.mrb[0].mxu0
      %v1107 = vadd.f32 0.0, %v1106
      %v1108 = vpop.f32.mrb[0].mxu0
      %v1109 = vadd.f32 0.0, %v1108
      %1110 = vmatprep.mubr.bf16.mxu0 0
      %1111 = vmatmul.mubr.bf16.gmra.mrb[0].mxu0 %v926
      %v1112 = vpop.f32.mrb[0].mxu0
      %v1113 = vadd.f32 0.0, %v1112
      %v1114 = vpop.f32.mrb[0].mxu0
      %v1115 = vadd.f32 0.0, %v1114
      %v1116 = vpop.f32.mrb[0].mxu0
      %v1117 = vadd.f32 0.0, %v1116
      %v1118 = vpop.f32.mrb[0].mxu0
      %v1119 = vadd.f32 0.0, %v1118
      %1120 = vdwg.mxu0
      %v1121 = vpack.c.bf16 %v967, %v963
      %v1122 = vpack.c.bf16 %v977, %v973
      %v1123 = vpack.c.bf16 %v987, %v983
      %v1124 = vpack.c.bf16 %v997, %v993
      %v1125 = vpack.c.bf16 %v1007, %v1003
      %v1126 = vpack.c.bf16 %v1017, %v1013
      %v1127 = vpack.c.bf16 %v1027, %v1023
      %v1128 = vpack.c.bf16 %v1037, %v1033
      %v1129 = vpack.c.bf16 %v1047, %v1043
      %v1130 = vpack.c.bf16 %v1057, %v1053
      %v1131 = vpack.c.bf16 %v1067, %v1063
      %v1132 = vpack.c.bf16 %v1077, %v1073
      %v1133 = vpack.c.bf16 %v1087, %v1083
      %v1134 = vpack.c.bf16 %v1097, %v1093
      %v1135 = vpack.c.bf16 %v1107, %v1103
      %v1136 = vpack.c.bf16 %v1117, %v1113
      %v1137 = vpack.c.bf16 %v969, %v965
      %v1138 = vpack.c.bf16 %v979, %v975
      %v1139 = vpack.c.bf16 %v989, %v985
      %v1140 = vpack.c.bf16 %v999, %v995
      %v1141 = vpack.c.bf16 %v1009, %v1005
      %v1142 = vpack.c.bf16 %v1019, %v1015
      %v1143 = vpack.c.bf16 %v1029, %v1025
      %v1144 = vpack.c.bf16 %v1039, %v1035
      %v1145 = vpack.c.bf16 %v1049, %v1045
      %v1146 = vpack.c.bf16 %v1059, %v1055
      %v1147 = vpack.c.bf16 %v1069, %v1065
      %v1148 = vpack.c.bf16 %v1079, %v1075
      %v1149 = vpack.c.bf16 %v1089, %v1085
      %v1150 = vpack.c.bf16 %v1099, %v1095
      %v1151 = vpack.c.bf16 %v1109, %v1105
      %v1152 = vpack.c.bf16 %v1119, %v1115
      %v1153 = vld [vmem:[%s6] sm:$0xff]
      %v1154 = vld [vmem:[%s6 + $0x8] sm:$0xff]
      %v1155 = vld [vmem:[%s6 + $0x10] sm:$0xff]
      %v1156 = vld [vmem:[%s6 + $0x18] sm:$0xff]
      %v1157 = vld [vmem:[%s6 + $0x20] sm:$0xff]
      %v1158 = vld [vmem:[%s6 + $0x28] sm:$0xff]
      %v1159 = vld [vmem:[%s6 + $0x30] sm:$0xff]
      %v1160 = vld [vmem:[%s6 + $0x38] sm:$0xff]
      %1165 = vrot.lane.b32.xlu0 %v1121, 64
      %v1166 = vpop.permute.xlu0 %1165
      %1167 = vrot.lane.b32.xlu0 %v1122, 64
      %v1168 = vpop.permute.xlu0 %1167
      %1169 = vrot.lane.b32.xlu0 %v1123, 64
      %v1170 = vpop.permute.xlu0 %1169
      %1171 = vrot.lane.b32.xlu0 %v1124, 64
      %v1172 = vpop.permute.xlu0 %1171
      %vm1173 = vcmask 261120
      %v1175 = vsel %vm1173, %v1121, 0
      %v1178 = vsel %vm1173, %v1122, 0
      %v1181 = vsel %vm1173, %v1123, 0
      %v1184 = vsel %vm1173, %v1124, 0
      %v1187 = vsel %vm1173, %v1166, 0
      %v1190 = vsel %vm1173, %v1168, 0
      %v1193 = vsel %vm1173, %v1170, 0
      %v1196 = vsel %vm1173, %v1172, 0
      %1198 = vmatprep.subr.bf16.mxu0 0
      %1199 = vmatpush1.bf16.xpose.msra.mxu0 %v1187
      %1200 = vmatprep.subr.bf16.mxu0 0
      %1201 = vmatpush1.bf16.xpose.msra.mxu0 %v1190
      %1202 = vmatprep.subr.bf16.mxu0 0
      %1203 = vmatpush1.bf16.xpose.msra.mxu0 %v1193
      %1204 = vmatprep.subr.bf16.mxu0 0
      %1205 = vmatpush1.bf16.xpose.msra.mxu0 %v1196
      %1206 = vmatprep.subr.bf16.mxu0 0
      %1207 = vmatpush1.bf16.xpose.msra.mxu0 0
      %1208 = vmatprep.subr.bf16.mxu0 0
      %1209 = vmatpush1.bf16.xpose.msra.mxu0 0
      %1210 = vmatprep.subr.bf16.mxu0 0
      %1211 = vmatpush1.bf16.xpose.msra.mxu0 0
      %1212 = vmatprep.subr.bf16.mxu0 0
      %1213 = vmatpush1.bf16.xpose.msra.mxu0 0
      %1214 = vmatprep.subr.bf16.mxu0 0
      %1215 = vmatpush1.bf16.xpose.msra.mxu0 0
      %1216 = vmatprep.subr.bf16.mxu0 0
      %1217 = vmatpush1.bf16.xpose.msra.mxu0 0
      %1218 = vmatprep.subr.bf16.mxu0 0
      %1219 = vmatpush1.bf16.xpose.msra.mxu0 0
      %1220 = vmatprep.subr.bf16.mxu0 0
      %1221 = vmatpush1.bf16.xpose.msra.mxu0 0
      %1222 = vmatprep.subr.bf16.mxu0 0
      %1223 = vmatpush1.bf16.xpose.msra.mxu0 0
      %1224 = vmatprep.subr.bf16.mxu0 0
      %1225 = vmatpush1.bf16.xpose.msra.mxu0 0
      %1226 = vmatprep.subr.bf16.mxu0 0
      %1227 = vmatpush1.bf16.xpose.msra.mxu0 0
      %1228 = vmatprep.subr.bf16.mxu0 0
      %1229 = vmatpush1.bf16.xpose.msra.mxu0 0
      %1230 = vmatprep.mubr.bf16.mxu0 0
      %1231 = vmatmul.mubr.bf16.gmra.mrb[0].mxu0 %v1175
      %v1232 = vpop.f32.mrb[0].mxu0
      %v1233 = vadd.f32 %v1153, %v1232
      %v1234 = vpop.f32.mrb[0].mxu0
      %v1235 = vpop.f32.mrb[0].mxu0
      %v1236 = vadd.f32 %v1154, %v1235
      %v1237 = vpop.f32.mrb[0].mxu0
      %1238 = vmatprep.mubr.bf16.mxu0 0
      %1239 = vmatmul.mubr.bf16.gmra.mrb[0].mxu0 %v1178
      %v1240 = vpop.f32.mrb[0].mxu0
      %v1241 = vadd.f32 %v1155, %v1240
      %v1242 = vpop.f32.mrb[0].mxu0
      %v1243 = vpop.f32.mrb[0].mxu0
      %v1244 = vadd.f32 %v1156, %v1243
      %v1245 = vpop.f32.mrb[0].mxu0
      %1246 = vmatprep.mubr.bf16.mxu0 0
      %1247 = vmatmul.mubr.bf16.gmra.mrb[0].mxu0 %v1181
      %v1248 = vpop.f32.mrb[0].mxu0
      %v1249 = vadd.f32 %v1157, %v1248
      %v1250 = vpop.f32.mrb[0].mxu0
      %v1251 = vpop.f32.mrb[0].mxu0
      %v1252 = vadd.f32 %v1158, %v1251
      %v1253 = vpop.f32.mrb[0].mxu0
      %1254 = vmatprep.mubr.bf16.mxu0 0
      %1255 = vmatmul.mubr.bf16.gmra.mrb[0].mxu0 %v1184
      %v1256 = vpop.f32.mrb[0].mxu0
      %v1257 = vadd.f32 %v1159, %v1256
      %v1258 = vpop.f32.mrb[0].mxu0
      %v1259 = vpop.f32.mrb[0].mxu0
      %v1260 = vadd.f32 %v1160, %v1259
      %v1261 = vpop.f32.mrb[0].mxu0
      %1262 = vdwg.mxu0
      %1267 = vrot.lane.b32.xlu0 %v1125, 64
      %v1268 = vpop.permute.xlu0 %1267
      %1269 = vrot.lane.b32.xlu0 %v1126, 64
      %v1270 = vpop.permute.xlu0 %1269
      %1271 = vrot.lane.b32.xlu0 %v1127, 64
      %v1272 = vpop.permute.xlu0 %1271
      %1273 = vrot.lane.b32.xlu0 %v1128, 64
      %v1274 = vpop.permute.xlu0 %1273
      %v1276 = vsel %vm1173, %v1125, 0
      %v1279 = vsel %vm1173, %v1126, 0
      %v1282 = vsel %vm1173, %v1127, 0
      %v1285 = vsel %vm1173, %v1128, 0
      %v1288 = vsel %vm1173, %v1268, 0
      %v1291 = vsel %vm1173, %v1270, 0
      %v1294 = vsel %vm1173, %v1272, 0
      %v1297 = vsel %vm1173, %v1274, 0
      %1299 = vmatprep.subr.bf16.mxu0 0
      %1300 = vmatpush1.bf16.xpose.msra.mxu0 %v1288
      %1301 = vmatprep.subr.bf16.mxu0 0
      %1302 = vmatpush1.bf16.xpose.msra.mxu0 %v1291
      %1303 = vmatprep.subr.bf16.mxu0 0
      %1304 = vmatpush1.bf16.xpose.msra.mxu0 %v1294
      %1305 = vmatprep.subr.bf16.mxu0 0
      %1306 = vmatpush1.bf16.xpose.msra.mxu0 %v1297
      %1307 = vmatprep.subr.bf16.mxu0 0
      %1308 = vmatpush1.bf16.xpose.msra.mxu0 0
      %1309 = vmatprep.subr.bf16.mxu0 0
      %1310 = vmatpush1.bf16.xpose.msra.mxu0 0
      %1311 = vmatprep.subr.bf16.mxu0 0
      %1312 = vmatpush1.bf16.xpose.msra.mxu0 0
      %1313 = vmatprep.subr.bf16.mxu0 0
      %1314 = vmatpush1.bf16.xpose.msra.mxu0 0
      %1315 = vmatprep.subr.bf16.mxu0 0
      %1316 = vmatpush1.bf16.xpose.msra.mxu0 0
      %1317 = vmatprep.subr.bf16.mxu0 0
      %1318 = vmatpush1.bf16.xpose.msra.mxu0 0
      %1319 = vmatprep.subr.bf16.mxu0 0
      %1320 = vmatpush1.bf16.xpose.msra.mxu0 0
      %1321 = vmatprep.subr.bf16.mxu0 0
      %1322 = vmatpush1.bf16.xpose.msra.mxu0 0
      %1323 = vmatprep.subr.bf16.mxu0 0
      %1324 = vmatpush1.bf16.xpose.msra.mxu0 0
      %1325 = vmatprep.subr.bf16.mxu0 0
      %1326 = vmatpush1.bf16.xpose.msra.mxu0 0
      %1327 = vmatprep.subr.bf16.mxu0 0
      %1328 = vmatpush1.bf16.xpose.msra.mxu0 0
      %1329 = vmatprep.subr.bf16.mxu0 0
      %1330 = vmatpush1.bf16.xpose.msra.mxu0 0
      %1331 = vmatprep.mubr.bf16.mxu0 0
      %1332 = vmatmul.mubr.bf16.gmra.mrb[0].mxu0 %v1276
      %v1333 = vpop.f32.mrb[0].mxu0
      %v1334 = vadd.f32 %v1153, %v1333
      %v1335 = vpop.f32.mrb[0].mxu0
      %v1336 = vpop.f32.mrb[0].mxu0
      %v1337 = vadd.f32 %v1154, %v1336
      %v1338 = vpop.f32.mrb[0].mxu0
      %1339 = vmatprep.mubr.bf16.mxu0 0
      %1340 = vmatmul.mubr.bf16.gmra.mrb[0].mxu0 %v1279
      %v1341 = vpop.f32.mrb[0].mxu0
      %v1342 = vadd.f32 %v1155, %v1341
      %v1343 = vpop.f32.mrb[0].mxu0
      %v1344 = vpop.f32.mrb[0].mxu0
      %v1345 = vadd.f32 %v1156, %v1344
      %v1346 = vpop.f32.mrb[0].mxu0
      %1347 = vmatprep.mubr.bf16.mxu0 0
      %1348 = vmatmul.mubr.bf16.gmra.mrb[0].mxu0 %v1282
      %v1349 = vpop.f32.mrb[0].mxu0
      %v1350 = vadd.f32 %v1157, %v1349
      %v1351 = vpop.f32.mrb[0].mxu0
      %v1352 = vpop.f32.mrb[0].mxu0
      %v1353 = vadd.f32 %v1158, %v1352
      %v1354 = vpop.f32.mrb[0].mxu0
      %1355 = vmatprep.mubr.bf16.mxu0 0
      %1356 = vmatmul.mubr.bf16.gmra.mrb[0].mxu0 %v1285
      %v1357 = vpop.f32.mrb[0].mxu0
      %v1358 = vadd.f32 %v1159, %v1357
      %v1359 = vpop.f32.mrb[0].mxu0
      %v1360 = vpop.f32.mrb[0].mxu0
      %v1361 = vadd.f32 %v1160, %v1360
      %v1362 = vpop.f32.mrb[0].mxu0
      %1363 = vdwg.mxu0
      %1368 = vrot.lane.b32.xlu0 %v1129, 64
      %v1369 = vpop.permute.xlu0 %1368
      %1370 = vrot.lane.b32.xlu0 %v1130, 64
      %v1371 = vpop.permute.xlu0 %1370
      %1372 = vrot.lane.b32.xlu0 %v1131, 64
      %v1373 = vpop.permute.xlu0 %1372
      %1374 = vrot.lane.b32.xlu0 %v1132, 64
      %v1375 = vpop.permute.xlu0 %1374
      %v1377 = vsel %vm1173, %v1129, 0
      %v1380 = vsel %vm1173, %v1130, 0
      %v1383 = vsel %vm1173, %v1131, 0
      %v1386 = vsel %vm1173, %v1132, 0
      %v1389 = vsel %vm1173, %v1369, 0
      %v1392 = vsel %vm1173, %v1371, 0
      %v1395 = vsel %vm1173, %v1373, 0
      %v1398 = vsel %vm1173, %v1375, 0
      %1400 = vmatprep.subr.bf16.mxu0 0
      %1401 = vmatpush1.bf16.xpose.msra.mxu0 %v1389
      %1402 = vmatprep.subr.bf16.mxu0 0
      %1403 = vmatpush1.bf16.xpose.msra.mxu0 %v1392
      %1404 = vmatprep.subr.bf16.mxu0 0
      %1405 = vmatpush1.bf16.xpose.msra.mxu0 %v1395
      %1406 = vmatprep.subr.bf16.mxu0 0
      %1407 = vmatpush1.bf16.xpose.msra.mxu0 %v1398
      %1408 = vmatprep.subr.bf16.mxu0 0
      %1409 = vmatpush1.bf16.xpose.msra.mxu0 0
      %1410 = vmatprep.subr.bf16.mxu0 0
      %1411 = vmatpush1.bf16.xpose.msra.mxu0 0
      %1412 = vmatprep.subr.bf16.mxu0 0
      %1413 = vmatpush1.bf16.xpose.msra.mxu0 0
      %1414 = vmatprep.subr.bf16.mxu0 0
      %1415 = vmatpush1.bf16.xpose.msra.mxu0 0
      %1416 = vmatprep.subr.bf16.mxu0 0
      %1417 = vmatpush1.bf16.xpose.msra.mxu0 0
      %1418 = vmatprep.subr.bf16.mxu0 0
      %1419 = vmatpush1.bf16.xpose.msra.mxu0 0
      %1420 = vmatprep.subr.bf16.mxu0 0
      %1421 = vmatpush1.bf16.xpose.msra.mxu0 0
      %1422 = vmatprep.subr.bf16.mxu0 0
      %1423 = vmatpush1.bf16.xpose.msra.mxu0 0
      %1424 = vmatprep.subr.bf16.mxu0 0
      %1425 = vmatpush1.bf16.xpose.msra.mxu0 0
      %1426 = vmatprep.subr.bf16.mxu0 0
      %1427 = vmatpush1.bf16.xpose.msra.mxu0 0
      %1428 = vmatprep.subr.bf16.mxu0 0
      %1429 = vmatpush1.bf16.xpose.msra.mxu0 0
      %1430 = vmatprep.subr.bf16.mxu0 0
      %1431 = vmatpush1.bf16.xpose.msra.mxu0 0
      %1432 = vmatprep.mubr.bf16.mxu0 0
      %1433 = vmatmul.mubr.bf16.gmra.mrb[0].mxu0 %v1377
      %v1434 = vpop.f32.mrb[0].mxu0
      %v1435 = vadd.f32 %v1153, %v1434
      %v1436 = vpop.f32.mrb[0].mxu0
      %v1437 = vpop.f32.mrb[0].mxu0
      %v1438 = vadd.f32 %v1154, %v1437
      %v1439 = vpop.f32.mrb[0].mxu0
      %1440 = vmatprep.mubr.bf16.mxu0 0
      %1441 = vmatmul.mubr.bf16.gmra.mrb[0].mxu0 %v1380
      %v1442 = vpop.f32.mrb[0].mxu0
      %v1443 = vadd.f32 %v1155, %v1442
      %v1444 = vpop.f32.mrb[0].mxu0
      %v1445 = vpop.f32.mrb[0].mxu0
      %v1446 = vadd.f32 %v1156, %v1445
      %v1447 = vpop.f32.mrb[0].mxu0
      %1448 = vmatprep.mubr.bf16.mxu0 0
      %1449 = vmatmul.mubr.bf16.gmra.mrb[0].mxu0 %v1383
      %v1450 = vpop.f32.mrb[0].mxu0
      %v1451 = vadd.f32 %v1157, %v1450
      %v1452 = vpop.f32.mrb[0].mxu0
      %v1453 = vpop.f32.mrb[0].mxu0
      %v1454 = vadd.f32 %v1158, %v1453
      %v1455 = vpop.f32.mrb[0].mxu0
      %1456 = vmatprep.mubr.bf16.mxu0 0
      %1457 = vmatmul.mubr.bf16.gmra.mrb[0].mxu0 %v1386
      %v1458 = vpop.f32.mrb[0].mxu0
      %v1459 = vadd.f32 %v1159, %v1458
      %v1460 = vpop.f32.mrb[0].mxu0
      %v1461 = vpop.f32.mrb[0].mxu0
      %v1462 = vadd.f32 %v1160, %v1461
      %v1463 = vpop.f32.mrb[0].mxu0
      %1464 = vdwg.mxu0
      %1469 = vrot.lane.b32.xlu0 %v1133, 64
      %v1470 = vpop.permute.xlu0 %1469
      %1471 = vrot.lane.b32.xlu0 %v1134, 64
      %v1472 = vpop.permute.xlu0 %1471
      %1473 = vrot.lane.b32.xlu0 %v1135, 64
      %v1474 = vpop.permute.xlu0 %1473
      %1475 = vrot.lane.b32.xlu0 %v1136, 64
      %v1476 = vpop.permute.xlu0 %1475
      %v1478 = vsel %vm1173, %v1133, 0
      %v1481 = vsel %vm1173, %v1134, 0
      %v1484 = vsel %vm1173, %v1135, 0
      %v1487 = vsel %vm1173, %v1136, 0
      %v1490 = vsel %vm1173, %v1470, 0
      %v1493 = vsel %vm1173, %v1472, 0
      %v1496 = vsel %vm1173, %v1474, 0
      %v1499 = vsel %vm1173, %v1476, 0
      %1501 = vmatprep.subr.bf16.mxu0 0
      %1502 = vmatpush1.bf16.xpose.msra.mxu0 %v1490
      %1503 = vmatprep.subr.bf16.mxu0 0
      %1504 = vmatpush1.bf16.xpose.msra.mxu0 %v1493
      %1505 = vmatprep.subr.bf16.mxu0 0
      %1506 = vmatpush1.bf16.xpose.msra.mxu0 %v1496
      %1507 = vmatprep.subr.bf16.mxu0 0
      %1508 = vmatpush1.bf16.xpose.msra.mxu0 %v1499
      %1509 = vmatprep.subr.bf16.mxu0 0
      %1510 = vmatpush1.bf16.xpose.msra.mxu0 0
      %1511 = vmatprep.subr.bf16.mxu0 0
      %1512 = vmatpush1.bf16.xpose.msra.mxu0 0
      %1513 = vmatprep.subr.bf16.mxu0 0
      %1514 = vmatpush1.bf16.xpose.msra.mxu0 0
      %1515 = vmatprep.subr.bf16.mxu0 0
      %1516 = vmatpush1.bf16.xpose.msra.mxu0 0
      %1517 = vmatprep.subr.bf16.mxu0 0
      %1518 = vmatpush1.bf16.xpose.msra.mxu0 0
      %1519 = vmatprep.subr.bf16.mxu0 0
      %1520 = vmatpush1.bf16.xpose.msra.mxu0 0
      %1521 = vmatprep.subr.bf16.mxu0 0
      %1522 = vmatpush1.bf16.xpose.msra.mxu0 0
      %1523 = vmatprep.subr.bf16.mxu0 0
      %1524 = vmatpush1.bf16.xpose.msra.mxu0 0
      %1525 = vmatprep.subr.bf16.mxu0 0
      %1526 = vmatpush1.bf16.xpose.msra.mxu0 0
      %1527 = vmatprep.subr.bf16.mxu0 0
      %1528 = vmatpush1.bf16.xpose.msra.mxu0 0
      %1529 = vmatprep.subr.bf16.mxu0 0
      %1530 = vmatpush1.bf16.xpose.msra.mxu0 0
      %1531 = vmatprep.subr.bf16.mxu0 0
      %1532 = vmatpush1.bf16.xpose.msra.mxu0 0
      %1533 = vmatprep.mubr.bf16.mxu0 0
      %1534 = vmatmul.mubr.bf16.gmra.mrb[0].mxu0 %v1478
      %v1535 = vpop.f32.mrb[0].mxu0
      %v1536 = vadd.f32 %v1153, %v1535
      %v1537 = vpop.f32.mrb[0].mxu0
      %v1538 = vpop.f32.mrb[0].mxu0
      %v1539 = vadd.f32 %v1154, %v1538
      %v1540 = vpop.f32.mrb[0].mxu0
      %1541 = vmatprep.mubr.bf16.mxu0 0
      %1542 = vmatmul.mubr.bf16.gmra.mrb[0].mxu0 %v1481
      %v1543 = vpop.f32.mrb[0].mxu0
      %v1544 = vadd.f32 %v1155, %v1543
      %v1545 = vpop.f32.mrb[0].mxu0
      %v1546 = vpop.f32.mrb[0].mxu0
      %v1547 = vadd.f32 %v1156, %v1546
      %v1548 = vpop.f32.mrb[0].mxu0
      %1549 = vmatprep.mubr.bf16.mxu0 0
      %1550 = vmatmul.mubr.bf16.gmra.mrb[0].mxu0 %v1484
      %v1551 = vpop.f32.mrb[0].mxu0
      %v1552 = vadd.f32 %v1157, %v1551
      %v1553 = vpop.f32.mrb[0].mxu0
      %v1554 = vpop.f32.mrb[0].mxu0
      %v1555 = vadd.f32 %v1158, %v1554
      %v1556 = vpop.f32.mrb[0].mxu0
      %1557 = vmatprep.mubr.bf16.mxu0 0
      %1558 = vmatmul.mubr.bf16.gmra.mrb[0].mxu0 %v1487
      %v1559 = vpop.f32.mrb[0].mxu0
      %v1560 = vadd.f32 %v1159, %v1559
      %v1561 = vpop.f32.mrb[0].mxu0
      %v1562 = vpop.f32.mrb[0].mxu0
      %v1563 = vadd.f32 %v1160, %v1562
      %v1564 = vpop.f32.mrb[0].mxu0
      %1565 = vdwg.mxu0
      %v1566 = vsel %vm320, %v1233, -inf
      %1567 = vmax.xlane.f32.xlu0 %v1566
      %v1568 = vpop.xlane.xlu0 %1567
      %v1569 = vsel %vm320, %v1236, -inf
      %1570 = vmax.xlane.f32.xlu0 %v1569
      %v1571 = vpop.xlane.xlu0 %1570
      %v1572 = vsel %vm320, %v1241, -inf
      %1573 = vmax.xlane.f32.xlu0 %v1572
      %v1574 = vpop.xlane.xlu0 %1573
      %v1575 = vsel %vm320, %v1244, -inf
      %1576 = vmax.xlane.f32.xlu0 %v1575
      %v1577 = vpop.xlane.xlu0 %1576
      %v1578 = vsel %vm320, %v1249, -inf
      %1579 = vmax.xlane.f32.xlu0 %v1578
      %v1580 = vpop.xlane.xlu0 %1579
      %v1581 = vsel %vm320, %v1252, -inf
      %1582 = vmax.xlane.f32.xlu0 %v1581
      %v1583 = vpop.xlane.xlu0 %1582
      %v1584 = vsel %vm320, %v1257, -inf
      %1585 = vmax.xlane.f32.xlu0 %v1584
      %v1586 = vpop.xlane.xlu0 %1585
      %v1587 = vsel %vm320, %v1260, -inf
      %1588 = vmax.xlane.f32.xlu0 %v1587
      %v1589 = vpop.xlane.xlu0 %1588
      %v1590 = vsel %vm320, %v1334, -inf
      %1591 = vmax.xlane.f32.xlu0 %v1590
      %v1592 = vpop.xlane.xlu0 %1591
      %v1593 = vsel %vm320, %v1337, -inf
      %1594 = vmax.xlane.f32.xlu0 %v1593
      %v1595 = vpop.xlane.xlu0 %1594
      %v1596 = vsel %vm320, %v1342, -inf
      %1597 = vmax.xlane.f32.xlu0 %v1596
      %v1598 = vpop.xlane.xlu0 %1597
      %v1599 = vsel %vm320, %v1345, -inf
      %1600 = vmax.xlane.f32.xlu0 %v1599
      %v1601 = vpop.xlane.xlu0 %1600
      %v1602 = vsel %vm320, %v1350, -inf
      %1603 = vmax.xlane.f32.xlu0 %v1602
      %v1604 = vpop.xlane.xlu0 %1603
      %v1605 = vsel %vm320, %v1353, -inf
      %1606 = vmax.xlane.f32.xlu0 %v1605
      %v1607 = vpop.xlane.xlu0 %1606
      %v1608 = vsel %vm320, %v1358, -inf
      %1609 = vmax.xlane.f32.xlu0 %v1608
      %v1610 = vpop.xlane.xlu0 %1609
      %v1611 = vsel %vm320, %v1361, -inf
      %1612 = vmax.xlane.f32.xlu0 %v1611
      %v1613 = vpop.xlane.xlu0 %1612
      %v1614 = vsel %vm320, %v1435, -inf
      %1615 = vmax.xlane.f32.xlu0 %v1614
      %v1616 = vpop.xlane.xlu0 %1615
      %v1617 = vsel %vm320, %v1438, -inf
      %1618 = vmax.xlane.f32.xlu0 %v1617
      %v1619 = vpop.xlane.xlu0 %1618
      %v1620 = vsel %vm320, %v1443, -inf
      %1621 = vmax.xlane.f32.xlu0 %v1620
      %v1622 = vpop.xlane.xlu0 %1621
      %v1623 = vsel %vm320, %v1446, -inf
      %1624 = vmax.xlane.f32.xlu0 %v1623
      %v1625 = vpop.xlane.xlu0 %1624
      %v1626 = vsel %vm320, %v1451, -inf
      %1627 = vmax.xlane.f32.xlu0 %v1626
      %v1628 = vpop.xlane.xlu0 %1627
      %v1629 = vsel %vm320, %v1454, -inf
      %1630 = vmax.xlane.f32.xlu0 %v1629
      %v1631 = vpop.xlane.xlu0 %1630
      %v1632 = vsel %vm320, %v1459, -inf
      %1633 = vmax.xlane.f32.xlu0 %v1632
      %v1634 = vpop.xlane.xlu0 %1633
      %v1635 = vsel %vm320, %v1462, -inf
      %1636 = vmax.xlane.f32.xlu0 %v1635
      %v1637 = vpop.xlane.xlu0 %1636
      %v1638 = vsel %vm320, %v1536, -inf
      %1639 = vmax.xlane.f32.xlu0 %v1638
      %v1640 = vpop.xlane.xlu0 %1639
      %v1641 = vsel %vm320, %v1539, -inf
      %1642 = vmax.xlane.f32.xlu0 %v1641
      %v1643 = vpop.xlane.xlu0 %1642
      %v1644 = vsel %vm320, %v1544, -inf
      %1645 = vmax.xlane.f32.xlu0 %v1644
      %v1646 = vpop.xlane.xlu0 %1645
      %v1647 = vsel %vm320, %v1547, -inf
      %1648 = vmax.xlane.f32.xlu0 %v1647
      %v1649 = vpop.xlane.xlu0 %1648
      %v1650 = vsel %vm320, %v1552, -inf
      %1651 = vmax.xlane.f32.xlu0 %v1650
      %v1652 = vpop.xlane.xlu0 %1651
      %v1653 = vsel %vm320, %v1555, -inf
      %1654 = vmax.xlane.f32.xlu0 %v1653
      %v1655 = vpop.xlane.xlu0 %1654
      %v1656 = vsel %vm320, %v1560, -inf
      %1657 = vmax.xlane.f32.xlu0 %v1656
      %v1658 = vpop.xlane.xlu0 %1657
      %v1659 = vsel %vm320, %v1563, -inf
      %1660 = vmax.xlane.f32.xlu0 %v1659
      %v1661 = vpop.xlane.xlu0 %1660
      %v1662 = vsub.f32 %v1233, %v1568
      %v1663 = vsub.f32 %v1236, %v1571
      %v1664 = vsub.f32 %v1241, %v1574
      %v1665 = vsub.f32 %v1244, %v1577
      %v1666 = vsub.f32 %v1249, %v1580
      %v1667 = vsub.f32 %v1252, %v1583
      %v1668 = vsub.f32 %v1257, %v1586
      %v1669 = vsub.f32 %v1260, %v1589
      %v1670 = vsub.f32 %v1334, %v1592
      %v1671 = vsub.f32 %v1337, %v1595
      %v1672 = vsub.f32 %v1342, %v1598
      %v1673 = vsub.f32 %v1345, %v1601
      %v1674 = vsub.f32 %v1350, %v1604
      %v1675 = vsub.f32 %v1353, %v1607
      %v1676 = vsub.f32 %v1358, %v1610
      %v1677 = vsub.f32 %v1361, %v1613
      %v1678 = vsub.f32 %v1435, %v1616
      %v1679 = vsub.f32 %v1438, %v1619
      %v1680 = vsub.f32 %v1443, %v1622
      %v1681 = vsub.f32 %v1446, %v1625
      %v1682 = vsub.f32 %v1451, %v1628
      %v1683 = vsub.f32 %v1454, %v1631
      %v1684 = vsub.f32 %v1459, %v1634
      %v1685 = vsub.f32 %v1462, %v1637
      %v1686 = vsub.f32 %v1536, %v1640
      %v1687 = vsub.f32 %v1539, %v1643
      %v1688 = vsub.f32 %v1544, %v1646
      %v1689 = vsub.f32 %v1547, %v1649
      %v1690 = vsub.f32 %v1552, %v1652
      %v1691 = vsub.f32 %v1555, %v1655
      %v1692 = vsub.f32 %v1560, %v1658
      %v1693 = vsub.f32 %v1563, %v1661
      %v1694 = vmul.f32 %v1662, 1.442695
      %v1695 = vpow.pop %v1694
      %v1696 = vmul.f32 %v1663, 1.442695
      %v1697 = vpow.pop %v1696
      %v1698 = vmul.f32 %v1664, 1.442695
      %v1699 = vpow.pop %v1698
      %v1700 = vmul.f32 %v1665, 1.442695
      %v1701 = vpow.pop %v1700
      %v1702 = vmul.f32 %v1666, 1.442695
      %v1703 = vpow.pop %v1702
      %v1704 = vmul.f32 %v1667, 1.442695
      %v1705 = vpow.pop %v1704
      %v1706 = vmul.f32 %v1668, 1.442695
      %v1707 = vpow.pop %v1706
      %v1708 = vmul.f32 %v1669, 1.442695
      %v1709 = vpow.pop %v1708
      %v1710 = vmul.f32 %v1670, 1.442695
      %v1711 = vpow.pop %v1710
      %v1712 = vmul.f32 %v1671, 1.442695
      %v1713 = vpow.pop %v1712
      %v1714 = vmul.f32 %v1672, 1.442695
      %v1715 = vpow.pop %v1714
      %v1716 = vmul.f32 %v1673, 1.442695
      %v1717 = vpow.pop %v1716
      %v1718 = vmul.f32 %v1674, 1.442695
      %v1719 = vpow.pop %v1718
      %v1720 = vmul.f32 %v1675, 1.442695
      %v1721 = vpow.pop %v1720
      %v1722 = vmul.f32 %v1676, 1.442695
      %v1723 = vpow.pop %v1722
      %v1724 = vmul.f32 %v1677, 1.442695
      %v1725 = vpow.pop %v1724
      %v1726 = vmul.f32 %v1678, 1.442695
      %v1727 = vpow.pop %v1726
      %v1728 = vmul.f32 %v1679, 1.442695
      %v1729 = vpow.pop %v1728
      %v1730 = vmul.f32 %v1680, 1.442695
      %v1731 = vpow.pop %v1730
      %v1732 = vmul.f32 %v1681, 1.442695
      %v1733 = vpow.pop %v1732
      %v1734 = vmul.f32 %v1682, 1.442695
      %v1735 = vpow.pop %v1734
      %v1736 = vmul.f32 %v1683, 1.442695
      %v1737 = vpow.pop %v1736
      %v1738 = vmul.f32 %v1684, 1.442695
      %v1739 = vpow.pop %v1738
      %v1740 = vmul.f32 %v1685, 1.442695
      %v1741 = vpow.pop %v1740
      %v1742 = vmul.f32 %v1686, 1.442695
      %v1743 = vpow.pop %v1742
      %v1744 = vmul.f32 %v1687, 1.442695
      %v1745 = vpow.pop %v1744
      %v1746 = vmul.f32 %v1688, 1.442695
      %v1747 = vpow.pop %v1746
      %v1748 = vmul.f32 %v1689, 1.442695
      %v1749 = vpow.pop %v1748
      %v1750 = vmul.f32 %v1690, 1.442695
      %v1751 = vpow.pop %v1750
      %v1752 = vmul.f32 %v1691, 1.442695
      %v1753 = vpow.pop %v1752
      %v1754 = vmul.f32 %v1692, 1.442695
      %v1755 = vpow.pop %v1754
      %v1756 = vmul.f32 %v1693, 1.442695
      %v1757 = vpow.pop %v1756
      %v1758 = vsel %vm320, %v1695, 0.0
      %1759 = vadd.xlane.f32.xlu0 %v1758
      %v1760 = vpop.xlane.xlu0 %1759
      %v1761 = vsel %vm320, %v1697, 0.0
      %1762 = vadd.xlane.f32.xlu0 %v1761
      %v1763 = vpop.xlane.xlu0 %1762
      %v1764 = vsel %vm320, %v1699, 0.0
      %1765 = vadd.xlane.f32.xlu0 %v1764
      %v1766 = vpop.xlane.xlu0 %1765
      %v1767 = vsel %vm320, %v1701, 0.0
      %1768 = vadd.xlane.f32.xlu0 %v1767
      %v1769 = vpop.xlane.xlu0 %1768
      %v1770 = vsel %vm320, %v1703, 0.0
      %1771 = vadd.xlane.f32.xlu0 %v1770
      %v1772 = vpop.xlane.xlu0 %1771
      %v1773 = vsel %vm320, %v1705, 0.0
      %1774 = vadd.xlane.f32.xlu0 %v1773
      %v1775 = vpop.xlane.xlu0 %1774
      %v1776 = vsel %vm320, %v1707, 0.0
      %1777 = vadd.xlane.f32.xlu0 %v1776
      %v1778 = vpop.xlane.xlu0 %1777
      %v1779 = vsel %vm320, %v1709, 0.0
      %1780 = vadd.xlane.f32.xlu0 %v1779
      %v1781 = vpop.xlane.xlu0 %1780
      %v1782 = vsel %vm320, %v1711, 0.0
      %1783 = vadd.xlane.f32.xlu0 %v1782
      %v1784 = vpop.xlane.xlu0 %1783
      %v1785 = vsel %vm320, %v1713, 0.0
      %1786 = vadd.xlane.f32.xlu0 %v1785
      %v1787 = vpop.xlane.xlu0 %1786
      %v1788 = vsel %vm320, %v1715, 0.0
      %1789 = vadd.xlane.f32.xlu0 %v1788
      %v1790 = vpop.xlane.xlu0 %1789
      %v1791 = vsel %vm320, %v1717, 0.0
      %1792 = vadd.xlane.f32.xlu0 %v1791
      %v1793 = vpop.xlane.xlu0 %1792
      %v1794 = vsel %vm320, %v1719, 0.0
      %1795 = vadd.xlane.f32.xlu0 %v1794
      %v1796 = vpop.xlane.xlu0 %1795
      %v1797 = vsel %vm320, %v1721, 0.0
      %1798 = vadd.xlane.f32.xlu0 %v1797
      %v1799 = vpop.xlane.xlu0 %1798
      %v1800 = vsel %vm320, %v1723, 0.0
      %1801 = vadd.xlane.f32.xlu0 %v1800
      %v1802 = vpop.xlane.xlu0 %1801
      %v1803 = vsel %vm320, %v1725, 0.0
      %1804 = vadd.xlane.f32.xlu0 %v1803
      %v1805 = vpop.xlane.xlu0 %1804
      %v1806 = vsel %vm320, %v1727, 0.0
      %1807 = vadd.xlane.f32.xlu0 %v1806
      %v1808 = vpop.xlane.xlu0 %1807
      %v1809 = vsel %vm320, %v1729, 0.0
      %1810 = vadd.xlane.f32.xlu0 %v1809
      %v1811 = vpop.xlane.xlu0 %1810
      %v1812 = vsel %vm320, %v1731, 0.0
      %1813 = vadd.xlane.f32.xlu0 %v1812
      %v1814 = vpop.xlane.xlu0 %1813
      %v1815 = vsel %vm320, %v1733, 0.0
      %1816 = vadd.xlane.f32.xlu0 %v1815
      %v1817 = vpop.xlane.xlu0 %1816
      %v1818 = vsel %vm320, %v1735, 0.0
      %1819 = vadd.xlane.f32.xlu0 %v1818
      %v1820 = vpop.xlane.xlu0 %1819
      %v1821 = vsel %vm320, %v1737, 0.0
      %1822 = vadd.xlane.f32.xlu0 %v1821
      %v1823 = vpop.xlane.xlu0 %1822
      %v1824 = vsel %vm320, %v1739, 0.0
      %1825 = vadd.xlane.f32.xlu0 %v1824
      %v1826 = vpop.xlane.xlu0 %1825
      %v1827 = vsel %vm320, %v1741, 0.0
      %1828 = vadd.xlane.f32.xlu0 %v1827
      %v1829 = vpop.xlane.xlu0 %1828
      %v1830 = vsel %vm320, %v1743, 0.0
      %1831 = vadd.xlane.f32.xlu0 %v1830
      %v1832 = vpop.xlane.xlu0 %1831
      %v1833 = vsel %vm320, %v1745, 0.0
      %1834 = vadd.xlane.f32.xlu0 %v1833
      %v1835 = vpop.xlane.xlu0 %1834
      %v1836 = vsel %vm320, %v1747, 0.0
      %1837 = vadd.xlane.f32.xlu0 %v1836
      %v1838 = vpop.xlane.xlu0 %1837
      %v1839 = vsel %vm320, %v1749, 0.0
      %1840 = vadd.xlane.f32.xlu0 %v1839
      %v1841 = vpop.xlane.xlu0 %1840
      %v1842 = vsel %vm320, %v1751, 0.0
      %1843 = vadd.xlane.f32.xlu0 %v1842
      %v1844 = vpop.xlane.xlu0 %1843
      %v1845 = vsel %vm320, %v1753, 0.0
      %1846 = vadd.xlane.f32.xlu0 %v1845
      %v1847 = vpop.xlane.xlu0 %1846
      %v1848 = vsel %vm320, %v1755, 0.0
      %1849 = vadd.xlane.f32.xlu0 %v1848
      %v1850 = vpop.xlane.xlu0 %1849
      %v1851 = vsel %vm320, %v1757, 0.0
      %1852 = vadd.xlane.f32.xlu0 %v1851
      %v1853 = vpop.xlane.xlu0 %1852
      %v1854 = vrcp.pop %v1760
      %v1855 = vrcp.pop %v1763
      %v1856 = vrcp.pop %v1766
      %v1857 = vrcp.pop %v1769
      %v1858 = vrcp.pop %v1772
      %v1859 = vrcp.pop %v1775
      %v1860 = vrcp.pop %v1778
      %v1861 = vrcp.pop %v1781
      %v1862 = vrcp.pop %v1784
      %v1863 = vrcp.pop %v1787
      %v1864 = vrcp.pop %v1790
      %v1865 = vrcp.pop %v1793
      %v1866 = vrcp.pop %v1796
      %v1867 = vrcp.pop %v1799
      %v1868 = vrcp.pop %v1802
      %v1869 = vrcp.pop %v1805
      %v1870 = vrcp.pop %v1808
      %v1871 = vrcp.pop %v1811
      %v1872 = vrcp.pop %v1814
      %v1873 = vrcp.pop %v1817
      %v1874 = vrcp.pop %v1820
      %v1875 = vrcp.pop %v1823
      %v1876 = vrcp.pop %v1826
      %v1877 = vrcp.pop %v1829
      %v1878 = vrcp.pop %v1832
      %v1879 = vrcp.pop %v1835
      %v1880 = vrcp.pop %v1838
      %v1881 = vrcp.pop %v1841
      %v1882 = vrcp.pop %v1844
      %v1883 = vrcp.pop %v1847
      %v1884 = vrcp.pop %v1850
      %v1885 = vrcp.pop %v1853
      %v1886 = vmul.f32 %v1695, %v1854
      %v1887 = vmul.f32 %v1697, %v1855
      %v1888 = vmul.f32 %v1699, %v1856
      %v1889 = vmul.f32 %v1701, %v1857
      %v1890 = vmul.f32 %v1703, %v1858
      %v1891 = vmul.f32 %v1705, %v1859
      %v1892 = vmul.f32 %v1707, %v1860
      %v1893 = vmul.f32 %v1709, %v1861
      %v1894 = vmul.f32 %v1711, %v1862
      %v1895 = vmul.f32 %v1713, %v1863
      %v1896 = vmul.f32 %v1715, %v1864
      %v1897 = vmul.f32 %v1717, %v1865
      %v1898 = vmul.f32 %v1719, %v1866
      %v1899 = vmul.f32 %v1721, %v1867
      %v1900 = vmul.f32 %v1723, %v1868
      %v1901 = vmul.f32 %v1725, %v1869
      %v1902 = vmul.f32 %v1727, %v1870
      %v1903 = vmul.f32 %v1729, %v1871
      %v1904 = vmul.f32 %v1731, %v1872
      %v1905 = vmul.f32 %v1733, %v1873
      %v1906 = vmul.f32 %v1735, %v1874
      %v1907 = vmul.f32 %v1737, %v1875
      %v1908 = vmul.f32 %v1739, %v1876
      %v1909 = vmul.f32 %v1741, %v1877
      %v1910 = vmul.f32 %v1743, %v1878
      %v1911 = vmul.f32 %v1745, %v1879
      %v1912 = vmul.f32 %v1747, %v1880
      %v1913 = vmul.f32 %v1749, %v1881
      %v1914 = vmul.f32 %v1751, %v1882
      %v1915 = vmul.f32 %v1753, %v1883
      %v1916 = vmul.f32 %v1755, %v1884
      %v1917 = vmul.f32 %v1757, %v1885
      %v1918 = vpack.c.bf16 %v1887, %v1886
      %v1919 = vpack.c.bf16 %v1889, %v1888
      %v1920 = vpack.c.bf16 %v1891, %v1890
      %v1921 = vpack.c.bf16 %v1893, %v1892
      %v1922 = vpack.c.bf16 %v1895, %v1894
      %v1923 = vpack.c.bf16 %v1897, %v1896
      %v1924 = vpack.c.bf16 %v1899, %v1898
      %v1925 = vpack.c.bf16 %v1901, %v1900
      %v1926 = vpack.c.bf16 %v1903, %v1902
      %v1927 = vpack.c.bf16 %v1905, %v1904
      %v1928 = vpack.c.bf16 %v1907, %v1906
      %v1929 = vpack.c.bf16 %v1909, %v1908
      %v1930 = vpack.c.bf16 %v1911, %v1910
      %v1931 = vpack.c.bf16 %v1913, %v1912
      %v1932 = vpack.c.bf16 %v1915, %v1914
      %v1933 = vpack.c.bf16 %v1917, %v1916
      %v1935 = vsel %vm320, %v1918, 0
      %v1938 = vsel %vm320, %v1919, 0
      %v1941 = vsel %vm320, %v1920, 0
      %v1944 = vsel %vm320, %v1921, 0
      %1946 = vmatprep.subr.bf16.mxu0 0
      %1947 = vmatpush1.bf16.msra.mxu0 %v1137
      %1948 = vmatprep.subr.bf16.mxu0 0
      %1949 = vmatpush1.bf16.msra.mxu0 %v1138
      %1950 = vmatprep.subr.bf16.mxu0 0
      %1951 = vmatpush1.bf16.msra.mxu0 %v1139
      %1952 = vmatprep.subr.bf16.mxu0 0
      %1953 = vmatpush1.bf16.msra.mxu0 %v1140
      %1954 = vmatprep.subr.bf16.mxu0 0
      %1955 = vmatpush1.bf16.msra.mxu0 0
      %1956 = vmatprep.subr.bf16.mxu0 0
      %1957 = vmatpush1.bf16.msra.mxu0 0
      %1958 = vmatprep.subr.bf16.mxu0 0
      %1959 = vmatpush1.bf16.msra.mxu0 0
      %1960 = vmatprep.subr.bf16.mxu0 0
      %1961 = vmatpush1.bf16.msra.mxu0 0
      %1962 = vmatprep.subr.bf16.mxu0 0
      %1963 = vmatpush1.bf16.msra.mxu0 0
      %1964 = vmatprep.subr.bf16.mxu0 0
      %1965 = vmatpush1.bf16.msra.mxu0 0
      %1966 = vmatprep.subr.bf16.mxu0 0
      %1967 = vmatpush1.bf16.msra.mxu0 0
      %1968 = vmatprep.subr.bf16.mxu0 0
      %1969 = vmatpush1.bf16.msra.mxu0 0
      %1970 = vmatprep.subr.bf16.mxu0 0
      %1971 = vmatpush1.bf16.msra.mxu0 0
      %1972 = vmatprep.subr.bf16.mxu0 0
      %1973 = vmatpush1.bf16.msra.mxu0 0
      %1974 = vmatprep.subr.bf16.mxu0 0
      %1975 = vmatpush1.bf16.msra.mxu0 0
      %1976 = vmatprep.subr.bf16.mxu0 0
      %1977 = vmatpush1.bf16.msra.mxu0 0
      %1978 = vmatprep.mubr.bf16.mxu0 0
      %1979 = vmatmul.mubr.bf16.gmra.mrb[0].mxu0 %v1935
      %v1980 = vpop.f32.mrb[0].mxu0
      %v1981 = vadd.f32 0.0, %v1980
      %v1982 = vpop.f32.mrb[0].mxu0
      %v1983 = vpop.f32.mrb[0].mxu0
      %v1984 = vadd.f32 0.0, %v1983
      %v1985 = vpop.f32.mrb[0].mxu0
      %1986 = vmatprep.mubr.bf16.mxu0 0
      %1987 = vmatmul.mubr.bf16.gmra.mrb[0].mxu0 %v1938
      %v1988 = vpop.f32.mrb[0].mxu0
      %v1989 = vadd.f32 0.0, %v1988
      %v1990 = vpop.f32.mrb[0].mxu0
      %v1991 = vpop.f32.mrb[0].mxu0
      %v1992 = vadd.f32 0.0, %v1991
      %v1993 = vpop.f32.mrb[0].mxu0
      %1994 = vmatprep.mubr.bf16.mxu0 0
      %1995 = vmatmul.mubr.bf16.gmra.mrb[0].mxu0 %v1941
      %v1996 = vpop.f32.mrb[0].mxu0
      %v1997 = vadd.f32 0.0, %v1996
      %v1998 = vpop.f32.mrb[0].mxu0
      %v1999 = vpop.f32.mrb[0].mxu0
      %v2000 = vadd.f32 0.0, %v1999
      %v2001 = vpop.f32.mrb[0].mxu0
      %2002 = vmatprep.mubr.bf16.mxu0 0
      %2003 = vmatmul.mubr.bf16.gmra.mrb[0].mxu0 %v1944
      %v2004 = vpop.f32.mrb[0].mxu0
      %v2005 = vadd.f32 0.0, %v2004
      %v2006 = vpop.f32.mrb[0].mxu0
      %v2007 = vpop.f32.mrb[0].mxu0
      %v2008 = vadd.f32 0.0, %v2007
      %v2009 = vpop.f32.mrb[0].mxu0
      %2010 = vdwg.mxu0
      %v2012 = vsel %vm320, %v1922, 0
      %v2015 = vsel %vm320, %v1923, 0
      %v2018 = vsel %vm320, %v1924, 0
      %v2021 = vsel %vm320, %v1925, 0
      %2023 = vmatprep.subr.bf16.mxu0 0
      %2024 = vmatpush1.bf16.msra.mxu0 %v1141
      %2025 = vmatprep.subr.bf16.mxu0 0
      %2026 = vmatpush1.bf16.msra.mxu0 %v1142
      %2027 = vmatprep.subr.bf16.mxu0 0
      %2028 = vmatpush1.bf16.msra.mxu0 %v1143
      %2029 = vmatprep.subr.bf16.mxu0 0
      %2030 = vmatpush1.bf16.msra.mxu0 %v1144
      %2031 = vmatprep.subr.bf16.mxu0 0
      %2032 = vmatpush1.bf16.msra.mxu0 0
      %2033 = vmatprep.subr.bf16.mxu0 0
      %2034 = vmatpush1.bf16.msra.mxu0 0
      %2035 = vmatprep.subr.bf16.mxu0 0
      %2036 = vmatpush1.bf16.msra.mxu0 0
      %2037 = vmatprep.subr.bf16.mxu0 0
      %2038 = vmatpush1.bf16.msra.mxu0 0
      %2039 = vmatprep.subr.bf16.mxu0 0
      %2040 = vmatpush1.bf16.msra.mxu0 0
      %2041 = vmatprep.subr.bf16.mxu0 0
      %2042 = vmatpush1.bf16.msra.mxu0 0
      %2043 = vmatprep.subr.bf16.mxu0 0
      %2044 = vmatpush1.bf16.msra.mxu0 0
      %2045 = vmatprep.subr.bf16.mxu0 0
      %2046 = vmatpush1.bf16.msra.mxu0 0
      %2047 = vmatprep.subr.bf16.mxu0 0
      %2048 = vmatpush1.bf16.msra.mxu0 0
      %2049 = vmatprep.subr.bf16.mxu0 0
      %2050 = vmatpush1.bf16.msra.mxu0 0
      %2051 = vmatprep.subr.bf16.mxu0 0
      %2052 = vmatpush1.bf16.msra.mxu0 0
      %2053 = vmatprep.subr.bf16.mxu0 0
      %2054 = vmatpush1.bf16.msra.mxu0 0
      %2055 = vmatprep.mubr.bf16.mxu0 0
      %2056 = vmatmul.mubr.bf16.gmra.mrb[0].mxu0 %v2012
      %v2057 = vpop.f32.mrb[0].mxu0
      %v2058 = vadd.f32 0.0, %v2057
      %v2059 = vpop.f32.mrb[0].mxu0
      %v2060 = vpop.f32.mrb[0].mxu0
      %v2061 = vadd.f32 0.0, %v2060
      %v2062 = vpop.f32.mrb[0].mxu0
      %2063 = vmatprep.mubr.bf16.mxu0 0
      %2064 = vmatmul.mubr.bf16.gmra.mrb[0].mxu0 %v2015
      %v2065 = vpop.f32.mrb[0].mxu0
      %v2066 = vadd.f32 0.0, %v2065
      %v2067 = vpop.f32.mrb[0].mxu0
      %v2068 = vpop.f32.mrb[0].mxu0
      %v2069 = vadd.f32 0.0, %v2068
      %v2070 = vpop.f32.mrb[0].mxu0
      %2071 = vmatprep.mubr.bf16.mxu0 0
      %2072 = vmatmul.mubr.bf16.gmra.mrb[0].mxu0 %v2018
      %v2073 = vpop.f32.mrb[0].mxu0
      %v2074 = vadd.f32 0.0, %v2073
      %v2075 = vpop.f32.mrb[0].mxu0
      %v2076 = vpop.f32.mrb[0].mxu0
      %v2077 = vadd.f32 0.0, %v2076
      %v2078 = vpop.f32.mrb[0].mxu0
      %2079 = vmatprep.mubr.bf16.mxu0 0
      %2080 = vmatmul.mubr.bf16.gmra.mrb[0].mxu0 %v2021
      %v2081 = vpop.f32.mrb[0].mxu0
      %v2082 = vadd.f32 0.0, %v2081
      %v2083 = vpop.f32.mrb[0].mxu0
      %v2084 = vpop.f32.mrb[0].mxu0
      %v2085 = vadd.f32 0.0, %v2084
      %v2086 = vpop.f32.mrb[0].mxu0
      %2087 = vdwg.mxu0
      %v2089 = vsel %vm320, %v1926, 0
      %v2092 = vsel %vm320, %v1927, 0
      %v2095 = vsel %vm320, %v1928, 0
      %v2098 = vsel %vm320, %v1929, 0
      %2100 = vmatprep.subr.bf16.mxu0 0
      %2101 = vmatpush1.bf16.msra.mxu0 %v1145
      %2102 = vmatprep.subr.bf16.mxu0 0
      %2103 = vmatpush1.bf16.msra.mxu0 %v1146
      %2104 = vmatprep.subr.bf16.mxu0 0
      %2105 = vmatpush1.bf16.msra.mxu0 %v1147
      %2106 = vmatprep.subr.bf16.mxu0 0
      %2107 = vmatpush1.bf16.msra.mxu0 %v1148
      %2108 = vmatprep.subr.bf16.mxu0 0
      %2109 = vmatpush1.bf16.msra.mxu0 0
      %2110 = vmatprep.subr.bf16.mxu0 0
      %2111 = vmatpush1.bf16.msra.mxu0 0
      %2112 = vmatprep.subr.bf16.mxu0 0
      %2113 = vmatpush1.bf16.msra.mxu0 0
      %2114 = vmatprep.subr.bf16.mxu0 0
      %2115 = vmatpush1.bf16.msra.mxu0 0
      %2116 = vmatprep.subr.bf16.mxu0 0
      %2117 = vmatpush1.bf16.msra.mxu0 0
      %2118 = vmatprep.subr.bf16.mxu0 0
      %2119 = vmatpush1.bf16.msra.mxu0 0
      %2120 = vmatprep.subr.bf16.mxu0 0
      %2121 = vmatpush1.bf16.msra.mxu0 0
      %2122 = vmatprep.subr.bf16.mxu0 0
      %2123 = vmatpush1.bf16.msra.mxu0 0
      %2124 = vmatprep.subr.bf16.mxu0 0
      %2125 = vmatpush1.bf16.msra.mxu0 0
      %2126 = vmatprep.subr.bf16.mxu0 0
      %2127 = vmatpush1.bf16.msra.mxu0 0
      %2128 = vmatprep.subr.bf16.mxu0 0
      %2129 = vmatpush1.bf16.msra.mxu0 0
      %2130 = vmatprep.subr.bf16.mxu0 0
      %2131 = vmatpush1.bf16.msra.mxu0 0
      %2132 = vmatprep.mubr.bf16.mxu0 0
      %2133 = vmatmul.mubr.bf16.gmra.mrb[0].mxu0 %v2089
      %v2134 = vpop.f32.mrb[0].mxu0
      %v2135 = vadd.f32 0.0, %v2134
      %v2136 = vpop.f32.mrb[0].mxu0
      %v2137 = vpop.f32.mrb[0].mxu0
      %v2138 = vadd.f32 0.0, %v2137
      %v2139 = vpop.f32.mrb[0].mxu0
      %2140 = vmatprep.mubr.bf16.mxu0 0
      %2141 = vmatmul.mubr.bf16.gmra.mrb[0].mxu0 %v2092
      %v2142 = vpop.f32.mrb[0].mxu0
      %v2143 = vadd.f32 0.0, %v2142
      %v2144 = vpop.f32.mrb[0].mxu0
      %v2145 = vpop.f32.mrb[0].mxu0
      %v2146 = vadd.f32 0.0, %v2145
      %v2147 = vpop.f32.mrb[0].mxu0
      %2148 = vmatprep.mubr.bf16.mxu0 0
      %2149 = vmatmul.mubr.bf16.gmra.mrb[0].mxu0 %v2095
      %v2150 = vpop.f32.mrb[0].mxu0
      %v2151 = vadd.f32 0.0, %v2150
      %v2152 = vpop.f32.mrb[0].mxu0
      %v2153 = vpop.f32.mrb[0].mxu0
      %v2154 = vadd.f32 0.0, %v2153
      %v2155 = vpop.f32.mrb[0].mxu0
      %2156 = vmatprep.mubr.bf16.mxu0 0
      %2157 = vmatmul.mubr.bf16.gmra.mrb[0].mxu0 %v2098
      %v2158 = vpop.f32.mrb[0].mxu0
      %v2159 = vadd.f32 0.0, %v2158
      %v2160 = vpop.f32.mrb[0].mxu0
      %v2161 = vpop.f32.mrb[0].mxu0
      %v2162 = vadd.f32 0.0, %v2161
      %v2163 = vpop.f32.mrb[0].mxu0
      %2164 = vdwg.mxu0
      %v2166 = vsel %vm320, %v1930, 0
      %v2169 = vsel %vm320, %v1931, 0
      %v2172 = vsel %vm320, %v1932, 0
      %v2175 = vsel %vm320, %v1933, 0
      %2177 = vmatprep.subr.bf16.mxu0 0
      %2178 = vmatpush1.bf16.msra.mxu0 %v1149
      %2179 = vmatprep.subr.bf16.mxu0 0
      %2180 = vmatpush1.bf16.msra.mxu0 %v1150
      %2181 = vmatprep.subr.bf16.mxu0 0
      %2182 = vmatpush1.bf16.msra.mxu0 %v1151
      %2183 = vmatprep.subr.bf16.mxu0 0
      %2184 = vmatpush1.bf16.msra.mxu0 %v1152
      %2185 = vmatprep.subr.bf16.mxu0 0
      %2186 = vmatpush1.bf16.msra.mxu0 0
      %2187 = vmatprep.subr.bf16.mxu0 0
      %2188 = vmatpush1.bf16.msra.mxu0 0
      %2189 = vmatprep.subr.bf16.mxu0 0
      %2190 = vmatpush1.bf16.msra.mxu0 0
      %2191 = vmatprep.subr.bf16.mxu0 0
      %2192 = vmatpush1.bf16.msra.mxu0 0
      %2193 = vmatprep.subr.bf16.mxu0 0
      %2194 = vmatpush1.bf16.msra.mxu0 0
      %2195 = vmatprep.subr.bf16.mxu0 0
      %2196 = vmatpush1.bf16.msra.mxu0 0
      %2197 = vmatprep.subr.bf16.mxu0 0
      %2198 = vmatpush1.bf16.msra.mxu0 0
      %2199 = vmatprep.subr.bf16.mxu0 0
      %2200 = vmatpush1.bf16.msra.mxu0 0
      %2201 = vmatprep.subr.bf16.mxu0 0
      %2202 = vmatpush1.bf16.msra.mxu0 0
      %2203 = vmatprep.subr.bf16.mxu0 0
      %2204 = vmatpush1.bf16.msra.mxu0 0
      %2205 = vmatprep.subr.bf16.mxu0 0
      %2206 = vmatpush1.bf16.msra.mxu0 0
      %2207 = vmatprep.subr.bf16.mxu0 0
      %2208 = vmatpush1.bf16.msra.mxu0 0
      %2209 = vmatprep.mubr.bf16.mxu0 0
      %2210 = vmatmul.mubr.bf16.gmra.mrb[0].mxu0 %v2166
      %v2211 = vpop.f32.mrb[0].mxu0
      %v2212 = vadd.f32 0.0, %v2211
      %v2213 = vpop.f32.mrb[0].mxu0
      %v2214 = vpop.f32.mrb[0].mxu0
      %v2215 = vadd.f32 0.0, %v2214
      %v2216 = vpop.f32.mrb[0].mxu0
      %2217 = vmatprep.mubr.bf16.mxu0 0
      %2218 = vmatmul.mubr.bf16.gmra.mrb[0].mxu0 %v2169
      %v2219 = vpop.f32.mrb[0].mxu0
      %v2220 = vadd.f32 0.0, %v2219
      %v2221 = vpop.f32.mrb[0].mxu0
      %v2222 = vpop.f32.mrb[0].mxu0
      %v2223 = vadd.f32 0.0, %v2222
      %v2224 = vpop.f32.mrb[0].mxu0
      %2225 = vmatprep.mubr.bf16.mxu0 0
      %2226 = vmatmul.mubr.bf16.gmra.mrb[0].mxu0 %v2172
      %v2227 = vpop.f32.mrb[0].mxu0
      %v2228 = vadd.f32 0.0, %v2227
      %v2229 = vpop.f32.mrb[0].mxu0
      %v2230 = vpop.f32.mrb[0].mxu0
      %v2231 = vadd.f32 0.0, %v2230
      %v2232 = vpop.f32.mrb[0].mxu0
      %2233 = vmatprep.mubr.bf16.mxu0 0
      %2234 = vmatmul.mubr.bf16.gmra.mrb[0].mxu0 %v2175
      %v2235 = vpop.f32.mrb[0].mxu0
      %v2236 = vadd.f32 0.0, %v2235
      %v2237 = vpop.f32.mrb[0].mxu0
      %v2238 = vpop.f32.mrb[0].mxu0
      %v2239 = vadd.f32 0.0, %v2238
      %v2240 = vpop.f32.mrb[0].mxu0
      %2241 = vdwg.mxu0
      %v2242 = vpack.c.bf16 %v1984, %v1981
      %v2243 = vpack.c.bf16 %v1992, %v1989
      %v2244 = vpack.c.bf16 %v2000, %v1997
      %v2245 = vpack.c.bf16 %v2008, %v2005
      %v2246 = vpack.c.bf16 %v2061, %v2058
      %v2247 = vpack.c.bf16 %v2069, %v2066
      %v2248 = vpack.c.bf16 %v2077, %v2074
      %v2249 = vpack.c.bf16 %v2085, %v2082
      %v2250 = vpack.c.bf16 %v2138, %v2135
      %v2251 = vpack.c.bf16 %v2146, %v2143
      %v2252 = vpack.c.bf16 %v2154, %v2151
      %v2253 = vpack.c.bf16 %v2162, %v2159
      %v2254 = vpack.c.bf16 %v2215, %v2212
      %v2255 = vpack.c.bf16 %v2223, %v2220
      %v2256 = vpack.c.bf16 %v2231, %v2228
      %v2257 = vpack.c.bf16 %v2239, %v2236
      %v2258 = vld [vmem:[%s4] sm:$0xf]
      %v2259 = vld [vmem:[%s4 + $0x4] sm:$0xf]
      %v2260 = vld [vmem:[%s4 + $0x8] sm:$0xf]
      %v2261 = vld [vmem:[%s4 + $0xc] sm:$0xf]
      %2262 = vrot.lane.b32.xlu0 %v1121, 96
      %v2263 = vpop.permute.xlu0 %2262
      %2264 = vrot.lane.b32.xlu0 %v1122, 96
      %v2265 = vpop.permute.xlu0 %2264
      %2266 = vrot.lane.b32.xlu0 %v1123, 96
      %v2267 = vpop.permute.xlu0 %2266
      %2268 = vrot.lane.b32.xlu0 %v1124, 96
      %v2269 = vpop.permute.xlu0 %2268
      %2270 = vrot.lane.b32.xlu0 %v1121, 32
      %v2271 = vpop.permute.xlu0 %2270
      %2272 = vrot.lane.b32.xlu0 %v1122, 32
      %v2273 = vpop.permute.xlu0 %2272
      %2274 = vrot.lane.b32.xlu0 %v1123, 32
      %v2275 = vpop.permute.xlu0 %2274
      %2276 = vrot.lane.b32.xlu0 %v1124, 32
      %v2277 = vpop.permute.xlu0 %2276
      %v2279 = vsel %vm1173, %v2263, 0
      %v2282 = vsel %vm1173, %v2265, 0
      %v2285 = vsel %vm1173, %v2267, 0
      %v2288 = vsel %vm1173, %v2269, 0
      %v2291 = vsel %vm1173, %v2271, 0
      %v2294 = vsel %vm1173, %v2273, 0
      %v2297 = vsel %vm1173, %v2275, 0
      %v2300 = vsel %vm1173, %v2277, 0
      %2302 = vmatprep.subr.bf16.mxu0 0
      %2303 = vmatpush1.bf16.xpose.msra.mxu0 %v2291
      %2304 = vmatprep.subr.bf16.mxu0 0
      %2305 = vmatpush1.bf16.xpose.msra.mxu0 %v2294
      %2306 = vmatprep.subr.bf16.mxu0 0
      %2307 = vmatpush1.bf16.xpose.msra.mxu0 %v2297
      %2308 = vmatprep.subr.bf16.mxu0 0
      %2309 = vmatpush1.bf16.xpose.msra.mxu0 %v2300
      %2310 = vmatprep.subr.bf16.mxu0 0
      %2311 = vmatpush1.bf16.xpose.msra.mxu0 0
      %2312 = vmatprep.subr.bf16.mxu0 0
      %2313 = vmatpush1.bf16.xpose.msra.mxu0 0
      %2314 = vmatprep.subr.bf16.mxu0 0
      %2315 = vmatpush1.bf16.xpose.msra.mxu0 0
      %2316 = vmatprep.subr.bf16.mxu0 0
      %2317 = vmatpush1.bf16.xpose.msra.mxu0 0
      %2318 = vmatprep.subr.bf16.mxu0 0
      %2319 = vmatpush1.bf16.xpose.msra.mxu0 0
      %2320 = vmatprep.subr.bf16.mxu0 0
      %2321 = vmatpush1.bf16.xpose.msra.mxu0 0
      %2322 = vmatprep.subr.bf16.mxu0 0
      %2323 = vmatpush1.bf16.xpose.msra.mxu0 0
      %2324 = vmatprep.subr.bf16.mxu0 0
      %2325 = vmatpush1.bf16.xpose.msra.mxu0 0
      %2326 = vmatprep.subr.bf16.mxu0 0
      %2327 = vmatpush1.bf16.xpose.msra.mxu0 0
      %2328 = vmatprep.subr.bf16.mxu0 0
      %2329 = vmatpush1.bf16.xpose.msra.mxu0 0
      %2330 = vmatprep.subr.bf16.mxu0 0
      %2331 = vmatpush1.bf16.xpose.msra.mxu0 0
      %2332 = vmatprep.subr.bf16.mxu0 0
      %2333 = vmatpush1.bf16.xpose.msra.mxu0 0
      %2334 = vmatprep.mubr.bf16.mxu0 0
      %2335 = vmatmul.mubr.bf16.gmra.mrb[0].mxu0 %v2279
      %v2336 = vpop.f32.mrb[0].mxu0
      %v2337 = vadd.f32 %v1153, %v2336
      %v2338 = vpop.f32.mrb[0].mxu0
      %v2339 = vpop.f32.mrb[0].mxu0
      %v2340 = vadd.f32 %v1154, %v2339
      %v2341 = vpop.f32.mrb[0].mxu0
      %2342 = vmatprep.mubr.bf16.mxu0 0
      %2343 = vmatmul.mubr.bf16.gmra.mrb[0].mxu0 %v2282
      %v2344 = vpop.f32.mrb[0].mxu0
      %v2345 = vadd.f32 %v1155, %v2344
      %v2346 = vpop.f32.mrb[0].mxu0
      %v2347 = vpop.f32.mrb[0].mxu0
      %v2348 = vadd.f32 %v1156, %v2347
      %v2349 = vpop.f32.mrb[0].mxu0
      %2350 = vmatprep.mubr.bf16.mxu0 0
      %2351 = vmatmul.mubr.bf16.gmra.mrb[0].mxu0 %v2285
      %v2352 = vpop.f32.mrb[0].mxu0
      %v2353 = vadd.f32 %v1157, %v2352
      %v2354 = vpop.f32.mrb[0].mxu0
      %v2355 = vpop.f32.mrb[0].mxu0
      %v2356 = vadd.f32 %v1158, %v2355
      %v2357 = vpop.f32.mrb[0].mxu0
      %2358 = vmatprep.mubr.bf16.mxu0 0
      %2359 = vmatmul.mubr.bf16.gmra.mrb[0].mxu0 %v2288
      %v2360 = vpop.f32.mrb[0].mxu0
      %v2361 = vadd.f32 %v1159, %v2360
      %v2362 = vpop.f32.mrb[0].mxu0
      %v2363 = vpop.f32.mrb[0].mxu0
      %v2364 = vadd.f32 %v1160, %v2363
      %v2365 = vpop.f32.mrb[0].mxu0
      %2366 = vdwg.mxu0
      %2367 = vrot.lane.b32.xlu0 %v1125, 96
      %v2368 = vpop.permute.xlu0 %2367
      %2369 = vrot.lane.b32.xlu0 %v1126, 96
      %v2370 = vpop.permute.xlu0 %2369
      %2371 = vrot.lane.b32.xlu0 %v1127, 96
      %v2372 = vpop.permute.xlu0 %2371
      %2373 = vrot.lane.b32.xlu0 %v1128, 96
      %v2374 = vpop.permute.xlu0 %2373
      %2375 = vrot.lane.b32.xlu0 %v1125, 32
      %v2376 = vpop.permute.xlu0 %2375
      %2377 = vrot.lane.b32.xlu0 %v1126, 32
      %v2378 = vpop.permute.xlu0 %2377
      %2379 = vrot.lane.b32.xlu0 %v1127, 32
      %v2380 = vpop.permute.xlu0 %2379
      %2381 = vrot.lane.b32.xlu0 %v1128, 32
      %v2382 = vpop.permute.xlu0 %2381
      %v2384 = vsel %vm1173, %v2368, 0
      %v2387 = vsel %vm1173, %v2370, 0
      %v2390 = vsel %vm1173, %v2372, 0
      %v2393 = vsel %vm1173, %v2374, 0
      %v2396 = vsel %vm1173, %v2376, 0
      %v2399 = vsel %vm1173, %v2378, 0
      %v2402 = vsel %vm1173, %v2380, 0
      %v2405 = vsel %vm1173, %v2382, 0
      %2407 = vmatprep.subr.bf16.mxu0 0
      %2408 = vmatpush1.bf16.xpose.msra.mxu0 %v2396
      %2409 = vmatprep.subr.bf16.mxu0 0
      %2410 = vmatpush1.bf16.xpose.msra.mxu0 %v2399
      %2411 = vmatprep.subr.bf16.mxu0 0
      %2412 = vmatpush1.bf16.xpose.msra.mxu0 %v2402
      %2413 = vmatprep.subr.bf16.mxu0 0
      %2414 = vmatpush1.bf16.xpose.msra.mxu0 %v2405
      %2415 = vmatprep.subr.bf16.mxu0 0
      %2416 = vmatpush1.bf16.xpose.msra.mxu0 0
      %2417 = vmatprep.subr.bf16.mxu0 0
      %2418 = vmatpush1.bf16.xpose.msra.mxu0 0
      %2419 = vmatprep.subr.bf16.mxu0 0
      %2420 = vmatpush1.bf16.xpose.msra.mxu0 0
      %2421 = vmatprep.subr.bf16.mxu0 0
      %2422 = vmatpush1.bf16.xpose.msra.mxu0 0
      %2423 = vmatprep.subr.bf16.mxu0 0
      %2424 = vmatpush1.bf16.xpose.msra.mxu0 0
      %2425 = vmatprep.subr.bf16.mxu0 0
      %2426 = vmatpush1.bf16.xpose.msra.mxu0 0
      %2427 = vmatprep.subr.bf16.mxu0 0
      %2428 = vmatpush1.bf16.xpose.msra.mxu0 0
      %2429 = vmatprep.subr.bf16.mxu0 0
      %2430 = vmatpush1.bf16.xpose.msra.mxu0 0
      %2431 = vmatprep.subr.bf16.mxu0 0
      %2432 = vmatpush1.bf16.xpose.msra.mxu0 0
      %2433 = vmatprep.subr.bf16.mxu0 0
      %2434 = vmatpush1.bf16.xpose.msra.mxu0 0
      %2435 = vmatprep.subr.bf16.mxu0 0
      %2436 = vmatpush1.bf16.xpose.msra.mxu0 0
      %2437 = vmatprep.subr.bf16.mxu0 0
      %2438 = vmatpush1.bf16.xpose.msra.mxu0 0
      %2439 = vmatprep.mubr.bf16.mxu0 0
      %2440 = vmatmul.mubr.bf16.gmra.mrb[0].mxu0 %v2384
      %v2441 = vpop.f32.mrb[0].mxu0
      %v2442 = vadd.f32 %v1153, %v2441
      %v2443 = vpop.f32.mrb[0].mxu0
      %v2444 = vpop.f32.mrb[0].mxu0
      %v2445 = vadd.f32 %v1154, %v2444
      %v2446 = vpop.f32.mrb[0].mxu0
      %2447 = vmatprep.mubr.bf16.mxu0 0
      %2448 = vmatmul.mubr.bf16.gmra.mrb[0].mxu0 %v2387
      %v2449 = vpop.f32.mrb[0].mxu0
      %v2450 = vadd.f32 %v1155, %v2449
      %v2451 = vpop.f32.mrb[0].mxu0
      %v2452 = vpop.f32.mrb[0].mxu0
      %v2453 = vadd.f32 %v1156, %v2452
      %v2454 = vpop.f32.mrb[0].mxu0
      %2455 = vmatprep.mubr.bf16.mxu0 0
      %2456 = vmatmul.mubr.bf16.gmra.mrb[0].mxu0 %v2390
      %v2457 = vpop.f32.mrb[0].mxu0
      %v2458 = vadd.f32 %v1157, %v2457
      %v2459 = vpop.f32.mrb[0].mxu0
      %v2460 = vpop.f32.mrb[0].mxu0
      %v2461 = vadd.f32 %v1158, %v2460
      %v2462 = vpop.f32.mrb[0].mxu0
      %2463 = vmatprep.mubr.bf16.mxu0 0
      %2464 = vmatmul.mubr.bf16.gmra.mrb[0].mxu0 %v2393
      %v2465 = vpop.f32.mrb[0].mxu0
      %v2466 = vadd.f32 %v1159, %v2465
      %v2467 = vpop.f32.mrb[0].mxu0
      %v2468 = vpop.f32.mrb[0].mxu0
      %v2469 = vadd.f32 %v1160, %v2468
      %v2470 = vpop.f32.mrb[0].mxu0
      %2471 = vdwg.mxu0
      %2472 = vrot.lane.b32.xlu0 %v1129, 96
      %v2473 = vpop.permute.xlu0 %2472
      %2474 = vrot.lane.b32.xlu0 %v1130, 96
      %v2475 = vpop.permute.xlu0 %2474
      %2476 = vrot.lane.b32.xlu0 %v1131, 96
      %v2477 = vpop.permute.xlu0 %2476
      %2478 = vrot.lane.b32.xlu0 %v1132, 96
      %v2479 = vpop.permute.xlu0 %2478
      %2480 = vrot.lane.b32.xlu0 %v1129, 32
      %v2481 = vpop.permute.xlu0 %2480
      %2482 = vrot.lane.b32.xlu0 %v1130, 32
      %v2483 = vpop.permute.xlu0 %2482
      %2484 = vrot.lane.b32.xlu0 %v1131, 32
      %v2485 = vpop.permute.xlu0 %2484
      %2486 = vrot.lane.b32.xlu0 %v1132, 32
      %v2487 = vpop.permute.xlu0 %2486
      %v2489 = vsel %vm1173, %v2473, 0
      %v2492 = vsel %vm1173, %v2475, 0
      %v2495 = vsel %vm1173, %v2477, 0
      %v2498 = vsel %vm1173, %v2479, 0
      %v2501 = vsel %vm1173, %v2481, 0
      %v2504 = vsel %vm1173, %v2483, 0
      %v2507 = vsel %vm1173, %v2485, 0
      %v2510 = vsel %vm1173, %v2487, 0
      %2512 = vmatprep.subr.bf16.mxu0 0
      %2513 = vmatpush1.bf16.xpose.msra.mxu0 %v2501
      %2514 = vmatprep.subr.bf16.mxu0 0
      %2515 = vmatpush1.bf16.xpose.msra.mxu0 %v2504
      %2516 = vmatprep.subr.bf16.mxu0 0
      %2517 = vmatpush1.bf16.xpose.msra.mxu0 %v2507
      %2518 = vmatprep.subr.bf16.mxu0 0
      %2519 = vmatpush1.bf16.xpose.msra.mxu0 %v2510
      %2520 = vmatprep.subr.bf16.mxu0 0
      %2521 = vmatpush1.bf16.xpose.msra.mxu0 0
      %2522 = vmatprep.subr.bf16.mxu0 0
      %2523 = vmatpush1.bf16.xpose.msra.mxu0 0
      %2524 = vmatprep.subr.bf16.mxu0 0
      %2525 = vmatpush1.bf16.xpose.msra.mxu0 0
      %2526 = vmatprep.subr.bf16.mxu0 0
      %2527 = vmatpush1.bf16.xpose.msra.mxu0 0
      %2528 = vmatprep.subr.bf16.mxu0 0
      %2529 = vmatpush1.bf16.xpose.msra.mxu0 0
      %2530 = vmatprep.subr.bf16.mxu0 0
      %2531 = vmatpush1.bf16.xpose.msra.mxu0 0
      %2532 = vmatprep.subr.bf16.mxu0 0
      %2533 = vmatpush1.bf16.xpose.msra.mxu0 0
      %2534 = vmatprep.subr.bf16.mxu0 0
      %2535 = vmatpush1.bf16.xpose.msra.mxu0 0
      %2536 = vmatprep.subr.bf16.mxu0 0
      %2537 = vmatpush1.bf16.xpose.msra.mxu0 0
      %2538 = vmatprep.subr.bf16.mxu0 0
      %2539 = vmatpush1.bf16.xpose.msra.mxu0 0
      %2540 = vmatprep.subr.bf16.mxu0 0
      %2541 = vmatpush1.bf16.xpose.msra.mxu0 0
      %2542 = vmatprep.subr.bf16.mxu0 0
      %2543 = vmatpush1.bf16.xpose.msra.mxu0 0
      %2544 = vmatprep.mubr.bf16.mxu0 0
      %2545 = vmatmul.mubr.bf16.gmra.mrb[0].mxu0 %v2489
      %v2546 = vpop.f32.mrb[0].mxu0
      %v2547 = vadd.f32 %v1153, %v2546
      %v2548 = vpop.f32.mrb[0].mxu0
      %v2549 = vpop.f32.mrb[0].mxu0
      %v2550 = vadd.f32 %v1154, %v2549
      %v2551 = vpop.f32.mrb[0].mxu0
      %2552 = vmatprep.mubr.bf16.mxu0 0
      %2553 = vmatmul.mubr.bf16.gmra.mrb[0].mxu0 %v2492
      %v2554 = vpop.f32.mrb[0].mxu0
      %v2555 = vadd.f32 %v1155, %v2554
      %v2556 = vpop.f32.mrb[0].mxu0
      %v2557 = vpop.f32.mrb[0].mxu0
      %v2558 = vadd.f32 %v1156, %v2557
      %v2559 = vpop.f32.mrb[0].mxu0
      %2560 = vmatprep.mubr.bf16.mxu0 0
      %2561 = vmatmul.mubr.bf16.gmra.mrb[0].mxu0 %v2495
      %v2562 = vpop.f32.mrb[0].mxu0
      %v2563 = vadd.f32 %v1157, %v2562
      %v2564 = vpop.f32.mrb[0].mxu0
      %v2565 = vpop.f32.mrb[0].mxu0
      %v2566 = vadd.f32 %v1158, %v2565
      %v2567 = vpop.f32.mrb[0].mxu0
      %2568 = vmatprep.mubr.bf16.mxu0 0
      %2569 = vmatmul.mubr.bf16.gmra.mrb[0].mxu0 %v2498
      %v2570 = vpop.f32.mrb[0].mxu0
      %v2571 = vadd.f32 %v1159, %v2570
      %v2572 = vpop.f32.mrb[0].mxu0
      %v2573 = vpop.f32.mrb[0].mxu0
      %v2574 = vadd.f32 %v1160, %v2573
      %v2575 = vpop.f32.mrb[0].mxu0
      %2576 = vdwg.mxu0
      %2577 = vrot.lane.b32.xlu0 %v1133, 96
      %v2578 = vpop.permute.xlu0 %2577
      %2579 = vrot.lane.b32.xlu0 %v1134, 96
      %v2580 = vpop.permute.xlu0 %2579
      %2581 = vrot.lane.b32.xlu0 %v1135, 96
      %v2582 = vpop.permute.xlu0 %2581
      %2583 = vrot.lane.b32.xlu0 %v1136, 96
      %v2584 = vpop.permute.xlu0 %2583
      %2585 = vrot.lane.b32.xlu0 %v1133, 32
      %v2586 = vpop.permute.xlu0 %2585
      %2587 = vrot.lane.b32.xlu0 %v1134, 32
      %v2588 = vpop.permute.xlu0 %2587
      %2589 = vrot.lane.b32.xlu0 %v1135, 32
      %v2590 = vpop.permute.xlu0 %2589
      %2591 = vrot.lane.b32.xlu0 %v1136, 32
      %v2592 = vpop.permute.xlu0 %2591
      %v2594 = vsel %vm1173, %v2578, 0
      %v2597 = vsel %vm1173, %v2580, 0
      %v2600 = vsel %vm1173, %v2582, 0
      %v2603 = vsel %vm1173, %v2584, 0
      %v2606 = vsel %vm1173, %v2586, 0
      %v2609 = vsel %vm1173, %v2588, 0
      %v2612 = vsel %vm1173, %v2590, 0
      %v2615 = vsel %vm1173, %v2592, 0
      %2617 = vmatprep.subr.bf16.mxu0 0
      %2618 = vmatpush1.bf16.xpose.msra.mxu0 %v2606
      %2619 = vmatprep.subr.bf16.mxu0 0
      %2620 = vmatpush1.bf16.xpose.msra.mxu0 %v2609
      %2621 = vmatprep.subr.bf16.mxu0 0
      %2622 = vmatpush1.bf16.xpose.msra.mxu0 %v2612
      %2623 = vmatprep.subr.bf16.mxu0 0
      %2624 = vmatpush1.bf16.xpose.msra.mxu0 %v2615
      %2625 = vmatprep.subr.bf16.mxu0 0
      %2626 = vmatpush1.bf16.xpose.msra.mxu0 0
      %2627 = vmatprep.subr.bf16.mxu0 0
      %2628 = vmatpush1.bf16.xpose.msra.mxu0 0
      %2629 = vmatprep.subr.bf16.mxu0 0
      %2630 = vmatpush1.bf16.xpose.msra.mxu0 0
      %2631 = vmatprep.subr.bf16.mxu0 0
      %2632 = vmatpush1.bf16.xpose.msra.mxu0 0
      %2633 = vmatprep.subr.bf16.mxu0 0
      %2634 = vmatpush1.bf16.xpose.msra.mxu0 0
      %2635 = vmatprep.subr.bf16.mxu0 0
      %2636 = vmatpush1.bf16.xpose.msra.mxu0 0
      %2637 = vmatprep.subr.bf16.mxu0 0
      %2638 = vmatpush1.bf16.xpose.msra.mxu0 0
      %2639 = vmatprep.subr.bf16.mxu0 0
      %2640 = vmatpush1.bf16.xpose.msra.mxu0 0
      %2641 = vmatprep.subr.bf16.mxu0 0
      %2642 = vmatpush1.bf16.xpose.msra.mxu0 0
      %2643 = vmatprep.subr.bf16.mxu0 0
      %2644 = vmatpush1.bf16.xpose.msra.mxu0 0
      %2645 = vmatprep.subr.bf16.mxu0 0
      %2646 = vmatpush1.bf16.xpose.msra.mxu0 0
      %2647 = vmatprep.subr.bf16.mxu0 0
      %2648 = vmatpush1.bf16.xpose.msra.mxu0 0
      %2649 = vmatprep.mubr.bf16.mxu0 0
      %2650 = vmatmul.mubr.bf16.gmra.mrb[0].mxu0 %v2594
      %v2651 = vpop.f32.mrb[0].mxu0
      %v2652 = vadd.f32 %v1153, %v2651
      %v2653 = vpop.f32.mrb[0].mxu0
      %v2654 = vpop.f32.mrb[0].mxu0
      %v2655 = vadd.f32 %v1154, %v2654
      %v2656 = vpop.f32.mrb[0].mxu0
      %2657 = vmatprep.mubr.bf16.mxu0 0
      %2658 = vmatmul.mubr.bf16.gmra.mrb[0].mxu0 %v2597
      %v2659 = vpop.f32.mrb[0].mxu0
      %v2660 = vadd.f32 %v1155, %v2659
      %v2661 = vpop.f32.mrb[0].mxu0
      %v2662 = vpop.f32.mrb[0].mxu0
      %v2663 = vadd.f32 %v1156, %v2662
      %v2664 = vpop.f32.mrb[0].mxu0
      %2665 = vmatprep.mubr.bf16.mxu0 0
      %2666 = vmatmul.mubr.bf16.gmra.mrb[0].mxu0 %v2600
      %v2667 = vpop.f32.mrb[0].mxu0
      %v2668 = vadd.f32 %v1157, %v2667
      %v2669 = vpop.f32.mrb[0].mxu0
      %v2670 = vpop.f32.mrb[0].mxu0
      %v2671 = vadd.f32 %v1158, %v2670
      %v2672 = vpop.f32.mrb[0].mxu0
      %2673 = vmatprep.mubr.bf16.mxu0 0
      %2674 = vmatmul.mubr.bf16.gmra.mrb[0].mxu0 %v2603
      %v2675 = vpop.f32.mrb[0].mxu0
      %v2676 = vadd.f32 %v1159, %v2675
      %v2677 = vpop.f32.mrb[0].mxu0
      %v2678 = vpop.f32.mrb[0].mxu0
      %v2679 = vadd.f32 %v1160, %v2678
      %v2680 = vpop.f32.mrb[0].mxu0
      %2681 = vdwg.mxu0
      %v2682 = vsel %vm320, %v2337, -inf
      %2683 = vmax.xlane.f32.xlu0 %v2682
      %v2684 = vpop.xlane.xlu0 %2683
      %v2685 = vsel %vm320, %v2340, -inf
      %2686 = vmax.xlane.f32.xlu0 %v2685
      %v2687 = vpop.xlane.xlu0 %2686
      %v2688 = vsel %vm320, %v2345, -inf
      %2689 = vmax.xlane.f32.xlu0 %v2688
      %v2690 = vpop.xlane.xlu0 %2689
      %v2691 = vsel %vm320, %v2348, -inf
      %2692 = vmax.xlane.f32.xlu0 %v2691
      %v2693 = vpop.xlane.xlu0 %2692
      %v2694 = vsel %vm320, %v2353, -inf
      %2695 = vmax.xlane.f32.xlu0 %v2694
      %v2696 = vpop.xlane.xlu0 %2695
      %v2697 = vsel %vm320, %v2356, -inf
      %2698 = vmax.xlane.f32.xlu0 %v2697
      %v2699 = vpop.xlane.xlu0 %2698
      %v2700 = vsel %vm320, %v2361, -inf
      %2701 = vmax.xlane.f32.xlu0 %v2700
      %v2702 = vpop.xlane.xlu0 %2701
      %v2703 = vsel %vm320, %v2364, -inf
      %2704 = vmax.xlane.f32.xlu0 %v2703
      %v2705 = vpop.xlane.xlu0 %2704
      %v2706 = vsel %vm320, %v2442, -inf
      %2707 = vmax.xlane.f32.xlu0 %v2706
      %v2708 = vpop.xlane.xlu0 %2707
      %v2709 = vsel %vm320, %v2445, -inf
      %2710 = vmax.xlane.f32.xlu0 %v2709
      %v2711 = vpop.xlane.xlu0 %2710
      %v2712 = vsel %vm320, %v2450, -inf
      %2713 = vmax.xlane.f32.xlu0 %v2712
      %v2714 = vpop.xlane.xlu0 %2713
      %v2715 = vsel %vm320, %v2453, -inf
      %2716 = vmax.xlane.f32.xlu0 %v2715
      %v2717 = vpop.xlane.xlu0 %2716
      %v2718 = vsel %vm320, %v2458, -inf
      %2719 = vmax.xlane.f32.xlu0 %v2718
      %v2720 = vpop.xlane.xlu0 %2719
      %v2721 = vsel %vm320, %v2461, -inf
      %2722 = vmax.xlane.f32.xlu0 %v2721
      %v2723 = vpop.xlane.xlu0 %2722
      %v2724 = vsel %vm320, %v2466, -inf
      %2725 = vmax.xlane.f32.xlu0 %v2724
      %v2726 = vpop.xlane.xlu0 %2725
      %v2727 = vsel %vm320, %v2469, -inf
      %2728 = vmax.xlane.f32.xlu0 %v2727
      %v2729 = vpop.xlane.xlu0 %2728
      %v2730 = vsel %vm320, %v2547, -inf
      %2731 = vmax.xlane.f32.xlu0 %v2730
      %v2732 = vpop.xlane.xlu0 %2731
      %v2733 = vsel %vm320, %v2550, -inf
      %2734 = vmax.xlane.f32.xlu0 %v2733
      %v2735 = vpop.xlane.xlu0 %2734
      %v2736 = vsel %vm320, %v2555, -inf
      %2737 = vmax.xlane.f32.xlu0 %v2736
      %v2738 = vpop.xlane.xlu0 %2737
      %v2739 = vsel %vm320, %v2558, -inf
      %2740 = vmax.xlane.f32.xlu0 %v2739
      %v2741 = vpop.xlane.xlu0 %2740
      %v2742 = vsel %vm320, %v2563, -inf
      %2743 = vmax.xlane.f32.xlu0 %v2742
      %v2744 = vpop.xlane.xlu0 %2743
      %v2745 = vsel %vm320, %v2566, -inf
      %2746 = vmax.xlane.f32.xlu0 %v2745
      %v2747 = vpop.xlane.xlu0 %2746
      %v2748 = vsel %vm320, %v2571, -inf
      %2749 = vmax.xlane.f32.xlu0 %v2748
      %v2750 = vpop.xlane.xlu0 %2749
      %v2751 = vsel %vm320, %v2574, -inf
      %2752 = vmax.xlane.f32.xlu0 %v2751
      %v2753 = vpop.xlane.xlu0 %2752
      %v2754 = vsel %vm320, %v2652, -inf
      %2755 = vmax.xlane.f32.xlu0 %v2754
      %v2756 = vpop.xlane.xlu0 %2755
      %v2757 = vsel %vm320, %v2655, -inf
      %2758 = vmax.xlane.f32.xlu0 %v2757
      %v2759 = vpop.xlane.xlu0 %2758
      %v2760 = vsel %vm320, %v2660, -inf
      %2761 = vmax.xlane.f32.xlu0 %v2760
      %v2762 = vpop.xlane.xlu0 %2761
      %v2763 = vsel %vm320, %v2663, -inf
      %2764 = vmax.xlane.f32.xlu0 %v2763
      %v2765 = vpop.xlane.xlu0 %2764
      %v2766 = vsel %vm320, %v2668, -inf
      %2767 = vmax.xlane.f32.xlu0 %v2766
      %v2768 = vpop.xlane.xlu0 %2767
      %v2769 = vsel %vm320, %v2671, -inf
      %2770 = vmax.xlane.f32.xlu0 %v2769
      %v2771 = vpop.xlane.xlu0 %2770
      %v2772 = vsel %vm320, %v2676, -inf
      %2773 = vmax.xlane.f32.xlu0 %v2772
      %v2774 = vpop.xlane.xlu0 %2773
      %v2775 = vsel %vm320, %v2679, -inf
      %2776 = vmax.xlane.f32.xlu0 %v2775
      %v2777 = vpop.xlane.xlu0 %2776
      %v2778 = vsub.f32 %v2337, %v2684
      %v2779 = vsub.f32 %v2340, %v2687
      %v2780 = vsub.f32 %v2345, %v2690
      %v2781 = vsub.f32 %v2348, %v2693
      %v2782 = vsub.f32 %v2353, %v2696
      %v2783 = vsub.f32 %v2356, %v2699
      %v2784 = vsub.f32 %v2361, %v2702
      %v2785 = vsub.f32 %v2364, %v2705
      %v2786 = vsub.f32 %v2442, %v2708
      %v2787 = vsub.f32 %v2445, %v2711
      %v2788 = vsub.f32 %v2450, %v2714
      %v2789 = vsub.f32 %v2453, %v2717
      %v2790 = vsub.f32 %v2458, %v2720
      %v2791 = vsub.f32 %v2461, %v2723
      %v2792 = vsub.f32 %v2466, %v2726
      %v2793 = vsub.f32 %v2469, %v2729
      %v2794 = vsub.f32 %v2547, %v2732
      %v2795 = vsub.f32 %v2550, %v2735
      %v2796 = vsub.f32 %v2555, %v2738
      %v2797 = vsub.f32 %v2558, %v2741
      %v2798 = vsub.f32 %v2563, %v2744
      %v2799 = vsub.f32 %v2566, %v2747
      %v2800 = vsub.f32 %v2571, %v2750
      %v2801 = vsub.f32 %v2574, %v2753
      %v2802 = vsub.f32 %v2652, %v2756
      %v2803 = vsub.f32 %v2655, %v2759
      %v2804 = vsub.f32 %v2660, %v2762
      %v2805 = vsub.f32 %v2663, %v2765
      %v2806 = vsub.f32 %v2668, %v2768
      %v2807 = vsub.f32 %v2671, %v2771
      %v2808 = vsub.f32 %v2676, %v2774
      %v2809 = vsub.f32 %v2679, %v2777
      %v2810 = vmul.f32 %v2778, 1.442695
      %v2811 = vpow.pop %v2810
      %v2812 = vmul.f32 %v2779, 1.442695
      %v2813 = vpow.pop %v2812
      %v2814 = vmul.f32 %v2780, 1.442695
      %v2815 = vpow.pop %v2814
      %v2816 = vmul.f32 %v2781, 1.442695
      %v2817 = vpow.pop %v2816
      %v2818 = vmul.f32 %v2782, 1.442695
      %v2819 = vpow.pop %v2818
      %v2820 = vmul.f32 %v2783, 1.442695
      %v2821 = vpow.pop %v2820
      %v2822 = vmul.f32 %v2784, 1.442695
      %v2823 = vpow.pop %v2822
      %v2824 = vmul.f32 %v2785, 1.442695
      %v2825 = vpow.pop %v2824
      %v2826 = vmul.f32 %v2786, 1.442695
      %v2827 = vpow.pop %v2826
      %v2828 = vmul.f32 %v2787, 1.442695
      %v2829 = vpow.pop %v2828
      %v2830 = vmul.f32 %v2788, 1.442695
      %v2831 = vpow.pop %v2830
      %v2832 = vmul.f32 %v2789, 1.442695
      %v2833 = vpow.pop %v2832
      %v2834 = vmul.f32 %v2790, 1.442695
      %v2835 = vpow.pop %v2834
      %v2836 = vmul.f32 %v2791, 1.442695
      %v2837 = vpow.pop %v2836
      %v2838 = vmul.f32 %v2792, 1.442695
      %v2839 = vpow.pop %v2838
      %v2840 = vmul.f32 %v2793, 1.442695
      %v2841 = vpow.pop %v2840
      %v2842 = vmul.f32 %v2794, 1.442695
      %v2843 = vpow.pop %v2842
      %v2844 = vmul.f32 %v2795, 1.442695
      %v2845 = vpow.pop %v2844
      %v2846 = vmul.f32 %v2796, 1.442695
      %v2847 = vpow.pop %v2846
      %v2848 = vmul.f32 %v2797, 1.442695
      %v2849 = vpow.pop %v2848
      %v2850 = vmul.f32 %v2798, 1.442695
      %v2851 = vpow.pop %v2850
      %v2852 = vmul.f32 %v2799, 1.442695
      %v2853 = vpow.pop %v2852
      %v2854 = vmul.f32 %v2800, 1.442695
      %v2855 = vpow.pop %v2854
      %v2856 = vmul.f32 %v2801, 1.442695
      %v2857 = vpow.pop %v2856
      %v2858 = vmul.f32 %v2802, 1.442695
      %v2859 = vpow.pop %v2858
      %v2860 = vmul.f32 %v2803, 1.442695
      %v2861 = vpow.pop %v2860
      %v2862 = vmul.f32 %v2804, 1.442695
      %v2863 = vpow.pop %v2862
      %v2864 = vmul.f32 %v2805, 1.442695
      %v2865 = vpow.pop %v2864
      %v2866 = vmul.f32 %v2806, 1.442695
      %v2867 = vpow.pop %v2866
      %v2868 = vmul.f32 %v2807, 1.442695
      %v2869 = vpow.pop %v2868
      %v2870 = vmul.f32 %v2808, 1.442695
      %v2871 = vpow.pop %v2870
      %v2872 = vmul.f32 %v2809, 1.442695
      %v2873 = vpow.pop %v2872
      %v2874 = vsel %vm320, %v2811, 0.0
      %2875 = vadd.xlane.f32.xlu0 %v2874
      %v2876 = vpop.xlane.xlu0 %2875
      %v2877 = vsel %vm320, %v2813, 0.0
      %2878 = vadd.xlane.f32.xlu0 %v2877
      %v2879 = vpop.xlane.xlu0 %2878
      %v2880 = vsel %vm320, %v2815, 0.0
      %2881 = vadd.xlane.f32.xlu0 %v2880
      %v2882 = vpop.xlane.xlu0 %2881
      %v2883 = vsel %vm320, %v2817, 0.0
      %2884 = vadd.xlane.f32.xlu0 %v2883
      %v2885 = vpop.xlane.xlu0 %2884
      %v2886 = vsel %vm320, %v2819, 0.0
      %2887 = vadd.xlane.f32.xlu0 %v2886
      %v2888 = vpop.xlane.xlu0 %2887
      %v2889 = vsel %vm320, %v2821, 0.0
      %2890 = vadd.xlane.f32.xlu0 %v2889
      %v2891 = vpop.xlane.xlu0 %2890
      %v2892 = vsel %vm320, %v2823, 0.0
      %2893 = vadd.xlane.f32.xlu0 %v2892
      %v2894 = vpop.xlane.xlu0 %2893
      %v2895 = vsel %vm320, %v2825, 0.0
      %2896 = vadd.xlane.f32.xlu0 %v2895
      %v2897 = vpop.xlane.xlu0 %2896
      %v2898 = vsel %vm320, %v2827, 0.0
      %2899 = vadd.xlane.f32.xlu0 %v2898
      %v2900 = vpop.xlane.xlu0 %2899
      %v2901 = vsel %vm320, %v2829, 0.0
      %2902 = vadd.xlane.f32.xlu0 %v2901
      %v2903 = vpop.xlane.xlu0 %2902
      %v2904 = vsel %vm320, %v2831, 0.0
      %2905 = vadd.xlane.f32.xlu0 %v2904
      %v2906 = vpop.xlane.xlu0 %2905
      %v2907 = vsel %vm320, %v2833, 0.0
      %2908 = vadd.xlane.f32.xlu0 %v2907
      %v2909 = vpop.xlane.xlu0 %2908
      %v2910 = vsel %vm320, %v2835, 0.0
      %2911 = vadd.xlane.f32.xlu0 %v2910
      %v2912 = vpop.xlane.xlu0 %2911
      %v2913 = vsel %vm320, %v2837, 0.0
      %2914 = vadd.xlane.f32.xlu0 %v2913
      %v2915 = vpop.xlane.xlu0 %2914
      %v2916 = vsel %vm320, %v2839, 0.0
      %2917 = vadd.xlane.f32.xlu0 %v2916
      %v2918 = vpop.xlane.xlu0 %2917
      %v2919 = vsel %vm320, %v2841, 0.0
      %2920 = vadd.xlane.f32.xlu0 %v2919
      %v2921 = vpop.xlane.xlu0 %2920
      %v2922 = vsel %vm320, %v2843, 0.0
      %2923 = vadd.xlane.f32.xlu0 %v2922
      %v2924 = vpop.xlane.xlu0 %2923
      %v2925 = vsel %vm320, %v2845, 0.0
      %2926 = vadd.xlane.f32.xlu0 %v2925
      %v2927 = vpop.xlane.xlu0 %2926
      %v2928 = vsel %vm320, %v2847, 0.0
      %2929 = vadd.xlane.f32.xlu0 %v2928
      %v2930 = vpop.xlane.xlu0 %2929
      %v2931 = vsel %vm320, %v2849, 0.0
      %2932 = vadd.xlane.f32.xlu0 %v2931
      %v2933 = vpop.xlane.xlu0 %2932
      %v2934 = vsel %vm320, %v2851, 0.0
      %2935 = vadd.xlane.f32.xlu0 %v2934
      %v2936 = vpop.xlane.xlu0 %2935
      %v2937 = vsel %vm320, %v2853, 0.0
      %2938 = vadd.xlane.f32.xlu0 %v2937
      %v2939 = vpop.xlane.xlu0 %2938
      %v2940 = vsel %vm320, %v2855, 0.0
      %2941 = vadd.xlane.f32.xlu0 %v2940
      %v2942 = vpop.xlane.xlu0 %2941
      %v2943 = vsel %vm320, %v2857, 0.0
      %2944 = vadd.xlane.f32.xlu0 %v2943
      %v2945 = vpop.xlane.xlu0 %2944
      %v2946 = vsel %vm320, %v2859, 0.0
      %2947 = vadd.xlane.f32.xlu0 %v2946
      %v2948 = vpop.xlane.xlu0 %2947
      %v2949 = vsel %vm320, %v2861, 0.0
      %2950 = vadd.xlane.f32.xlu0 %v2949
      %v2951 = vpop.xlane.xlu0 %2950
      %v2952 = vsel %vm320, %v2863, 0.0
      %2953 = vadd.xlane.f32.xlu0 %v2952
      %v2954 = vpop.xlane.xlu0 %2953
      %v2955 = vsel %vm320, %v2865, 0.0
      %2956 = vadd.xlane.f32.xlu0 %v2955
      %v2957 = vpop.xlane.xlu0 %2956
      %v2958 = vsel %vm320, %v2867, 0.0
      %2959 = vadd.xlane.f32.xlu0 %v2958
      %v2960 = vpop.xlane.xlu0 %2959
      %v2961 = vsel %vm320, %v2869, 0.0
      %2962 = vadd.xlane.f32.xlu0 %v2961
      %v2963 = vpop.xlane.xlu0 %2962
      %v2964 = vsel %vm320, %v2871, 0.0
      %2965 = vadd.xlane.f32.xlu0 %v2964
      %v2966 = vpop.xlane.xlu0 %2965
      %v2967 = vsel %vm320, %v2873, 0.0
      %2968 = vadd.xlane.f32.xlu0 %v2967
      %v2969 = vpop.xlane.xlu0 %2968
      %v2970 = vrcp.pop %v2876
      %v2971 = vrcp.pop %v2879
      %v2972 = vrcp.pop %v2882
      %v2973 = vrcp.pop %v2885
      %v2974 = vrcp.pop %v2888
      %v2975 = vrcp.pop %v2891
      %v2976 = vrcp.pop %v2894
      %v2977 = vrcp.pop %v2897
      %v2978 = vrcp.pop %v2900
      %v2979 = vrcp.pop %v2903
      %v2980 = vrcp.pop %v2906
      %v2981 = vrcp.pop %v2909
      %v2982 = vrcp.pop %v2912
      %v2983 = vrcp.pop %v2915
      %v2984 = vrcp.pop %v2918
      %v2985 = vrcp.pop %v2921
      %v2986 = vrcp.pop %v2924
      %v2987 = vrcp.pop %v2927
      %v2988 = vrcp.pop %v2930
      %v2989 = vrcp.pop %v2933
      %v2990 = vrcp.pop %v2936
      %v2991 = vrcp.pop %v2939
      %v2992 = vrcp.pop %v2942
      %v2993 = vrcp.pop %v2945
      %v2994 = vrcp.pop %v2948
      %v2995 = vrcp.pop %v2951
      %v2996 = vrcp.pop %v2954
      %v2997 = vrcp.pop %v2957
      %v2998 = vrcp.pop %v2960
      %v2999 = vrcp.pop %v2963
      %v3000 = vrcp.pop %v2966
      %v3001 = vrcp.pop %v2969
      %v3002 = vmul.f32 %v2811, %v2970
      %v3003 = vmul.f32 %v2813, %v2971
      %v3004 = vmul.f32 %v2815, %v2972
      %v3005 = vmul.f32 %v2817, %v2973
      %v3006 = vmul.f32 %v2819, %v2974
      %v3007 = vmul.f32 %v2821, %v2975
      %v3008 = vmul.f32 %v2823, %v2976
      %v3009 = vmul.f32 %v2825, %v2977
      %v3010 = vmul.f32 %v2827, %v2978
      %v3011 = vmul.f32 %v2829, %v2979
      %v3012 = vmul.f32 %v2831, %v2980
      %v3013 = vmul.f32 %v2833, %v2981
      %v3014 = vmul.f32 %v2835, %v2982
      %v3015 = vmul.f32 %v2837, %v2983
      %v3016 = vmul.f32 %v2839, %v2984
      %v3017 = vmul.f32 %v2841, %v2985
      %v3018 = vmul.f32 %v2843, %v2986
      %v3019 = vmul.f32 %v2845, %v2987
      %v3020 = vmul.f32 %v2847, %v2988
      %v3021 = vmul.f32 %v2849, %v2989
      %v3022 = vmul.f32 %v2851, %v2990
      %v3023 = vmul.f32 %v2853, %v2991
      %v3024 = vmul.f32 %v2855, %v2992
      %v3025 = vmul.f32 %v2857, %v2993
      %v3026 = vmul.f32 %v2859, %v2994
      %v3027 = vmul.f32 %v2861, %v2995
      %v3028 = vmul.f32 %v2863, %v2996
      %v3029 = vmul.f32 %v2865, %v2997
      %v3030 = vmul.f32 %v2867, %v2998
      %v3031 = vmul.f32 %v2869, %v2999
      %v3032 = vmul.f32 %v2871, %v3000
      %v3033 = vmul.f32 %v2873, %v3001
      %v3034 = vpack.c.bf16 %v3003, %v3002
      %v3035 = vpack.c.bf16 %v3005, %v3004
      %v3036 = vpack.c.bf16 %v3007, %v3006
      %v3037 = vpack.c.bf16 %v3009, %v3008
      %v3038 = vpack.c.bf16 %v3011, %v3010
      %v3039 = vpack.c.bf16 %v3013, %v3012
      %v3040 = vpack.c.bf16 %v3015, %v3014
      %v3041 = vpack.c.bf16 %v3017, %v3016
      %v3042 = vpack.c.bf16 %v3019, %v3018
      %v3043 = vpack.c.bf16 %v3021, %v3020
      %v3044 = vpack.c.bf16 %v3023, %v3022
      %v3045 = vpack.c.bf16 %v3025, %v3024
      %v3046 = vpack.c.bf16 %v3027, %v3026
      %v3047 = vpack.c.bf16 %v3029, %v3028
      %v3048 = vpack.c.bf16 %v3031, %v3030
      %v3049 = vpack.c.bf16 %v3033, %v3032
      %3054 = vrot.lane.b32.xlu0 %v1137, 96
      %v3055 = vpop.permute.xlu0 %3054
      %3056 = vrot.lane.b32.xlu0 %v1138, 96
      %v3057 = vpop.permute.xlu0 %3056
      %3058 = vrot.lane.b32.xlu0 %v1139, 96
      %v3059 = vpop.permute.xlu0 %3058
      %3060 = vrot.lane.b32.xlu0 %v1140, 96
      %v3061 = vpop.permute.xlu0 %3060
      %v3067 = vsel %vm320, %v3034, 0
      %v3070 = vsel %vm320, %v3035, 0
      %v3073 = vsel %vm320, %v3036, 0
      %v3076 = vsel %vm320, %v3037, 0
      %3078 = vmatprep.subr.bf16.mxu0 0
      %3079 = vmatpush1.bf16.msra.mxu0 %v3055
      %3080 = vmatprep.subr.bf16.mxu0 0
      %3081 = vmatpush1.bf16.msra.mxu0 %v3057
      %3082 = vmatprep.subr.bf16.mxu0 0
      %3083 = vmatpush1.bf16.msra.mxu0 %v3059
      %3084 = vmatprep.subr.bf16.mxu0 0
      %3085 = vmatpush1.bf16.msra.mxu0 %v3061
      %3086 = vmatprep.subr.bf16.mxu0 0
      %3087 = vmatpush1.bf16.msra.mxu0 0
      %3088 = vmatprep.subr.bf16.mxu0 0
      %3089 = vmatpush1.bf16.msra.mxu0 0
      %3090 = vmatprep.subr.bf16.mxu0 0
      %3091 = vmatpush1.bf16.msra.mxu0 0
      %3092 = vmatprep.subr.bf16.mxu0 0
      %3093 = vmatpush1.bf16.msra.mxu0 0
      %3094 = vmatprep.subr.bf16.mxu0 0
      %3095 = vmatpush1.bf16.msra.mxu0 0
      %3096 = vmatprep.subr.bf16.mxu0 0
      %3097 = vmatpush1.bf16.msra.mxu0 0
      %3098 = vmatprep.subr.bf16.mxu0 0
      %3099 = vmatpush1.bf16.msra.mxu0 0
      %3100 = vmatprep.subr.bf16.mxu0 0
      %3101 = vmatpush1.bf16.msra.mxu0 0
      %3102 = vmatprep.subr.bf16.mxu0 0
      %3103 = vmatpush1.bf16.msra.mxu0 0
      %3104 = vmatprep.subr.bf16.mxu0 0
      %3105 = vmatpush1.bf16.msra.mxu0 0
      %3106 = vmatprep.subr.bf16.mxu0 0
      %3107 = vmatpush1.bf16.msra.mxu0 0
      %3108 = vmatprep.subr.bf16.mxu0 0
      %3109 = vmatpush1.bf16.msra.mxu0 0
      %3110 = vmatprep.mubr.bf16.mxu0 0
      %3111 = vmatmul.mubr.bf16.gmra.mrb[0].mxu0 %v3067
      %v3112 = vpop.f32.mrb[0].mxu0
      %v3113 = vadd.f32 0.0, %v3112
      %v3114 = vpop.f32.mrb[0].mxu0
      %v3115 = vpop.f32.mrb[0].mxu0
      %v3116 = vadd.f32 0.0, %v3115
      %v3117 = vpop.f32.mrb[0].mxu0
      %3118 = vmatprep.mubr.bf16.mxu0 0
      %3119 = vmatmul.mubr.bf16.gmra.mrb[0].mxu0 %v3070
      %v3120 = vpop.f32.mrb[0].mxu0
      %v3121 = vadd.f32 0.0, %v3120
      %v3122 = vpop.f32.mrb[0].mxu0
      %v3123 = vpop.f32.mrb[0].mxu0
      %v3124 = vadd.f32 0.0, %v3123
      %v3125 = vpop.f32.mrb[0].mxu0
      %3126 = vmatprep.mubr.bf16.mxu0 0
      %3127 = vmatmul.mubr.bf16.gmra.mrb[0].mxu0 %v3073
      %v3128 = vpop.f32.mrb[0].mxu0
      %v3129 = vadd.f32 0.0, %v3128
      %v3130 = vpop.f32.mrb[0].mxu0
      %v3131 = vpop.f32.mrb[0].mxu0
      %v3132 = vadd.f32 0.0, %v3131
      %v3133 = vpop.f32.mrb[0].mxu0
      %3134 = vmatprep.mubr.bf16.mxu0 0
      %3135 = vmatmul.mubr.bf16.gmra.mrb[0].mxu0 %v3076
      %v3136 = vpop.f32.mrb[0].mxu0
      %v3137 = vadd.f32 0.0, %v3136
      %v3138 = vpop.f32.mrb[0].mxu0
      %v3139 = vpop.f32.mrb[0].mxu0
      %v3140 = vadd.f32 0.0, %v3139
      %v3141 = vpop.f32.mrb[0].mxu0
      %3142 = vdwg.mxu0
      %3147 = vrot.lane.b32.xlu0 %v1141, 96
      %v3148 = vpop.permute.xlu0 %3147
      %3149 = vrot.lane.b32.xlu0 %v1142, 96
      %v3150 = vpop.permute.xlu0 %3149
      %3151 = vrot.lane.b32.xlu0 %v1143, 96
      %v3152 = vpop.permute.xlu0 %3151
      %3153 = vrot.lane.b32.xlu0 %v1144, 96
      %v3154 = vpop.permute.xlu0 %3153
      %v3160 = vsel %vm320, %v3038, 0
      %v3163 = vsel %vm320, %v3039, 0
      %v3166 = vsel %vm320, %v3040, 0
      %v3169 = vsel %vm320, %v3041, 0
      %3171 = vmatprep.subr.bf16.mxu0 0
      %3172 = vmatpush1.bf16.msra.mxu0 %v3148
      %3173 = vmatprep.subr.bf16.mxu0 0
      %3174 = vmatpush1.bf16.msra.mxu0 %v3150
      %3175 = vmatprep.subr.bf16.mxu0 0
      %3176 = vmatpush1.bf16.msra.mxu0 %v3152
      %3177 = vmatprep.subr.bf16.mxu0 0
      %3178 = vmatpush1.bf16.msra.mxu0 %v3154
      %3179 = vmatprep.subr.bf16.mxu0 0
      %3180 = vmatpush1.bf16.msra.mxu0 0
      %3181 = vmatprep.subr.bf16.mxu0 0
      %3182 = vmatpush1.bf16.msra.mxu0 0
      %3183 = vmatprep.subr.bf16.mxu0 0
      %3184 = vmatpush1.bf16.msra.mxu0 0
      %3185 = vmatprep.subr.bf16.mxu0 0
      %3186 = vmatpush1.bf16.msra.mxu0 0
      %3187 = vmatprep.subr.bf16.mxu0 0
      %3188 = vmatpush1.bf16.msra.mxu0 0
      %3189 = vmatprep.subr.bf16.mxu0 0
      %3190 = vmatpush1.bf16.msra.mxu0 0
      %3191 = vmatprep.subr.bf16.mxu0 0
      %3192 = vmatpush1.bf16.msra.mxu0 0
      %3193 = vmatprep.subr.bf16.mxu0 0
      %3194 = vmatpush1.bf16.msra.mxu0 0
      %3195 = vmatprep.subr.bf16.mxu0 0
      %3196 = vmatpush1.bf16.msra.mxu0 0
      %3197 = vmatprep.subr.bf16.mxu0 0
      %3198 = vmatpush1.bf16.msra.mxu0 0
      %3199 = vmatprep.subr.bf16.mxu0 0
      %3200 = vmatpush1.bf16.msra.mxu0 0
      %3201 = vmatprep.subr.bf16.mxu0 0
      %3202 = vmatpush1.bf16.msra.mxu0 0
      %3203 = vmatprep.mubr.bf16.mxu0 0
      %3204 = vmatmul.mubr.bf16.gmra.mrb[0].mxu0 %v3160
      %v3205 = vpop.f32.mrb[0].mxu0
      %v3206 = vadd.f32 0.0, %v3205
      %v3207 = vpop.f32.mrb[0].mxu0
      %v3208 = vpop.f32.mrb[0].mxu0
      %v3209 = vadd.f32 0.0, %v3208
      %v3210 = vpop.f32.mrb[0].mxu0
      %3211 = vmatprep.mubr.bf16.mxu0 0
      %3212 = vmatmul.mubr.bf16.gmra.mrb[0].mxu0 %v3163
      %v3213 = vpop.f32.mrb[0].mxu0
      %v3214 = vadd.f32 0.0, %v3213
      %v3215 = vpop.f32.mrb[0].mxu0
      %v3216 = vpop.f32.mrb[0].mxu0
      %v3217 = vadd.f32 0.0, %v3216
      %v3218 = vpop.f32.mrb[0].mxu0
      %3219 = vmatprep.mubr.bf16.mxu0 0
      %3220 = vmatmul.mubr.bf16.gmra.mrb[0].mxu0 %v3166
      %v3221 = vpop.f32.mrb[0].mxu0
      %v3222 = vadd.f32 0.0, %v3221
      %v3223 = vpop.f32.mrb[0].mxu0
      %v3224 = vpop.f32.mrb[0].mxu0
      %v3225 = vadd.f32 0.0, %v3224
      %v3226 = vpop.f32.mrb[0].mxu0
      %3227 = vmatprep.mubr.bf16.mxu0 0
      %3228 = vmatmul.mubr.bf16.gmra.mrb[0].mxu0 %v3169
      %v3229 = vpop.f32.mrb[0].mxu0
      %v3230 = vadd.f32 0.0, %v3229
      %v3231 = vpop.f32.mrb[0].mxu0
      %v3232 = vpop.f32.mrb[0].mxu0
      %v3233 = vadd.f32 0.0, %v3232
      %v3234 = vpop.f32.mrb[0].mxu0
      %3235 = vdwg.mxu0
      %3240 = vrot.lane.b32.xlu0 %v1145, 96
      %v3241 = vpop.permute.xlu0 %3240
      %3242 = vrot.lane.b32.xlu0 %v1146, 96
      %v3243 = vpop.permute.xlu0 %3242
      %3244 = vrot.lane.b32.xlu0 %v1147, 96
      %v3245 = vpop.permute.xlu0 %3244
      %3246 = vrot.lane.b32.xlu0 %v1148, 96
      %v3247 = vpop.permute.xlu0 %3246
      %v3253 = vsel %vm320, %v3042, 0
      %v3256 = vsel %vm320, %v3043, 0
      %v3259 = vsel %vm320, %v3044, 0
      %v3262 = vsel %vm320, %v3045, 0
      %3264 = vmatprep.subr.bf16.mxu0 0
      %3265 = vmatpush1.bf16.msra.mxu0 %v3241
      %3266 = vmatprep.subr.bf16.mxu0 0
      %3267 = vmatpush1.bf16.msra.mxu0 %v3243
      %3268 = vmatprep.subr.bf16.mxu0 0
      %3269 = vmatpush1.bf16.msra.mxu0 %v3245
      %3270 = vmatprep.subr.bf16.mxu0 0
      %3271 = vmatpush1.bf16.msra.mxu0 %v3247
      %3272 = vmatprep.subr.bf16.mxu0 0
      %3273 = vmatpush1.bf16.msra.mxu0 0
      %3274 = vmatprep.subr.bf16.mxu0 0
      %3275 = vmatpush1.bf16.msra.mxu0 0
      %3276 = vmatprep.subr.bf16.mxu0 0
      %3277 = vmatpush1.bf16.msra.mxu0 0
      %3278 = vmatprep.subr.bf16.mxu0 0
      %3279 = vmatpush1.bf16.msra.mxu0 0
      %3280 = vmatprep.subr.bf16.mxu0 0
      %3281 = vmatpush1.bf16.msra.mxu0 0
      %3282 = vmatprep.subr.bf16.mxu0 0
      %3283 = vmatpush1.bf16.msra.mxu0 0
      %3284 = vmatprep.subr.bf16.mxu0 0
      %3285 = vmatpush1.bf16.msra.mxu0 0
      %3286 = vmatprep.subr.bf16.mxu0 0
      %3287 = vmatpush1.bf16.msra.mxu0 0
      %3288 = vmatprep.subr.bf16.mxu0 0
      %3289 = vmatpush1.bf16.msra.mxu0 0
      %3290 = vmatprep.subr.bf16.mxu0 0
      %3291 = vmatpush1.bf16.msra.mxu0 0
      %3292 = vmatprep.subr.bf16.mxu0 0
      %3293 = vmatpush1.bf16.msra.mxu0 0
      %3294 = vmatprep.subr.bf16.mxu0 0
      %3295 = vmatpush1.bf16.msra.mxu0 0
      %3296 = vmatprep.mubr.bf16.mxu0 0
      %3297 = vmatmul.mubr.bf16.gmra.mrb[0].mxu0 %v3253
      %v3298 = vpop.f32.mrb[0].mxu0
      %v3299 = vadd.f32 0.0, %v3298
      %v3300 = vpop.f32.mrb[0].mxu0
      %v3301 = vpop.f32.mrb[0].mxu0
      %v3302 = vadd.f32 0.0, %v3301
      %v3303 = vpop.f32.mrb[0].mxu0
      %3304 = vmatprep.mubr.bf16.mxu0 0
      %3305 = vmatmul.mubr.bf16.gmra.mrb[0].mxu0 %v3256
      %v3306 = vpop.f32.mrb[0].mxu0
      %v3307 = vadd.f32 0.0, %v3306
      %v3308 = vpop.f32.mrb[0].mxu0
      %v3309 = vpop.f32.mrb[0].mxu0
      %v3310 = vadd.f32 0.0, %v3309
      %v3311 = vpop.f32.mrb[0].mxu0
      %3312 = vmatprep.mubr.bf16.mxu0 0
      %3313 = vmatmul.mubr.bf16.gmra.mrb[0].mxu0 %v3259
      %v3314 = vpop.f32.mrb[0].mxu0
      %v3315 = vadd.f32 0.0, %v3314
      %v3316 = vpop.f32.mrb[0].mxu0
      %v3317 = vpop.f32.mrb[0].mxu0
      %v3318 = vadd.f32 0.0, %v3317
      %v3319 = vpop.f32.mrb[0].mxu0
      %3320 = vmatprep.mubr.bf16.mxu0 0
      %3321 = vmatmul.mubr.bf16.gmra.mrb[0].mxu0 %v3262
      %v3322 = vpop.f32.mrb[0].mxu0
      %v3323 = vadd.f32 0.0, %v3322
      %v3324 = vpop.f32.mrb[0].mxu0
      %v3325 = vpop.f32.mrb[0].mxu0
      %v3326 = vadd.f32 0.0, %v3325
      %v3327 = vpop.f32.mrb[0].mxu0
      %3328 = vdwg.mxu0
      %3333 = vrot.lane.b32.xlu0 %v1149, 96
      %v3334 = vpop.permute.xlu0 %3333
      %3335 = vrot.lane.b32.xlu0 %v1150, 96
      %v3336 = vpop.permute.xlu0 %3335
      %3337 = vrot.lane.b32.xlu0 %v1151, 96
      %v3338 = vpop.permute.xlu0 %3337
      %3339 = vrot.lane.b32.xlu0 %v1152, 96
      %v3340 = vpop.permute.xlu0 %3339
      %v3346 = vsel %vm320, %v3046, 0
      %v3349 = vsel %vm320, %v3047, 0
      %v3352 = vsel %vm320, %v3048, 0
      %v3355 = vsel %vm320, %v3049, 0
      %3357 = vmatprep.subr.bf16.mxu0 0
      %3358 = vmatpush1.bf16.msra.mxu0 %v3334
      %3359 = vmatprep.subr.bf16.mxu0 0
      %3360 = vmatpush1.bf16.msra.mxu0 %v3336
      %3361 = vmatprep.subr.bf16.mxu0 0
      %3362 = vmatpush1.bf16.msra.mxu0 %v3338
      %3363 = vmatprep.subr.bf16.mxu0 0
      %3364 = vmatpush1.bf16.msra.mxu0 %v3340
      %3365 = vmatprep.subr.bf16.mxu0 0
      %3366 = vmatpush1.bf16.msra.mxu0 0
      %3367 = vmatprep.subr.bf16.mxu0 0
      %3368 = vmatpush1.bf16.msra.mxu0 0
      %3369 = vmatprep.subr.bf16.mxu0 0
      %3370 = vmatpush1.bf16.msra.mxu0 0
      %3371 = vmatprep.subr.bf16.mxu0 0
      %3372 = vmatpush1.bf16.msra.mxu0 0
      %3373 = vmatprep.subr.bf16.mxu0 0
      %3374 = vmatpush1.bf16.msra.mxu0 0
      %3375 = vmatprep.subr.bf16.mxu0 0
      %3376 = vmatpush1.bf16.msra.mxu0 0
      %3377 = vmatprep.subr.bf16.mxu0 0
      %3378 = vmatpush1.bf16.msra.mxu0 0
      %3379 = vmatprep.subr.bf16.mxu0 0
      %3380 = vmatpush1.bf16.msra.mxu0 0
      %3381 = vmatprep.subr.bf16.mxu0 0
      %3382 = vmatpush1.bf16.msra.mxu0 0
      %3383 = vmatprep.subr.bf16.mxu0 0
      %3384 = vmatpush1.bf16.msra.mxu0 0
      %3385 = vmatprep.subr.bf16.mxu0 0
      %3386 = vmatpush1.bf16.msra.mxu0 0
      %3387 = vmatprep.subr.bf16.mxu0 0
      %3388 = vmatpush1.bf16.msra.mxu0 0
      %3389 = vmatprep.mubr.bf16.mxu0 0
      %3390 = vmatmul.mubr.bf16.gmra.mrb[0].mxu0 %v3346
      %v3391 = vpop.f32.mrb[0].mxu0
      %v3392 = vadd.f32 0.0, %v3391
      %v3393 = vpop.f32.mrb[0].mxu0
      %v3394 = vpop.f32.mrb[0].mxu0
      %v3395 = vadd.f32 0.0, %v3394
      %v3396 = vpop.f32.mrb[0].mxu0
      %3397 = vmatprep.mubr.bf16.mxu0 0
      %3398 = vmatmul.mubr.bf16.gmra.mrb[0].mxu0 %v3349
      %v3399 = vpop.f32.mrb[0].mxu0
      %v3400 = vadd.f32 0.0, %v3399
      %v3401 = vpop.f32.mrb[0].mxu0
      %v3402 = vpop.f32.mrb[0].mxu0
      %v3403 = vadd.f32 0.0, %v3402
      %v3404 = vpop.f32.mrb[0].mxu0
      %3405 = vmatprep.mubr.bf16.mxu0 0
      %3406 = vmatmul.mubr.bf16.gmra.mrb[0].mxu0 %v3352
      %v3407 = vpop.f32.mrb[0].mxu0
      %v3408 = vadd.f32 0.0, %v3407
      %v3409 = vpop.f32.mrb[0].mxu0
      %v3410 = vpop.f32.mrb[0].mxu0
      %v3411 = vadd.f32 0.0, %v3410
      %v3412 = vpop.f32.mrb[0].mxu0
      %3413 = vmatprep.mubr.bf16.mxu0 0
      %3414 = vmatmul.mubr.bf16.gmra.mrb[0].mxu0 %v3355
      %v3415 = vpop.f32.mrb[0].mxu0
      %v3416 = vadd.f32 0.0, %v3415
      %v3417 = vpop.f32.mrb[0].mxu0
      %v3418 = vpop.f32.mrb[0].mxu0
      %v3419 = vadd.f32 0.0, %v3418
      %v3420 = vpop.f32.mrb[0].mxu0
      %3421 = vdwg.mxu0
      %v3422 = vpack.c.bf16 %v3116, %v3113
      %v3423 = vpack.c.bf16 %v3124, %v3121
      %v3424 = vpack.c.bf16 %v3132, %v3129
      %v3425 = vpack.c.bf16 %v3140, %v3137
      %v3426 = vpack.c.bf16 %v3209, %v3206
      %v3427 = vpack.c.bf16 %v3217, %v3214
      %v3428 = vpack.c.bf16 %v3225, %v3222
      %v3429 = vpack.c.bf16 %v3233, %v3230
      %v3430 = vpack.c.bf16 %v3302, %v3299
      %v3431 = vpack.c.bf16 %v3310, %v3307
      %v3432 = vpack.c.bf16 %v3318, %v3315
      %v3433 = vpack.c.bf16 %v3326, %v3323
      %v3434 = vpack.c.bf16 %v3395, %v3392
      %v3435 = vpack.c.bf16 %v3403, %v3400
      %v3436 = vpack.c.bf16 %v3411, %v3408
      %v3437 = vpack.c.bf16 %v3419, %v3416
      %v3438 = vld [vmem:[%s4 + $0x10] sm:$0xf]
      %v3439 = vld [vmem:[%s4 + $0x14] sm:$0xf]
      %v3440 = vld [vmem:[%s4 + $0x18] sm:$0xf]
      %v3441 = vld [vmem:[%s4 + $0x1c] sm:$0xf]
      %v3446 = vunpack.c.l.b16 %v3438
      %v3447 = vunpack.c.l.b16 %v3439
      %v3448 = vunpack.c.l.b16 %v3440
      %v3449 = vunpack.c.l.b16 %v3441
      %v3450 = vpack.c.b16 %v3447, %v3446
      %v3451 = vpack.c.b16 %v3449, %v3448
      %v3455 = vsel %vm1173, %v3422, 0
      %v3458 = vsel %vm1173, %v3423, 0
      %v3461 = vsel %vm1173, %v3424, 0
      %v3464 = vsel %vm1173, %v3425, 0
      %v3467 = vsel %vm1173, %v3426, 0
      %v3470 = vsel %vm1173, %v3427, 0
      %v3473 = vsel %vm1173, %v3428, 0
      %v3476 = vsel %vm1173, %v3429, 0
      %v3479 = vsel %vm1173, %v3430, 0
      %v3482 = vsel %vm1173, %v3431, 0
      %v3485 = vsel %vm1173, %v3432, 0
      %v3488 = vsel %vm1173, %v3433, 0
      %v3491 = vsel %vm1173, %v3434, 0
      %v3494 = vsel %vm1173, %v3435, 0
      %v3497 = vsel %vm1173, %v3436, 0
      %v3500 = vsel %vm1173, %v3437, 0
      %3502 = vmatprep.subr.bf16.mxu0 0
      %3503 = vmatpush1.bf16.msra.mxu0 %v3450
      %3504 = vmatprep.subr.bf16.mxu0 0
      %3505 = vmatpush1.bf16.msra.mxu0 %v3451
      %3506 = vmatprep.subr.bf16.mxu0 0
      %3507 = vmatpush1.bf16.msra.mxu0 0
      %3508 = vmatprep.subr.bf16.mxu0 0
      %3509 = vmatpush1.bf16.msra.mxu0 0
      %3510 = vmatprep.subr.bf16.mxu0 0
      %3511 = vmatpush1.bf16.msra.mxu0 0
      %3512 = vmatprep.subr.bf16.mxu0 0
      %3513 = vmatpush1.bf16.msra.mxu0 0
      %3514 = vmatprep.subr.bf16.mxu0 0
      %3515 = vmatpush1.bf16.msra.mxu0 0
      %3516 = vmatprep.subr.bf16.mxu0 0
      %3517 = vmatpush1.bf16.msra.mxu0 0
      %3518 = vmatprep.subr.bf16.mxu0 0
      %3519 = vmatpush1.bf16.msra.mxu0 0
      %3520 = vmatprep.subr.bf16.mxu0 0
      %3521 = vmatpush1.bf16.msra.mxu0 0
      %3522 = vmatprep.subr.bf16.mxu0 0
      %3523 = vmatpush1.bf16.msra.mxu0 0
      %3524 = vmatprep.subr.bf16.mxu0 0
      %3525 = vmatpush1.bf16.msra.mxu0 0
      %3526 = vmatprep.subr.bf16.mxu0 0
      %3527 = vmatpush1.bf16.msra.mxu0 0
      %3528 = vmatprep.subr.bf16.mxu0 0
      %3529 = vmatpush1.bf16.msra.mxu0 0
      %3530 = vmatprep.subr.bf16.mxu0 0
      %3531 = vmatpush1.bf16.msra.mxu0 0
      %3532 = vmatprep.subr.bf16.mxu0 0
      %3533 = vmatpush1.bf16.msra.mxu0 0
      %3534 = vmatprep.mubr.bf16.mxu0 0
      %3535 = vmatmul.mubr.bf16.gmra.mrb[0].mxu0 %v3455
      %v3536 = vpop.f32.mrb[0].mxu0
      %v3537 = vadd.f32 0.0, %v3536
      %v3538 = vpop.f32.mrb[0].mxu0
      %v3539 = vpop.f32.mrb[0].mxu0
      %v3540 = vadd.f32 0.0, %v3539
      %v3541 = vpop.f32.mrb[0].mxu0
      %3542 = vmatprep.mubr.bf16.mxu0 0
      %3543 = vmatmul.mubr.bf16.gmra.mrb[0].mxu0 %v3458
      %v3544 = vpop.f32.mrb[0].mxu0
      %v3545 = vadd.f32 0.0, %v3544
      %v3546 = vpop.f32.mrb[0].mxu0
      %v3547 = vpop.f32.mrb[0].mxu0
      %v3548 = vadd.f32 0.0, %v3547
      %v3549 = vpop.f32.mrb[0].mxu0
      %3550 = vmatprep.mubr.bf16.mxu0 0
      %3551 = vmatmul.mubr.bf16.gmra.mrb[0].mxu0 %v3461
      %v3552 = vpop.f32.mrb[0].mxu0
      %v3553 = vadd.f32 0.0, %v3552
      %v3554 = vpop.f32.mrb[0].mxu0
      %v3555 = vpop.f32.mrb[0].mxu0
      %v3556 = vadd.f32 0.0, %v3555
      %v3557 = vpop.f32.mrb[0].mxu0
      %3558 = vmatprep.mubr.bf16.mxu0 0
      %3559 = vmatmul.mubr.bf16.gmra.mrb[0].mxu0 %v3464
      %v3560 = vpop.f32.mrb[0].mxu0
      %v3561 = vadd.f32 0.0, %v3560
      %v3562 = vpop.f32.mrb[0].mxu0
      %v3563 = vpop.f32.mrb[0].mxu0
      %v3564 = vadd.f32 0.0, %v3563
      %v3565 = vpop.f32.mrb[0].mxu0
      %3566 = vmatprep.mubr.bf16.mxu0 0
      %3567 = vmatmul.mubr.bf16.gmra.mrb[0].mxu0 %v3467
      %v3568 = vpop.f32.mrb[0].mxu0
      %v3569 = vadd.f32 0.0, %v3568
      %v3570 = vpop.f32.mrb[0].mxu0
      %v3571 = vpop.f32.mrb[0].mxu0
      %v3572 = vadd.f32 0.0, %v3571
      %v3573 = vpop.f32.mrb[0].mxu0
      %3574 = vmatprep.mubr.bf16.mxu0 0
      %3575 = vmatmul.mubr.bf16.gmra.mrb[0].mxu0 %v3470
      %v3576 = vpop.f32.mrb[0].mxu0
      %v3577 = vadd.f32 0.0, %v3576
      %v3578 = vpop.f32.mrb[0].mxu0
      %v3579 = vpop.f32.mrb[0].mxu0
      %v3580 = vadd.f32 0.0, %v3579
      %v3581 = vpop.f32.mrb[0].mxu0
      %3582 = vmatprep.mubr.bf16.mxu0 0
      %3583 = vmatmul.mubr.bf16.gmra.mrb[0].mxu0 %v3473
      %v3584 = vpop.f32.mrb[0].mxu0
      %v3585 = vadd.f32 0.0, %v3584
      %v3586 = vpop.f32.mrb[0].mxu0
      %v3587 = vpop.f32.mrb[0].mxu0
      %v3588 = vadd.f32 0.0, %v3587
      %v3589 = vpop.f32.mrb[0].mxu0
      %3590 = vmatprep.mubr.bf16.mxu0 0
      %3591 = vmatmul.mubr.bf16.gmra.mrb[0].mxu0 %v3476
      %v3592 = vpop.f32.mrb[0].mxu0
      %v3593 = vadd.f32 0.0, %v3592
      %v3594 = vpop.f32.mrb[0].mxu0
      %v3595 = vpop.f32.mrb[0].mxu0
      %v3596 = vadd.f32 0.0, %v3595
      %v3597 = vpop.f32.mrb[0].mxu0
      %3598 = vmatprep.mubr.bf16.mxu0 0
      %3599 = vmatmul.mubr.bf16.gmra.mrb[0].mxu0 %v3479
      %v3600 = vpop.f32.mrb[0].mxu0
      %v3601 = vadd.f32 0.0, %v3600
      %v3602 = vpop.f32.mrb[0].mxu0
      %v3603 = vpop.f32.mrb[0].mxu0
      %v3604 = vadd.f32 0.0, %v3603
      %v3605 = vpop.f32.mrb[0].mxu0
      %3606 = vmatprep.mubr.bf16.mxu0 0
      %3607 = vmatmul.mubr.bf16.gmra.mrb[0].mxu0 %v3482
      %v3608 = vpop.f32.mrb[0].mxu0
      %v3609 = vadd.f32 0.0, %v3608
      %v3610 = vpop.f32.mrb[0].mxu0
      %v3611 = vpop.f32.mrb[0].mxu0
      %v3612 = vadd.f32 0.0, %v3611
      %v3613 = vpop.f32.mrb[0].mxu0
      %3614 = vmatprep.mubr.bf16.mxu0 0
      %3615 = vmatmul.mubr.bf16.gmra.mrb[0].mxu0 %v3485
      %v3616 = vpop.f32.mrb[0].mxu0
      %v3617 = vadd.f32 0.0, %v3616
      %v3618 = vpop.f32.mrb[0].mxu0
      %v3619 = vpop.f32.mrb[0].mxu0
      %v3620 = vadd.f32 0.0, %v3619
      %v3621 = vpop.f32.mrb[0].mxu0
      %3622 = vmatprep.mubr.bf16.mxu0 0
      %3623 = vmatmul.mubr.bf16.gmra.mrb[0].mxu0 %v3488
      %v3624 = vpop.f32.mrb[0].mxu0
      %v3625 = vadd.f32 0.0, %v3624
      %v3626 = vpop.f32.mrb[0].mxu0
      %v3627 = vpop.f32.mrb[0].mxu0
      %v3628 = vadd.f32 0.0, %v3627
      %v3629 = vpop.f32.mrb[0].mxu0
      %3630 = vmatprep.mubr.bf16.mxu0 0
      %3631 = vmatmul.mubr.bf16.gmra.mrb[0].mxu0 %v3491
      %v3632 = vpop.f32.mrb[0].mxu0
      %v3633 = vadd.f32 0.0, %v3632
      %v3634 = vpop.f32.mrb[0].mxu0
      %v3635 = vpop.f32.mrb[0].mxu0
      %v3636 = vadd.f32 0.0, %v3635
      %v3637 = vpop.f32.mrb[0].mxu0
      %3638 = vmatprep.mubr.bf16.mxu0 0
      %3639 = vmatmul.mubr.bf16.gmra.mrb[0].mxu0 %v3494
      %v3640 = vpop.f32.mrb[0].mxu0
      %v3641 = vadd.f32 0.0, %v3640
      %v3642 = vpop.f32.mrb[0].mxu0
      %v3643 = vpop.f32.mrb[0].mxu0
      %v3644 = vadd.f32 0.0, %v3643
      %v3645 = vpop.f32.mrb[0].mxu0
      %3646 = vmatprep.mubr.bf16.mxu0 0
      %3647 = vmatmul.mubr.bf16.gmra.mrb[0].mxu0 %v3497
      %v3648 = vpop.f32.mrb[0].mxu0
      %v3649 = vadd.f32 0.0, %v3648
      %v3650 = vpop.f32.mrb[0].mxu0
      %v3651 = vpop.f32.mrb[0].mxu0
      %v3652 = vadd.f32 0.0, %v3651
      %v3653 = vpop.f32.mrb[0].mxu0
      %3654 = vmatprep.mubr.bf16.mxu0 0
      %3655 = vmatmul.mubr.bf16.gmra.mrb[0].mxu0 %v3500
      %v3656 = vpop.f32.mrb[0].mxu0
      %v3657 = vadd.f32 0.0, %v3656
      %v3658 = vpop.f32.mrb[0].mxu0
      %v3659 = vpop.f32.mrb[0].mxu0
      %v3660 = vadd.f32 0.0, %v3659
      %v3661 = vpop.f32.mrb[0].mxu0
      %3662 = vdwg.mxu0
      %v3667 = vunpack.c.l.b16 %v2258
      %v3668 = vunpack.c.l.b16 %v2259
      %v3669 = vunpack.c.l.b16 %v2260
      %v3670 = vunpack.c.l.b16 %v2261
      %v3671 = vpack.c.b16 %v3668, %v3667
      %v3672 = vpack.c.b16 %v3670, %v3669
      %v3676 = vsel %vm1173, %v2242, 0
      %v3679 = vsel %vm1173, %v2243, 0
      %v3682 = vsel %vm1173, %v2244, 0
      %v3685 = vsel %vm1173, %v2245, 0
      %v3688 = vsel %vm1173, %v2246, 0
      %v3691 = vsel %vm1173, %v2247, 0
      %v3694 = vsel %vm1173, %v2248, 0
      %v3697 = vsel %vm1173, %v2249, 0
      %v3700 = vsel %vm1173, %v2250, 0
      %v3703 = vsel %vm1173, %v2251, 0
      %v3706 = vsel %vm1173, %v2252, 0
      %v3709 = vsel %vm1173, %v2253, 0
      %v3712 = vsel %vm1173, %v2254, 0
      %v3715 = vsel %vm1173, %v2255, 0
      %v3718 = vsel %vm1173, %v2256, 0
      %v3721 = vsel %vm1173, %v2257, 0
      %3723 = vmatprep.subr.bf16.mxu0 0
      %3724 = vmatpush1.bf16.msra.mxu0 %v3671
      %3725 = vmatprep.subr.bf16.mxu0 0
      %3726 = vmatpush1.bf16.msra.mxu0 %v3672
      %3727 = vmatprep.subr.bf16.mxu0 0
      %3728 = vmatpush1.bf16.msra.mxu0 0
      %3729 = vmatprep.subr.bf16.mxu0 0
      %3730 = vmatpush1.bf16.msra.mxu0 0
      %3731 = vmatprep.subr.bf16.mxu0 0
      %3732 = vmatpush1.bf16.msra.mxu0 0
      %3733 = vmatprep.subr.bf16.mxu0 0
      %3734 = vmatpush1.bf16.msra.mxu0 0
      %3735 = vmatprep.subr.bf16.mxu0 0
      %3736 = vmatpush1.bf16.msra.mxu0 0
      %3737 = vmatprep.subr.bf16.mxu0 0
      %3738 = vmatpush1.bf16.msra.mxu0 0
      %3739 = vmatprep.subr.bf16.mxu0 0
      %3740 = vmatpush1.bf16.msra.mxu0 0
      %3741 = vmatprep.subr.bf16.mxu0 0
      %3742 = vmatpush1.bf16.msra.mxu0 0
      %3743 = vmatprep.subr.bf16.mxu0 0
      %3744 = vmatpush1.bf16.msra.mxu0 0
      %3745 = vmatprep.subr.bf16.mxu0 0
      %3746 = vmatpush1.bf16.msra.mxu0 0
      %3747 = vmatprep.subr.bf16.mxu0 0
      %3748 = vmatpush1.bf16.msra.mxu0 0
      %3749 = vmatprep.subr.bf16.mxu0 0
      %3750 = vmatpush1.bf16.msra.mxu0 0
      %3751 = vmatprep.subr.bf16.mxu0 0
      %3752 = vmatpush1.bf16.msra.mxu0 0
      %3753 = vmatprep.subr.bf16.mxu0 0
      %3754 = vmatpush1.bf16.msra.mxu0 0
      %3755 = vmatprep.mubr.bf16.mxu0 0
      %3756 = vmatmul.mubr.bf16.gmra.mrb[0].mxu0 %v3676
      %v3757 = vpop.f32.mrb[0].mxu0
      %v3758 = vadd.f32 %v3537, %v3757
      %v3759 = vpop.f32.mrb[0].mxu0
      %v3760 = vpop.f32.mrb[0].mxu0
      %v3761 = vadd.f32 %v3540, %v3760
      %v3762 = vpop.f32.mrb[0].mxu0
      %3763 = vmatprep.mubr.bf16.mxu0 0
      %3764 = vmatmul.mubr.bf16.gmra.mrb[0].mxu0 %v3679
      %v3765 = vpop.f32.mrb[0].mxu0
      %v3766 = vadd.f32 %v3545, %v3765
      %v3767 = vpop.f32.mrb[0].mxu0
      %v3768 = vpop.f32.mrb[0].mxu0
      %v3769 = vadd.f32 %v3548, %v3768
      %v3770 = vpop.f32.mrb[0].mxu0
      %3771 = vmatprep.mubr.bf16.mxu0 0
      %3772 = vmatmul.mubr.bf16.gmra.mrb[0].mxu0 %v3682
      %v3773 = vpop.f32.mrb[0].mxu0
      %v3774 = vadd.f32 %v3553, %v3773
      %v3775 = vpop.f32.mrb[0].mxu0
      %v3776 = vpop.f32.mrb[0].mxu0
      %v3777 = vadd.f32 %v3556, %v3776
      %v3778 = vpop.f32.mrb[0].mxu0
      %3779 = vmatprep.mubr.bf16.mxu0 0
      %3780 = vmatmul.mubr.bf16.gmra.mrb[0].mxu0 %v3685
      %v3781 = vpop.f32.mrb[0].mxu0
      %v3782 = vadd.f32 %v3561, %v3781
      %v3783 = vpop.f32.mrb[0].mxu0
      %v3784 = vpop.f32.mrb[0].mxu0
      %v3785 = vadd.f32 %v3564, %v3784
      %v3786 = vpop.f32.mrb[0].mxu0
      %3787 = vmatprep.mubr.bf16.mxu0 0
      %3788 = vmatmul.mubr.bf16.gmra.mrb[0].mxu0 %v3688
      %v3789 = vpop.f32.mrb[0].mxu0
      %v3790 = vadd.f32 %v3569, %v3789
      %v3791 = vpop.f32.mrb[0].mxu0
      %v3792 = vpop.f32.mrb[0].mxu0
      %v3793 = vadd.f32 %v3572, %v3792
      %v3794 = vpop.f32.mrb[0].mxu0
      %3795 = vmatprep.mubr.bf16.mxu0 0
      %3796 = vmatmul.mubr.bf16.gmra.mrb[0].mxu0 %v3691
      %v3797 = vpop.f32.mrb[0].mxu0
      %v3798 = vadd.f32 %v3577, %v3797
      %v3799 = vpop.f32.mrb[0].mxu0
      %v3800 = vpop.f32.mrb[0].mxu0
      %v3801 = vadd.f32 %v3580, %v3800
      %v3802 = vpop.f32.mrb[0].mxu0
      %3803 = vmatprep.mubr.bf16.mxu0 0
      %3804 = vmatmul.mubr.bf16.gmra.mrb[0].mxu0 %v3694
      %v3805 = vpop.f32.mrb[0].mxu0
      %v3806 = vadd.f32 %v3585, %v3805
      %v3807 = vpop.f32.mrb[0].mxu0
      %v3808 = vpop.f32.mrb[0].mxu0
      %v3809 = vadd.f32 %v3588, %v3808
      %v3810 = vpop.f32.mrb[0].mxu0
      %3811 = vmatprep.mubr.bf16.mxu0 0
      %3812 = vmatmul.mubr.bf16.gmra.mrb[0].mxu0 %v3697
      %v3813 = vpop.f32.mrb[0].mxu0
      %v3814 = vadd.f32 %v3593, %v3813
      %v3815 = vpop.f32.mrb[0].mxu0
      %v3816 = vpop.f32.mrb[0].mxu0
      %v3817 = vadd.f32 %v3596, %v3816
      %v3818 = vpop.f32.mrb[0].mxu0
      %3819 = vmatprep.mubr.bf16.mxu0 0
      %3820 = vmatmul.mubr.bf16.gmra.mrb[0].mxu0 %v3700
      %v3821 = vpop.f32.mrb[0].mxu0
      %v3822 = vadd.f32 %v3601, %v3821
      %v3823 = vpop.f32.mrb[0].mxu0
      %v3824 = vpop.f32.mrb[0].mxu0
      %v3825 = vadd.f32 %v3604, %v3824
      %v3826 = vpop.f32.mrb[0].mxu0
      %3827 = vmatprep.mubr.bf16.mxu0 0
      %3828 = vmatmul.mubr.bf16.gmra.mrb[0].mxu0 %v3703
      %v3829 = vpop.f32.mrb[0].mxu0
      %v3830 = vadd.f32 %v3609, %v3829
      %v3831 = vpop.f32.mrb[0].mxu0
      %v3832 = vpop.f32.mrb[0].mxu0
      %v3833 = vadd.f32 %v3612, %v3832
      %v3834 = vpop.f32.mrb[0].mxu0
      %3835 = vmatprep.mubr.bf16.mxu0 0
      %3836 = vmatmul.mubr.bf16.gmra.mrb[0].mxu0 %v3706
      %v3837 = vpop.f32.mrb[0].mxu0
      %v3838 = vadd.f32 %v3617, %v3837
      %v3839 = vpop.f32.mrb[0].mxu0
      %v3840 = vpop.f32.mrb[0].mxu0
      %v3841 = vadd.f32 %v3620, %v3840
      %v3842 = vpop.f32.mrb[0].mxu0
      %3843 = vmatprep.mubr.bf16.mxu0 0
      %3844 = vmatmul.mubr.bf16.gmra.mrb[0].mxu0 %v3709
      %v3845 = vpop.f32.mrb[0].mxu0
      %v3846 = vadd.f32 %v3625, %v3845
      %v3847 = vpop.f32.mrb[0].mxu0
      %v3848 = vpop.f32.mrb[0].mxu0
      %v3849 = vadd.f32 %v3628, %v3848
      %v3850 = vpop.f32.mrb[0].mxu0
      %3851 = vmatprep.mubr.bf16.mxu0 0
      %3852 = vmatmul.mubr.bf16.gmra.mrb[0].mxu0 %v3712
      %v3853 = vpop.f32.mrb[0].mxu0
      %v3854 = vadd.f32 %v3633, %v3853
      %v3855 = vpop.f32.mrb[0].mxu0
      %v3856 = vpop.f32.mrb[0].mxu0
      %v3857 = vadd.f32 %v3636, %v3856
      %v3858 = vpop.f32.mrb[0].mxu0
      %3859 = vmatprep.mubr.bf16.mxu0 0
      %3860 = vmatmul.mubr.bf16.gmra.mrb[0].mxu0 %v3715
      %v3861 = vpop.f32.mrb[0].mxu0
      %v3862 = vadd.f32 %v3641, %v3861
      %v3863 = vpop.f32.mrb[0].mxu0
      %v3864 = vpop.f32.mrb[0].mxu0
      %v3865 = vadd.f32 %v3644, %v3864
      %v3866 = vpop.f32.mrb[0].mxu0
      %3867 = vmatprep.mubr.bf16.mxu0 0
      %3868 = vmatmul.mubr.bf16.gmra.mrb[0].mxu0 %v3718
      %v3869 = vpop.f32.mrb[0].mxu0
      %v3870 = vadd.f32 %v3649, %v3869
      %v3871 = vpop.f32.mrb[0].mxu0
      %v3872 = vpop.f32.mrb[0].mxu0
      %v3873 = vadd.f32 %v3652, %v3872
      %v3874 = vpop.f32.mrb[0].mxu0
      %3875 = vmatprep.mubr.bf16.mxu0 0
      %3876 = vmatmul.mubr.bf16.gmra.mrb[0].mxu0 %v3721
      %v3877 = vpop.f32.mrb[0].mxu0
      %v3878 = vadd.f32 %v3657, %v3877
      %v3879 = vpop.f32.mrb[0].mxu0
      %v3880 = vpop.f32.mrb[0].mxu0
      %v3881 = vadd.f32 %v3660, %v3880
      %v3882 = vpop.f32.mrb[0].mxu0
      %3883 = vdwg.mxu0
      %v3884 = vld [vmem:[%s5] sm:$0x1]
      %v3886 = vlaneseq
      %v3887 = vshrl.u32 %v3886, 7
      %v3888 = vsub.s32 0, %v3887
      %v3889 = vrot.slane %v3884, %v3888
      %v3891 = vadd.f32 %v3758, %v3889
      %v3892 = vadd.f32 %v3761, %v3889
      %v3893 = vadd.f32 %v3766, %v3889
      %v3894 = vadd.f32 %v3769, %v3889
      %v3895 = vadd.f32 %v3774, %v3889
      %v3896 = vadd.f32 %v3777, %v3889
      %v3897 = vadd.f32 %v3782, %v3889
      %v3898 = vadd.f32 %v3785, %v3889
      %v3899 = vadd.f32 %v3790, %v3889
      %v3900 = vadd.f32 %v3793, %v3889
      %v3901 = vadd.f32 %v3798, %v3889
      %v3902 = vadd.f32 %v3801, %v3889
      %v3903 = vadd.f32 %v3806, %v3889
      %v3904 = vadd.f32 %v3809, %v3889
      %v3905 = vadd.f32 %v3814, %v3889
      %v3906 = vadd.f32 %v3817, %v3889
      %v3907 = vadd.f32 %v3822, %v3889
      %v3908 = vadd.f32 %v3825, %v3889
      %v3909 = vadd.f32 %v3830, %v3889
      %v3910 = vadd.f32 %v3833, %v3889
      %v3911 = vadd.f32 %v3838, %v3889
      %v3912 = vadd.f32 %v3841, %v3889
      %v3913 = vadd.f32 %v3846, %v3889
      %v3914 = vadd.f32 %v3849, %v3889
      %v3915 = vadd.f32 %v3854, %v3889
      %v3916 = vadd.f32 %v3857, %v3889
      %v3917 = vadd.f32 %v3862, %v3889
      %v3918 = vadd.f32 %v3865, %v3889
      %v3919 = vadd.f32 %v3870, %v3889
      %v3920 = vadd.f32 %v3873, %v3889
      %v3921 = vadd.f32 %v3878, %v3889
      %v3922 = vadd.f32 %v3881, %v3889
      %3923 = vst.msk [vmem:[%s285] sm:$0xff] %vm320, %v3891
      %3924 = vst.msk [vmem:[%s285 + $0x8] sm:$0xff] %vm320, %v3892
      %3925 = vst.msk [vmem:[%s285 + $0x10] sm:$0xff] %vm320, %v3893
      %3926 = vst.msk [vmem:[%s285 + $0x18] sm:$0xff] %vm320, %v3894
      %3927 = vst.msk [vmem:[%s285 + $0x20] sm:$0xff] %vm320, %v3895
      %3928 = vst.msk [vmem:[%s285 + $0x28] sm:$0xff] %vm320, %v3896
      %3929 = vst.msk [vmem:[%s285 + $0x30] sm:$0xff] %vm320, %v3897
      %3930 = vst.msk [vmem:[%s285 + $0x38] sm:$0xff] %vm320, %v3898
      %3931 = vst.msk [vmem:[%s285 + $0x40] sm:$0xff] %vm320, %v3899
      %3932 = vst.msk [vmem:[%s285 + $0x48] sm:$0xff] %vm320, %v3900
      %3933 = vst.msk [vmem:[%s285 + $0x50] sm:$0xff] %vm320, %v3901
      %3934 = vst.msk [vmem:[%s285 + $0x58] sm:$0xff] %vm320, %v3902
      %3935 = vst.msk [vmem:[%s285 + $0x60] sm:$0xff] %vm320, %v3903
      %3936 = vst.msk [vmem:[%s285 + $0x68] sm:$0xff] %vm320, %v3904
      %3937 = vst.msk [vmem:[%s285 + $0x70] sm:$0xff] %vm320, %v3905
      %3938 = vst.msk [vmem:[%s285 + $0x78] sm:$0xff] %vm320, %v3906
      %3939 = vst.msk [vmem:[%s285 + $0x80] sm:$0xff] %vm320, %v3907
      %3940 = vst.msk [vmem:[%s285 + $0x88] sm:$0xff] %vm320, %v3908
      %3941 = vst.msk [vmem:[%s285 + $0x90] sm:$0xff] %vm320, %v3909
      %3942 = vst.msk [vmem:[%s285 + $0x98] sm:$0xff] %vm320, %v3910
      %3943 = vst.msk [vmem:[%s285 + $0xa0] sm:$0xff] %vm320, %v3911
      %3944 = vst.msk [vmem:[%s285 + $0xa8] sm:$0xff] %vm320, %v3912
      %3945 = vst.msk [vmem:[%s285 + $0xb0] sm:$0xff] %vm320, %v3913
      %3946 = vst.msk [vmem:[%s285 + $0xb8] sm:$0xff] %vm320, %v3914
      %3947 = vst.msk [vmem:[%s285 + $0xc0] sm:$0xff] %vm320, %v3915
      %3948 = vst.msk [vmem:[%s285 + $0xc8] sm:$0xff] %vm320, %v3916
      %3949 = vst.msk [vmem:[%s285 + $0xd0] sm:$0xff] %vm320, %v3917
      %3950 = vst.msk [vmem:[%s285 + $0xd8] sm:$0xff] %vm320, %v3918
      %3951 = vst.msk [vmem:[%s285 + $0xe0] sm:$0xff] %vm320, %v3919
      %3952 = vst.msk [vmem:[%s285 + $0xe8] sm:$0xff] %vm320, %v3920
      %3953 = vst.msk [vmem:[%s285 + $0xf0] sm:$0xff] %vm320, %v3921
      %3954 = vst.msk [vmem:[%s285 + $0xf8] sm:$0xff] %vm320, %v3922
      %s3955 = smul.u32 4, %s18
      %p3956 = scmp.lt.s32.totalorder %s3955, 7
      %s3957 = scalar_select %p3956, %s3955, 7
      %s3958 = smul.addr %s3957, 8
      %s3959 = smul.addr %s3958, 8
      %s3960 = scalar_lea.vmem %s7, %s3959
      // Predicated region
      $region49: #{attention_forward.1} parent=47 // pred_check
        %p3961 = pneg %p188
      $region50: #{attention_forward.1} parent=47 // pred_check_branch
        %3963 = sbr.rel (%p3961) target = $region52
      $region51: #{attention_forward.1} parent=47 // pred_region
        %s3964 = smul.u32 4, %s18
      $region52: #{attention_forward.1} parent=47 // pred_fallthru
        _
    $region48: #{attention_forward.1} parent=5 // pred_fallthru
      _
    %p3965 = scmp.le.s32.totalorder 2, %s13
    // Predicated region
    $region53: #{attention_forward.1} parent=5 // pred_check
      %p3966 = pneg %p3965
    $region54: #{attention_forward.1} parent=5 // pred_check_branch
      %3968 = sbr.rel (%p3966) target = $region56
    $region55: #{attention_forward.1} parent=5 // pred_region
      %s3969 = ssub.s32 %s13, 2
      // Predicated region
      $region57: #{attention_forward.1} parent=55 // pred_check
        %p3970 = pneg %p194
      $region58: #{attention_forward.1} parent=55 // pred_check_branch
        %3972 = sbr.rel (%p3970) target = $region60
      $region59: #{attention_forward.1} parent=55 // pred_region
        %s3973 = smul.u32 4, %s19
        %p3974 = scmp.lt.s32.totalorder %s3973, 7
        %s3975 = scalar_select %p3974, %s3973, 7
        %s3976 = smul.addr %s3975, 8
        %s3977 = smul.addr %s3976, 8
        %s3978 = scalar_lea.vmem %s7, %s3977
      $region60: #{attention_forward.1} parent=55 // pred_fallthru
        _
    $region56: #{attention_forward.1} parent=5 // pred_fallthru
      _
  $region6: #{attention_forward.1} parent=0 // loop_footer
    %s17 = sadd.s32 1, %s13
  $region7: #{attention_forward.1} parent=0 // loop_footer_branch
    %12 = sbr.rel target = $region3
  $region8: #{attention_forward.1} parent=0 // loop_exit
    _

</llo_original>
